<compile_context>
chip_gen: v7x
topology: tpu7x:2x2x1
jax: 0.10.0
libtpu: 0.0.40
codegen_flags: <defaults>
</compile_context>

<pallas_src>
import functools

import jax
import jax.numpy as jnp
from jax.experimental import pallas as pl
from jax.experimental.pallas import tpu as pltpu


# ----------------------------------------------------------------------------
# Conv-as-GEMM Pallas kernel (encoder ec1-ec3, decoder dc2-dc4)
# ----------------------------------------------------------------------------
def _conv_gemm_kernel(w_ref, b_ref, col_ref, o_ref, *, act):
    # out(OC, M) = act( W(OC, K) @ colT(K, M) + b(OC, 1) ), f32 accumulate.
    acc = jnp.dot(w_ref[...], col_ref[...], preferred_element_type=jnp.float32)
    acc = acc + b_ref[...]
    if act == "relu":
        acc = jnp.maximum(acc, 0.0)
    elif act == "sigmoid":
        acc = jax.nn.sigmoid(acc)
    o_ref[...] = acc.astype(o_ref.dtype)


_COL_BUDGET_BYTES = 4 << 20          # per colT VMEM buffer (Pallas double-buffers)


def _pick_tm(m, k, itemsize):
    """Byte-aware lane tile for the GEMM M axis.

    - single VMEM-resident block while M < 1024 (launch overhead dominates),
    - otherwise >=2 tiles (maps the "parallel" axis onto both v7x TensorCores),
      each a multiple of 128 lanes, >=512, capped so K*tm*itemsize stays within
      the per-buffer budget (small-K layers get big 2-8K-lane tiles, K>=1024
      layers stay near 512-1024).
    """
    if m < 1024:
        return m
    cap = (_COL_BUDGET_BYTES // (k * itemsize)) // 128 * 128
    cap = max(512, min(cap, 8192))
    half = ((m + 1) // 2 + 127) // 128 * 128      # ~M/2 rounded up to 128
    return max(512, min(cap, half))


def conv_gemm(wm, b, colT, act, out_dtype):
    """act(W @ colT + b). wm:(OC,K) bf16, colT:(K,M) bf16, b:(OC,1) f32."""
    oc, k = wm.shape
    k2, m = colT.shape
    assert k == k2
    tm = _pick_tm(m, k, colT.dtype.itemsize)
    grid = (pl.cdiv(m, tm),)
    cost = pl.CostEstimate(
        flops=2 * oc * k * m,
        transcendentals=oc * m if act == "sigmoid" else 0,
        bytes_accessed=colT.dtype.itemsize * (k * m + oc * k)
        + jnp.dtype(out_dtype).itemsize * oc * m,
    )
    return pl.pallas_call(
        functools.partial(_conv_gemm_kernel, act=act),
        out_shape=jax.ShapeDtypeStruct((oc, m), out_dtype),
        grid=grid,
        in_specs=[
            pl.BlockSpec((oc, k), lambda i: (0, 0)),   # weights resident
            pl.BlockSpec((oc, 1), lambda i: (0, 0)),   # bias resident
            pl.BlockSpec((k, tm), lambda i: (0, i)),   # lane-dense M tile
        ],
        out_specs=pl.BlockSpec((oc, tm), lambda i: (0, i)),
        compiler_params=pltpu.CompilerParams(
            dimension_semantics=("parallel",),
            vmem_limit_bytes=32 * 1024 * 1024),
        cost_estimate=cost,
    )(wm, b, colT)


# ----------------------------------------------------------------------------
# Fused ec4 + Flatten + fc1/fc2 + reparameterize + fc3 + Unflatten + dc1
# ----------------------------------------------------------------------------
def _bottleneck_fused_kernel(col_ref, eps_ref, ec4_w_ref, ec4_b_ref,
                             w1_ref, b1_ref, w2_ref, b2_ref,
                             fc3_ref, b3_ref, dc1_w_ref, dc1_b_ref,
                             mu_ref, logvar_ref, dc1_ref):
    n = eps_ref.shape[1]
    mu = jnp.zeros((4, n), jnp.float32)
    logvar = jnp.zeros((4, n), jnp.float32)
    # ec4 conv (no activation) + fc1/fc2.  nn.Flatten is folded into the
    # per-spatial-position weight taps, so the ec4 activation never leaves
    # VMEM and both fc layers reuse the same (8, N) tile.
    for s in range(4):
        h_s = jnp.dot(ec4_w_ref[...], col_ref[s],
                      preferred_element_type=jnp.float32) + ec4_b_ref[...]
        mu = mu + jnp.dot(w1_ref[s], h_s, preferred_element_type=jnp.float32)
        logvar = logvar + jnp.dot(w2_ref[s], h_s,
                                  preferred_element_type=jnp.float32)
    mu = mu + b1_ref[...]
    logvar = logvar + b2_ref[...]
    # reparameterize + fc3 (fc3 rows pre-permuted to fold nn.Unflatten).
    z = mu + jnp.exp(0.5 * logvar) * eps_ref[...]
    z2 = jnp.dot(fc3_ref[...], z, preferred_element_type=jnp.float32) + b3_ref[...]
    # dc1 (ConvTranspose2d k=2, s=2, p=1): each output pixel depends on exactly
    # one input pixel, so it is 4 independent (16, 8) @ (8, N) matmuls — no
    # dilation / im2col / HBM traffic at all.
    for s in range(4):
        y = jnp.dot(dc1_w_ref[s], z2[s * 8:(s + 1) * 8, :],
                    preferred_element_type=jnp.float32) + dc1_b_ref[...]
        dc1_ref[s, :, :] = jnp.maximum(y, 0.0).astype(dc1_ref.dtype)
    mu_ref[...] = mu
    logvar_ref[...] = logvar


def bottleneck_fused(pp, col4, eps_t):
    n = eps_t.shape[1]
    return pl.pallas_call(
        _bottleneck_fused_kernel,
        out_shape=(jax.ShapeDtypeStruct((4, n), jnp.float32),     # mu^T
                   jax.ShapeDtypeStruct((4, n), jnp.float32),     # logvar^T
                   jax.ShapeDtypeStruct((4, 16, n), jnp.bfloat16)),  # dc1 per-pixel
    )(col4, eps_t, pp["ec4_w"], pp["ec4_b"],
      pp["fc1_wt"], pp["fc1_b"], pp["fc2_wt"], pp["fc2_b"],
      pp["fc3_w"], pp["fc3_b"], pp["dc1_wt"], pp["dc1_b"])


# ----------------------------------------------------------------------------
# Wrapper glue (layout plumbing only) on (C, N, H, W) activations
# ----------------------------------------------------------------------------
def _im2col(xp, k, stride):
    # xp: (C, N, Hp, Wp) already padded. Returns colT (k*k*C, N*OH*OW), OH, OW.
    c, n, hp, wp = xp.shape
    oh = (hp - k) // stride + 1
    ow = (wp - k) // stride + 1
    taps = []
    for i in range(k):
        for j in range(k):
            taps.append(xp[:, :, i:i + stride * (oh - 1) + 1:stride,
                              j:j + stride * (ow - 1) + 1:stride])
    col = jnp.stack(taps, axis=0)                # (k*k, C, N, OH, OW)
    col = col.reshape(k * k * c, n * oh * ow)    # K-order (kh, kw, C)
    return col, oh, ow


def _im2col_ec4(hp):
    # hp: (16, N, 5, 5) padded ec3 output.  Returns (4, 64, N): for each output
    # spatial position s=(oh, ow), the (kh, kw, C)-ordered patch matrix.
    c, n = hp.shape[0], hp.shape[1]
    taps = [hp[:, :, i:i + 3:2, j:j + 3:2] for i in range(2) for j in range(2)]
    col = jnp.stack(taps, axis=0)                # (4, C, N, 2, 2) = [t, c, n, oh, ow]
    col = jnp.transpose(col, (3, 4, 0, 1, 2))    # (oh, ow, t, c, n)
    return col.reshape(4, 4 * c, n)


def conv2d(x, wm, b, k, stride, pad, act, out_dtype):
    c, n, h, w = x.shape
    xp = jnp.pad(x, ((0, 0), (0, 0), (pad, pad), (pad, pad)))
    col, oh, ow = _im2col(xp, k, stride)
    out = conv_gemm(wm, b, col, act, out_dtype)  # (OC, N*OH*OW)
    return out.reshape(wm.shape[0], n, oh, ow)


def conv_transpose2d(x, wm, b, k, stride, pad, out_pad, act, out_dtype):
    c, n, h, w = x.shape
    lo = k - 1 - pad
    hi = k - 1 - pad + out_pad
    zero = jnp.zeros((), x.dtype)
    # One lax.pad does both the stride-dilation and the edge padding.
    xd = jax.lax.pad(x, zero, ((0, 0, 0), (0, 0, 0),
                               (lo, hi, stride - 1), (lo, hi, stride - 1)))
    col, oh, ow = _im2col(xd, k, 1)
    out = conv_gemm(wm, b, col, act, out_dtype)
    return out.reshape(wm.shape[0], n, oh, ow)


# ----------------------------------------------------------------------------
# Parameter init (PyTorch layouts) and one-time kernel-friendly prep
# ----------------------------------------------------------------------------
def _uinit(key, shape, fan_in):
    bound = 1.0 / jnp.sqrt(jnp.asarray(fan_in, jnp.float32))
    return jax.random.uniform(key, shape, jnp.float32, -bound, bound)


def init_params(key):
    ks = jax.random.split(key, 22)
    p = {}
    # encoder convs: (OC, IC, kh, kw)
    p["ec1_w"] = _uinit(ks[0], (16, 1, 3, 3), 1 * 9);    p["ec1_b"] = _uinit(ks[1], (16,), 1 * 9)
    p["ec2_w"] = _uinit(ks[2], (32, 16, 3, 3), 16 * 9);  p["ec2_b"] = _uinit(ks[3], (32,), 16 * 9)
    p["ec3_w"] = _uinit(ks[4], (16, 32, 8, 8), 32 * 64); p["ec3_b"] = _uinit(ks[5], (16,), 32 * 64)
    p["ec4_w"] = _uinit(ks[6], (8, 16, 2, 2), 16 * 4);   p["ec4_b"] = _uinit(ks[7], (8,), 16 * 4)
    # fc layers: PyTorch Linear weight (out, in)
    p["fc1_w"] = _uinit(ks[8], (4, 32), 32);   p["fc1_b"] = _uinit(ks[9], (4,), 32)
    p["fc2_w"] = _uinit(ks[10], (4, 32), 32);  p["fc2_b"] = _uinit(ks[11], (4,), 32)
    p["fc3_w"] = _uinit(ks[12], (32, 4), 4);   p["fc3_b"] = _uinit(ks[13], (32,), 4)
    # decoder transposed convs: (IC, OC, kh, kw)
    p["dc1_w"] = _uinit(ks[14], (8, 16, 2, 2), 16 * 4);   p["dc1_b"] = _uinit(ks[15], (16,), 16 * 4)
    p["dc2_w"] = _uinit(ks[16], (16, 32, 8, 8), 32 * 64); p["dc2_b"] = _uinit(ks[17], (32,), 32 * 64)
    p["dc3_w"] = _uinit(ks[18], (32, 16, 3, 3), 16 * 9);  p["dc3_b"] = _uinit(ks[19], (16,), 16 * 9)
    p["dc4_w"] = _uinit(ks[20], (16, 1, 3, 3), 1 * 9);    p["dc4_b"] = _uinit(ks[21], (1,), 1 * 9)
    return p


def prepare_params(p):
    """One-time weight prep: flatten/flip/permute + bf16 cast for the MXU."""
    def conv_w(w):                 # (OC, C, kh, kw) -> (OC, kh*kw*C) bf16
        oc, c, kh, kw = w.shape
        return jnp.transpose(w, (0, 2, 3, 1)).reshape(oc, kh * kw * c).astype(jnp.bfloat16)

    def deconv_w(w):               # (Cin, Cout, kh, kw): flip, swap, flatten
        w = jnp.flip(w, axis=(2, 3))
        w = jnp.transpose(w, (1, 2, 3, 0))      # (Cout, kh, kw, Cin)
        cout, kh, kw, cin = w.shape
        return w.reshape(cout, kh * kw * cin).astype(jnp.bfloat16)

    def cbias(b):
        return b.reshape(-1, 1).astype(jnp.float32)

    pp = {}
    for name in ("ec1", "ec2", "ec3", "ec4"):
        pp[name + "_w"] = conv_w(p[name + "_w"]); pp[name + "_b"] = cbias(p[name + "_b"])
    for name in ("dc2", "dc3", "dc4"):
        pp[name + "_w"] = deconv_w(p[name + "_w"]); pp[name + "_b"] = cbias(p[name + "_b"])

    # --- fused bottleneck section ---
    # fc1/fc2 as per-encoder-spatial-position taps (folds nn.Flatten):
    # tap[s, z, c] = W[z, c*4 + s]
    def tapify(fcw):
        z = fcw.shape[0]
        return jnp.transpose(fcw.reshape(z, 8, 4), (2, 0, 1)).astype(jnp.float32)

    pp["fc1_wt"] = tapify(p["fc1_w"]); pp["fc1_b"] = p["fc1_b"].reshape(4, 1).astype(jnp.float32)
    pp["fc2_wt"] = tapify(p["fc2_w"]); pp["fc2_b"] = p["fc2_b"].reshape(4, 1).astype(jnp.float32)
    # fc3 with output rows permuted from (c, s) to (s, c) (folds nn.Unflatten):
    pp["fc3_w"] = jnp.transpose(p["fc3_w"].reshape(8, 4, 4),
                                (1, 0, 2)).reshape(32, 4).astype(jnp.float32)
    pp["fc3_b"] = jnp.transpose(p["fc3_b"].reshape(8, 4),
                                (1, 0)).reshape(32, 1).astype(jnp.float32)
    # dc1 (k=2,s=2,p=1): per-output-pixel (16, 8) taps, kernel spatially flipped.
    d1 = jnp.transpose(jnp.flip(p["dc1_w"], axis=(2, 3)), (2, 3, 1, 0))  # (i, j, oc, c)
    pp["dc1_wt"] = d1.reshape(4, 16, 8).astype(jnp.float32)
    pp["dc1_b"] = p["dc1_b"].reshape(16, 1).astype(jnp.float32)
    return pp


# ----------------------------------------------------------------------------
# VAE_try forward
# ----------------------------------------------------------------------------
@jax.jit
def forward(pp, x, eps):
    n = x.shape[0]
    xc = jnp.transpose(x, (1, 0, 2, 3)).astype(jnp.bfloat16)     # NCHW -> CNHW
    # Encoder (lane-dense (OC, M) conv GEMMs)
    h = conv2d(xc, pp["ec1_w"], pp["ec1_b"], 3, 2, 1, "relu", jnp.bfloat16)
    h = conv2d(h, pp["ec2_w"], pp["ec2_b"], 3, 2, 1, "relu", jnp.bfloat16)
    h = conv2d(h, pp["ec3_w"], pp["ec3_b"], 8, 2, 1, "relu", jnp.bfloat16)   # (16, N, 3, 3)
    # Fused ec4 + Flatten + fc1/fc2 + reparameterize + fc3 + Unflatten + dc1
    hp = jnp.pad(h, ((0, 0), (0, 0), (1, 1), (1, 1)))            # ec4 pad=1
    col4 = _im2col_ec4(hp)                                       # (4, 64, N)
    eps_t = jnp.transpose(eps).astype(jnp.float32)               # (4, N)
    mu_t, logvar_t, d1 = bottleneck_fused(pp, col4, eps_t)
    d = jnp.transpose(d1, (1, 2, 0)).reshape(16, n, 2, 2)        # (16, N, 2, 2) CNHW
    # Decoder
    d = conv_transpose2d(d, pp["dc2_w"], pp["dc2_b"], 8, 2, 1, 0, "relu", jnp.bfloat16)
    d = conv_transpose2d(d, pp["dc3_w"], pp["dc3_b"], 3, 2, 1, 1, "relu", jnp.bfloat16)
    d = conv_transpose2d(d, pp["dc4_w"], pp["dc4_b"], 3, 2, 1, 1, "sigmoid", jnp.float32)
    recon = d.reshape(n, 1, 32, 32)                              # (1, N, 32, 32) -> NCHW
    return recon, jnp.transpose(mu_t), jnp.transpose(logvar_t)


# ----------------------------------------------------------------------------
# Pure-f32 JAX reference (lax convs) for the correctness tolerance check
# ----------------------------------------------------------------------------
def reference_forward(p, x, eps):
    hi = jax.lax.Precision.HIGHEST

    def conv(x, w, b, s, pad):
        y = jax.lax.conv_general_dilated(
            x, w, (s, s), ((pad, pad), (pad, pad)),
            dimension_numbers=("NCHW", "OIHW", "NCHW"), precision=hi)
        return y + b.reshape(1, -1, 1, 1)

    def deconv(x, w, b, s, pad, opad):
        k = w.shape[2]
        wf = jnp.transpose(jnp.flip(w, (2, 3)), (1, 0, 2, 3))
        y = jax.lax.conv_general_dilated(
            x, wf, (1, 1), ((k - 1 - pad, k - 1 - pad + opad),) * 2,
            lhs_dilation=(s, s),
            dimension_numbers=("NCHW", "OIHW", "NCHW"), precision=hi)
        return y + b.reshape(1, -1, 1, 1)

    n = x.shape[0]
    h = jax.nn.relu(conv(x, p["ec1_w"], p["ec1_b"], 2, 1))
    h = jax.nn.relu(conv(h, p["ec2_w"], p["ec2_b"], 2, 1))
    h = jax.nn.relu(conv(h, p["ec3_w"], p["ec3_b"], 2, 1))
    h = conv(h, p["ec4_w"], p["ec4_b"], 2, 1)
    hf = h.reshape(n, 32)
    mu = hf @ p["fc1_w"].T + p["fc1_b"]
    logvar = hf @ p["fc2_w"].T + p["fc2_b"]
    z = mu + jnp.exp(0.5 * logvar) * eps
    z2 = z @ p["fc3_w"].T + p["fc3_b"]
    d = z2.reshape(n, 8, 2, 2)
    d = jax.nn.relu(deconv(d, p["dc1_w"], p["dc1_b"], 2, 1, 0))
    d = jax.nn.relu(deconv(d, p["dc2_w"], p["dc2_b"], 2, 1, 0))
    d = jax.nn.relu(deconv(d, p["dc3_w"], p["dc3_b"], 2, 1, 1))
    d = jax.nn.sigmoid(deconv(d, p["dc4_w"], p["dc4_b"], 2, 1, 1))
    return d, mu, logvar


if __name__ == "__main__":
    key = jax.random.PRNGKey(0)
    kx, kp, ke = jax.random.split(key, 3)
    params = init_params(kp)
    pp = prepare_params(params)

    # 40x40 single-channel input -> encoder spatial 40->20->10->3->2, h_dim=32.
    # N=2 is the base case; N=3 exercises the ragged last M-tile path (ec1).
    for n in (2, 3):
        x = jax.random.normal(jax.random.fold_in(kx, n), (n, 1, 40, 40), jnp.float32)
        eps = jax.random.normal(jax.random.fold_in(ke, n), (n, 4), jnp.float32)

        recon, mu, logvar = forward(pp, x, eps)
        jax.block_until_ready((recon, mu, logvar))

        assert recon.shape == (n, 1, 32, 32), recon.shape
        assert mu.shape == (n, 4) and logvar.shape == (n, 4)
        assert bool(jnp.all(recon >= 0.0) & jnp.all(recon <= 1.0))

        r_recon, r_mu, r_logvar = reference_forward(params, x, eps)
        assert float(jnp.max(jnp.abs(recon - r_recon))) < 5e-2
        assert float(jnp.max(jnp.abs(mu - r_mu))) < 5e-2
        assert float(jnp.max(jnp.abs(logvar - r_logvar))) < 5e-2

    print("KERNEL_OK")
</pallas_src>

<mosaic_0001>
module attributes {stable_mosaic.version = 11 : i64} {
  func.func @_conv_gemm_kernel(%arg0: i32, %arg1: memref<16x9xbf16, #tpu.memory_space<vmem>>, %arg2: memref<16x1xf32, #tpu.memory_space<vmem>>, %arg3: memref<9x800xbf16, #tpu.memory_space<vmem>>, %arg4: memref<16x800xbf16, #tpu.memory_space<vmem>>) attributes {dimension_semantics = [#tpu.dimension_semantics<parallel>], iteration_bounds = array<i64: 1>, scalar_prefetch = 0 : i64, scratch_operands = 0 : i64, tpu.core_type = #tpu.core_type<tc>, window_params = [{pipeline_mode = #tpu.pipeline_mode<synchronous>, transform_indices = @transform_0, window_bounds = array<i64: 16, 9>}, {pipeline_mode = #tpu.pipeline_mode<synchronous>, transform_indices = @transform_1, window_bounds = array<i64: 16, 1>}, {transform_indices = @transform_2, window_bounds = array<i64: 9, 800>}, {transform_indices = @transform_3, window_bounds = array<i64: 16, 800>}]} {
    %c0 = arith.constant 0 : index
    %c0_0 = arith.constant 0 : index
    %0 = vector.load %arg1[%c0, %c0_0] : memref<16x9xbf16, #tpu.memory_space<vmem>>, vector<16x9xbf16>
    %c0_1 = arith.constant 0 : index
    %c0_2 = arith.constant 0 : index
    %1 = vector.load %arg3[%c0_1, %c0_2] : memref<9x800xbf16, #tpu.memory_space<vmem>>, vector<9x800xbf16>
    %cst = arith.constant dense<0.000000e+00> : vector<16x800xf32>
    %2 = tpu.matmul %0, %1, %cst {dimension_numbers = #tpu.dot_dimension_numbers<[1], [0], [0], [1], [0, 0, 1, 1], [], []>} : vector<16x9xbf16>, vector<9x800xbf16>, vector<16x800xf32> -> vector<16x800xf32>
    %c0_3 = arith.constant 0 : index
    %c0_4 = arith.constant 0 : index
    %3 = vector.load %arg2[%c0_3, %c0_4] : memref<16x1xf32, #tpu.memory_space<vmem>>, vector<16x1xf32>
    %4 = vector.broadcast %3 : vector<16x1xf32> to vector<16x800xf32>
    %5 = arith.addf %2, %4 : vector<16x800xf32>
    %cst_5 = arith.constant 0.000000e+00 : f32
    %6 = vector.broadcast %cst_5 : f32 to vector<16x800xf32>
    %7 = arith.maximumf %5, %6 : vector<16x800xf32>
    %8 = arith.truncf %7 : vector<16x800xf32> to vector<16x800xbf16>
    %c0_6 = arith.constant 0 : index
    %c0_7 = arith.constant 0 : index
    %9 = vector.load %arg4[%c0_6, %c0_7] : memref<16x800xbf16, #tpu.memory_space<vmem>>, vector<16x800xbf16>
    tpu.vector_store %arg4[%c0_6, %c0_7], %8 {strides = array<i32>} : memref<16x800xbf16, #tpu.memory_space<vmem>>, vector<16x800xbf16>,
    return
  }
  func.func @transform_0(%arg0: i32) -> (i32, i32) {
    %c0_i32 = arith.constant 0 : i32
    %c0_i32_0 = arith.constant 0 : i32
    %c0_i32_1 = arith.constant 0 : i32
    return %c0_i32, %c0_i32_0 : i32, i32
  }
  func.func @transform_1(%arg0: i32) -> (i32, i32) {
    %c0_i32 = arith.constant 0 : i32
    %c0_i32_0 = arith.constant 0 : i32
    %c0_i32_1 = arith.constant 0 : i32
    return %c0_i32, %c0_i32_0 : i32, i32
  }
  func.func @transform_2(%arg0: i32) -> (i32, i32) {
    %c0_i32 = arith.constant 0 : i32
    %c0_i32_0 = arith.constant 0 : i32
    return %c0_i32, %arg0 : i32, i32
  }
  func.func @transform_3(%arg0: i32) -> (i32, i32) {
    %c0_i32 = arith.constant 0 : i32
    %c0_i32_0 = arith.constant 0 : i32
    return %c0_i32, %arg0 : i32, i32
  }
}

module attributes {stable_mosaic.version = 11 : i64} {
  func.func @_conv_gemm_kernel(%arg0: i32, %arg1: memref<32x144xbf16, #tpu.memory_space<vmem>>, %arg2: memref<32x1xf32, #tpu.memory_space<vmem>>, %arg3: memref<144x200xbf16, #tpu.memory_space<vmem>>, %arg4: memref<32x200xbf16, #tpu.memory_space<vmem>>) attributes {dimension_semantics = [#tpu.dimension_semantics<parallel>], iteration_bounds = array<i64: 1>, scalar_prefetch = 0 : i64, scratch_operands = 0 : i64, tpu.core_type = #tpu.core_type<tc>, window_params = [{pipeline_mode = #tpu.pipeline_mode<synchronous>, transform_indices = @transform_0, window_bounds = array<i64: 32, 144>}, {pipeline_mode = #tpu.pipeline_mode<synchronous>, transform_indices = @transform_1, window_bounds = array<i64: 32, 1>}, {transform_indices = @transform_2, window_bounds = array<i64: 144, 200>}, {transform_indices = @transform_3, window_bounds = array<i64: 32, 200>}]} {
    %c0 = arith.constant 0 : index
    %c0_0 = arith.constant 0 : index
    %0 = vector.load %arg1[%c0, %c0_0] : memref<32x144xbf16, #tpu.memory_space<vmem>>, vector<32x144xbf16>
    %c0_1 = arith.constant 0 : index
    %c0_2 = arith.constant 0 : index
    %1 = vector.load %arg3[%c0_1, %c0_2] : memref<144x200xbf16, #tpu.memory_space<vmem>>, vector<144x200xbf16>
    %cst = arith.constant dense<0.000000e+00> : vector<32x200xf32>
    %2 = tpu.matmul %0, %1, %cst {dimension_numbers = #tpu.dot_dimension_numbers<[1], [0], [0], [1], [0, 0, 1, 1], [], []>} : vector<32x144xbf16>, vector<144x200xbf16>, vector<32x200xf32> -> vector<32x200xf32>
    %c0_3 = arith.constant 0 : index
    %c0_4 = arith.constant 0 : index
    %3 = vector.load %arg2[%c0_3, %c0_4] : memref<32x1xf32, #tpu.memory_space<vmem>>, vector<32x1xf32>
    %4 = vector.broadcast %3 : vector<32x1xf32> to vector<32x200xf32>
    %5 = arith.addf %2, %4 : vector<32x200xf32>
    %cst_5 = arith.constant 0.000000e+00 : f32
    %6 = vector.broadcast %cst_5 : f32 to vector<32x200xf32>
    %7 = arith.maximumf %5, %6 : vector<32x200xf32>
    %8 = arith.truncf %7 : vector<32x200xf32> to vector<32x200xbf16>
    %c0_6 = arith.constant 0 : index
    %c0_7 = arith.constant 0 : index
    %9 = vector.load %arg4[%c0_6, %c0_7] : memref<32x200xbf16, #tpu.memory_space<vmem>>, vector<32x200xbf16>
    tpu.vector_store %arg4[%c0_6, %c0_7], %8 {strides = array<i32>} : memref<32x200xbf16, #tpu.memory_space<vmem>>, vector<32x200xbf16>,
    return
  }
  func.func @transform_0(%arg0: i32) -> (i32, i32) {
    %c0_i32 = arith.constant 0 : i32
    %c0_i32_0 = arith.constant 0 : i32
    %c0_i32_1 = arith.constant 0 : i32
    return %c0_i32, %c0_i32_0 : i32, i32
  }
  func.func @transform_1(%arg0: i32) -> (i32, i32) {
    %c0_i32 = arith.constant 0 : i32
    %c0_i32_0 = arith.constant 0 : i32
    %c0_i32_1 = arith.constant 0 : i32
    return %c0_i32, %c0_i32_0 : i32, i32
  }
  func.func @transform_2(%arg0: i32) -> (i32, i32) {
    %c0_i32 = arith.constant 0 : i32
    %c0_i32_0 = arith.constant 0 : i32
    return %c0_i32, %arg0 : i32, i32
  }
  func.func @transform_3(%arg0: i32) -> (i32, i32) {
    %c0_i32 = arith.constant 0 : i32
    %c0_i32_0 = arith.constant 0 : i32
    return %c0_i32, %arg0 : i32, i32
  }
}

module attributes {stable_mosaic.version = 11 : i64} {
  func.func @_conv_gemm_kernel(%arg0: i32, %arg1: memref<16x2048xbf16, #tpu.memory_space<vmem>>, %arg2: memref<16x1xf32, #tpu.memory_space<vmem>>, %arg3: memref<2048x18xbf16, #tpu.memory_space<vmem>>, %arg4: memref<16x18xbf16, #tpu.memory_space<vmem>>) attributes {dimension_semantics = [#tpu.dimension_semantics<parallel>], iteration_bounds = array<i64: 1>, scalar_prefetch = 0 : i64, scratch_operands = 0 : i64, tpu.core_type = #tpu.core_type<tc>, window_params = [{pipeline_mode = #tpu.pipeline_mode<synchronous>, transform_indices = @transform_0, window_bounds = array<i64: 16, 2048>}, {pipeline_mode = #tpu.pipeline_mode<synchronous>, transform_indices = @transform_1, window_bounds = array<i64: 16, 1>}, {transform_indices = @transform_2, window_bounds = array<i64: 2048, 18>}, {transform_indices = @transform_3, window_bounds = array<i64: 16, 18>}]} {
    %c0 = arith.constant 0 : index
    %c0_0 = arith.constant 0 : index
    %0 = vector.load %arg1[%c0, %c0_0] : memref<16x2048xbf16, #tpu.memory_space<vmem>>, vector<16x2048xbf16>
    %c0_1 = arith.constant 0 : index
    %c0_2 = arith.constant 0 : index
    %1 = vector.load %arg3[%c0_1, %c0_2] : memref<2048x18xbf16, #tpu.memory_space<vmem>>, vector<2048x18xbf16>
    %cst = arith.constant dense<0.000000e+00> : vector<16x18xf32>
    %2 = tpu.matmul %0, %1, %cst {dimension_numbers = #tpu.dot_dimension_numbers<[1], [0], [0], [1], [0, 0, 1, 1], [], []>} : vector<16x2048xbf16>, vector<2048x18xbf16>, vector<16x18xf32> -> vector<16x18xf32>
    %c0_3 = arith.constant 0 : index
    %c0_4 = arith.constant 0 : index
    %3 = vector.load %arg2[%c0_3, %c0_4] : memref<16x1xf32, #tpu.memory_space<vmem>>, vector<16x1xf32>
    %4 = vector.broadcast %3 : vector<16x1xf32> to vector<16x18xf32>
    %5 = arith.addf %2, %4 : vector<16x18xf32>
    %cst_5 = arith.constant 0.000000e+00 : f32
    %6 = vector.broadcast %cst_5 : f32 to vector<16x18xf32>
    %7 = arith.maximumf %5, %6 : vector<16x18xf32>
    %8 = arith.truncf %7 : vector<16x18xf32> to vector<16x18xbf16>
    %c0_6 = arith.constant 0 : index
    %c0_7 = arith.constant 0 : index
    %9 = vector.load %arg4[%c0_6, %c0_7] : memref<16x18xbf16, #tpu.memory_space<vmem>>, vector<16x18xbf16>
    tpu.vector_store %arg4[%c0_6, %c0_7], %8 {strides = array<i32>} : memref<16x18xbf16, #tpu.memory_space<vmem>>, vector<16x18xbf16>,
    return
  }
  func.func @transform_0(%arg0: i32) -> (i32, i32) {
    %c0_i32 = arith.constant 0 : i32
    %c0_i32_0 = arith.constant 0 : i32
    %c0_i32_1 = arith.constant 0 : i32
    return %c0_i32, %c0_i32_0 : i32, i32
  }
  func.func @transform_1(%arg0: i32) -> (i32, i32) {
    %c0_i32 = arith.constant 0 : i32
    %c0_i32_0 = arith.constant 0 : i32
    %c0_i32_1 = arith.constant 0 : i32
    return %c0_i32, %c0_i32_0 : i32, i32
  }
  func.func @transform_2(%arg0: i32) -> (i32, i32) {
    %c0_i32 = arith.constant 0 : i32
    %c0_i32_0 = arith.constant 0 : i32
    return %c0_i32, %arg0 : i32, i32
  }
  func.func @transform_3(%arg0: i32) -> (i32, i32) {
    %c0_i32 = arith.constant 0 : i32
    %c0_i32_0 = arith.constant 0 : i32
    return %c0_i32, %arg0 : i32, i32
  }
}

module attributes {stable_mosaic.version = 11 : i64} {
  func.func @_bottleneck_fused_kernel(%arg0: memref<4x64x2xbf16, #tpu.memory_space<vmem>>, %arg1: memref<4x2xf32, #tpu.memory_space<vmem>>, %arg2: memref<8x64xbf16, #tpu.memory_space<vmem>>, %arg3: memref<8x1xf32, #tpu.memory_space<vmem>>, %arg4: memref<4x4x8xf32, #tpu.memory_space<vmem>>, %arg5: memref<4x1xf32, #tpu.memory_space<vmem>>, %arg6: memref<4x4x8xf32, #tpu.memory_space<vmem>>, %arg7: memref<4x1xf32, #tpu.memory_space<vmem>>, %arg8: memref<32x4xf32, #tpu.memory_space<vmem>>, %arg9: memref<32x1xf32, #tpu.memory_space<vmem>>, %arg10: memref<4x16x8xf32, #tpu.memory_space<vmem>>, %arg11: memref<16x1xf32, #tpu.memory_space<vmem>>, %arg12: memref<4x2xf32, #tpu.memory_space<vmem>>, %arg13: memref<4x2xf32, #tpu.memory_space<vmem>>, %arg14: memref<4x16x2xbf16, #tpu.memory_space<vmem>>) attributes {dimension_semantics = [], scalar_prefetch = 0 : i64, scratch_operands = 0 : i64, tpu.core_type = #tpu.core_type<tc>} {
    %cst = arith.constant 0.000000e+00 : f32
    %0 = vector.broadcast %cst : f32 to vector<4x2xf32>
    %cst_0 = arith.constant 0.000000e+00 : f32
    %1 = vector.broadcast %cst_0 : f32 to vector<4x2xf32>
    %c0 = arith.constant 0 : index
    %c0_1 = arith.constant 0 : index
    %2 = vector.load %arg2[%c0, %c0_1] : memref<8x64xbf16, #tpu.memory_space<vmem>>, vector<8x64xbf16>
    %c0_2 = arith.constant 0 : index
    %c0_3 = arith.constant 0 : index
    %c0_4 = arith.constant 0 : index
    %3 = vector.load %arg0[%c0_2, %c0_3, %c0_4] : memref<4x64x2xbf16, #tpu.memory_space<vmem>>, vector<1x64x2xbf16>
    %4 = vector.shape_cast %3 : vector<1x64x2xbf16> to vector<64x2xbf16>
    %cst_5 = arith.constant dense<0.000000e+00> : vector<8x2xf32>
    %5 = tpu.matmul %2, %4, %cst_5 {dimension_numbers = #tpu.dot_dimension_numbers<[1], [0], [0], [1], [0, 0, 1, 1], [], []>} : vector<8x64xbf16>, vector<64x2xbf16>, vector<8x2xf32> -> vector<8x2xf32>
    %c0_6 = arith.constant 0 : index
    %c0_7 = arith.constant 0 : index
    %6 = vector.load %arg3[%c0_6, %c0_7] : memref<8x1xf32, #tpu.memory_space<vmem>>, vector<8x1xf32>
    %7 = vector.broadcast %6 : vector<8x1xf32> to vector<8x2xf32>
    %8 = arith.addf %5, %7 : vector<8x2xf32>
    %c0_8 = arith.constant 0 : index
    %c0_9 = arith.constant 0 : index
    %c0_10 = arith.constant 0 : index
    %9 = vector.load %arg4[%c0_8, %c0_9, %c0_10] : memref<4x4x8xf32, #tpu.memory_space<vmem>>, vector<1x4x8xf32>
    %10 = vector.shape_cast %9 : vector<1x4x8xf32> to vector<4x8xf32>
    %cst_11 = arith.constant dense<0.000000e+00> : vector<4x2xf32>
    %11 = tpu.matmul %10, %8, %cst_11 {dimension_numbers = #tpu.dot_dimension_numbers<[1], [0], [0], [1], [0, 0, 1, 1], [], []>} : vector<4x8xf32>, vector<8x2xf32>, vector<4x2xf32> -> vector<4x2xf32>
    %12 = arith.addf %0, %11 : vector<4x2xf32>
    %c0_12 = arith.constant 0 : index
    %c0_13 = arith.constant 0 : index
    %c0_14 = arith.constant 0 : index
    %13 = vector.load %arg6[%c0_12, %c0_13, %c0_14] : memref<4x4x8xf32, #tpu.memory_space<vmem>>, vector<1x4x8xf32>
    %14 = vector.shape_cast %13 : vector<1x4x8xf32> to vector<4x8xf32>
    %cst_15 = arith.constant dense<0.000000e+00> : vector<4x2xf32>
    %15 = tpu.matmul %14, %8, %cst_15 {dimension_numbers = #tpu.dot_dimension_numbers<[1], [0], [0], [1], [0, 0, 1, 1], [], []>} : vector<4x8xf32>, vector<8x2xf32>, vector<4x2xf32> -> vector<4x2xf32>
    %16 = arith.addf %1, %15 : vector<4x2xf32>
    %c0_16 = arith.constant 0 : index
    %c0_17 = arith.constant 0 : index
    %17 = vector.load %arg2[%c0_16, %c0_17] : memref<8x64xbf16, #tpu.memory_space<vmem>>, vector<8x64xbf16>
    %c1 = arith.constant 1 : index
    %c0_18 = arith.constant 0 : index
    %c0_19 = arith.constant 0 : index
    %18 = vector.load %arg0[%c1, %c0_18, %c0_19] : memref<4x64x2xbf16, #tpu.memory_space<vmem>>, vector<1x64x2xbf16>
    %19 = vector.shape_cast %18 : vector<1x64x2xbf16> to vector<64x2xbf16>
    %cst_20 = arith.constant dense<0.000000e+00> : vector<8x2xf32>
    %20 = tpu.matmul %17, %19, %cst_20 {dimension_numbers = #tpu.dot_dimension_numbers<[1], [0], [0], [1], [0, 0, 1, 1], [], []>} : vector<8x64xbf16>, vector<64x2xbf16>, vector<8x2xf32> -> vector<8x2xf32>
    %c0_21 = arith.constant 0 : index
    %c0_22 = arith.constant 0 : index
    %21 = vector.load %arg3[%c0_21, %c0_22] : memref<8x1xf32, #tpu.memory_space<vmem>>, vector<8x1xf32>
    %22 = vector.broadcast %21 : vector<8x1xf32> to vector<8x2xf32>
    %23 = arith.addf %20, %22 : vector<8x2xf32>
    %c1_23 = arith.constant 1 : index
    %c0_24 = arith.constant 0 : index
    %c0_25 = arith.constant 0 : index
    %24 = vector.load %arg4[%c1_23, %c0_24, %c0_25] : memref<4x4x8xf32, #tpu.memory_space<vmem>>, vector<1x4x8xf32>
    %25 = vector.shape_cast %24 : vector<1x4x8xf32> to vector<4x8xf32>
    %cst_26 = arith.constant dense<0.000000e+00> : vector<4x2xf32>
    %26 = tpu.matmul %25, %23, %cst_26 {dimension_numbers = #tpu.dot_dimension_numbers<[1], [0], [0], [1], [0, 0, 1, 1], [], []>} : vector<4x8xf32>, vector<8x2xf32>, vector<4x2xf32> -> vector<4x2xf32>
    %27 = arith.addf %12, %26 : vector<4x2xf32>
    %c1_27 = arith.constant 1 : index
    %c0_28 = arith.constant 0 : index
    %c0_29 = arith.constant 0 : index
    %28 = vector.load %arg6[%c1_27, %c0_28, %c0_29] : memref<4x4x8xf32, #tpu.memory_space<vmem>>, vector<1x4x8xf32>
    %29 = vector.shape_cast %28 : vector<1x4x8xf32> to vector<4x8xf32>
    %cst_30 = arith.constant dense<0.000000e+00> : vector<4x2xf32>
    %30 = tpu.matmul %29, %23, %cst_30 {dimension_numbers = #tpu.dot_dimension_numbers<[1], [0], [0], [1], [0, 0, 1, 1], [], []>} : vector<4x8xf32>, vector<8x2xf32>, vector<4x2xf32> -> vector<4x2xf32>
    %31 = arith.addf %16, %30 : vector<4x2xf32>
    %c0_31 = arith.constant 0 : index
    %c0_32 = arith.constant 0 : index
    %32 = vector.load %arg2[%c0_31, %c0_32] : memref<8x64xbf16, #tpu.memory_space<vmem>>, vector<8x64xbf16>
    %c2 = arith.constant 2 : index
    %c0_33 = arith.constant 0 : index
    %c0_34 = arith.constant 0 : index
    %33 = vector.load %arg0[%c2, %c0_33, %c0_34] : memref<4x64x2xbf16, #tpu.memory_space<vmem>>, vector<1x64x2xbf16>
    %34 = vector.shape_cast %33 : vector<1x64x2xbf16> to vector<64x2xbf16>
    %cst_35 = arith.constant dense<0.000000e+00> : vector<8x2xf32>
    %35 = tpu.matmul %32, %34, %cst_35 {dimension_numbers = #tpu.dot_dimension_numbers<[1], [0], [0], [1], [0, 0, 1, 1], [], []>} : vector<8x64xbf16>, vector<64x2xbf16>, vector<8x2xf32> -> vector<8x2xf32>
    %c0_36 = arith.constant 0 : index
    %c0_37 = arith.constant 0 : index
    %36 = vector.load %arg3[%c0_36, %c0_37] : memref<8x1xf32, #tpu.memory_space<vmem>>, vector<8x1xf32>
    %37 = vector.broadcast %36 : vector<8x1xf32> to vector<8x2xf32>
    %38 = arith.addf %35, %37 : vector<8x2xf32>
    %c2_38 = arith.constant 2 : index
    %c0_39 = arith.constant 0 : index
    %c0_40 = arith.constant 0 : index
    %39 = vector.load %arg4[%c2_38, %c0_39, %c0_40] : memref<4x4x8xf32, #tpu.memory_space<vmem>>, vector<1x4x8xf32>
    %40 = vector.shape_cast %39 : vector<1x4x8xf32> to vector<4x8xf32>
    %cst_41 = arith.constant dense<0.000000e+00> : vector<4x2xf32>
    %41 = tpu.matmul %40, %38, %cst_41 {dimension_numbers = #tpu.dot_dimension_numbers<[1], [0], [0], [1], [0, 0, 1, 1], [], []>} : vector<4x8xf32>, vector<8x2xf32>, vector<4x2xf32> -> vector<4x2xf32>
    %42 = arith.addf %27, %41 : vector<4x2xf32>
    %c2_42 = arith.constant 2 : index
    %c0_43 = arith.constant 0 : index
    %c0_44 = arith.constant 0 : index
    %43 = vector.load %arg6[%c2_42, %c0_43, %c0_44] : memref<4x4x8xf32, #tpu.memory_space<vmem>>, vector<1x4x8xf32>
    %44 = vector.shape_cast %43 : vector<1x4x8xf32> to vector<4x8xf32>
    %cst_45 = arith.constant dense<0.000000e+00> : vector<4x2xf32>
    %45 = tpu.matmul %44, %38, %cst_45 {dimension_numbers = #tpu.dot_dimension_numbers<[1], [0], [0], [1], [0, 0, 1, 1], [], []>} : vector<4x8xf32>, vector<8x2xf32>, vector<4x2xf32> -> vector<4x2xf32>
    %46 = arith.addf %31, %45 : vector<4x2xf32>
    %c0_46 = arith.constant 0 : index
    %c0_47 = arith.constant 0 : index
    %47 = vector.load %arg2[%c0_46, %c0_47] : memref<8x64xbf16, #tpu.memory_space<vmem>>, vector<8x64xbf16>
    %c3 = arith.constant 3 : index
    %c0_48 = arith.constant 0 : index
    %c0_49 = arith.constant 0 : index
    %48 = vector.load %arg0[%c3, %c0_48, %c0_49] : memref<4x64x2xbf16, #tpu.memory_space<vmem>>, vector<1x64x2xbf16>
    %49 = vector.shape_cast %48 : vector<1x64x2xbf16> to vector<64x2xbf16>
    %cst_50 = arith.constant dense<0.000000e+00> : vector<8x2xf32>
    %50 = tpu.matmul %47, %49, %cst_50 {dimension_numbers = #tpu.dot_dimension_numbers<[1], [0], [0], [1], [0, 0, 1, 1], [], []>} : vector<8x64xbf16>, vector<64x2xbf16>, vector<8x2xf32> -> vector<8x2xf32>
    %c0_51 = arith.constant 0 : index
    %c0_52 = arith.constant 0 : index
    %51 = vector.load %arg3[%c0_51, %c0_52] : memref<8x1xf32, #tpu.memory_space<vmem>>, vector<8x1xf32>
    %52 = vector.broadcast %51 : vector<8x1xf32> to vector<8x2xf32>
    %53 = arith.addf %50, %52 : vector<8x2xf32>
    %c3_53 = arith.constant 3 : index
    %c0_54 = arith.constant 0 : index
    %c0_55 = arith.constant 0 : index
    %54 = vector.load %arg4[%c3_53, %c0_54, %c0_55] : memref<4x4x8xf32, #tpu.memory_space<vmem>>, vector<1x4x8xf32>
    %55 = vector.shape_cast %54 : vector<1x4x8xf32> to vector<4x8xf32>
    %cst_56 = arith.constant dense<0.000000e+00> : vector<4x2xf32>
    %56 = tpu.matmul %55, %53, %cst_56 {dimension_numbers = #tpu.dot_dimension_numbers<[1], [0], [0], [1], [0, 0, 1, 1], [], []>} : vector<4x8xf32>, vector<8x2xf32>, vector<4x2xf32> -> vector<4x2xf32>
    %57 = arith.addf %42, %56 : vector<4x2xf32>
    %c3_57 = arith.constant 3 : index
    %c0_58 = arith.constant 0 : index
    %c0_59 = arith.constant 0 : index
    %58 = vector.load %arg6[%c3_57, %c0_58, %c0_59] : memref<4x4x8xf32, #tpu.memory_space<vmem>>, vector<1x4x8xf32>
    %59 = vector.shape_cast %58 : vector<1x4x8xf32> to vector<4x8xf32>
    %cst_60 = arith.constant dense<0.000000e+00> : vector<4x2xf32>
    %60 = tpu.matmul %59, %53, %cst_60 {dimension_numbers = #tpu.dot_dimension_numbers<[1], [0], [0], [1], [0, 0, 1, 1], [], []>} : vector<4x8xf32>, vector<8x2xf32>, vector<4x2xf32> -> vector<4x2xf32>
    %61 = arith.addf %46, %60 : vector<4x2xf32>
    %c0_61 = arith.constant 0 : index
    %c0_62 = arith.constant 0 : index
    %62 = vector.load %arg5[%c0_61, %c0_62] : memref<4x1xf32, #tpu.memory_space<vmem>>, vector<4x1xf32>
    %63 = vector.broadcast %62 : vector<4x1xf32> to vector<4x2xf32>
    %64 = arith.addf %57, %63 : vector<4x2xf32>
    %c0_63 = arith.constant 0 : index
    %c0_64 = arith.constant 0 : index
    %65 = vector.load %arg7[%c0_63, %c0_64] : memref<4x1xf32, #tpu.memory_space<vmem>>, vector<4x1xf32>
    %66 = vector.broadcast %65 : vector<4x1xf32> to vector<4x2xf32>
    %67 = arith.addf %61, %66 : vector<4x2xf32>
    %cst_65 = arith.constant 5.000000e-01 : f32
    %68 = vector.broadcast %cst_65 : f32 to vector<4x2xf32>
    %69 = arith.mulf %68, %67 : vector<4x2xf32>
    %70 = math.exp %69 : vector<4x2xf32>
    %c0_66 = arith.constant 0 : index
    %c0_67 = arith.constant 0 : index
    %71 = vector.load %arg1[%c0_66, %c0_67] : memref<4x2xf32, #tpu.memory_space<vmem>>, vector<4x2xf32>
    %72 = arith.mulf %70, %71 : vector<4x2xf32>
    %73 = arith.addf %64, %72 : vector<4x2xf32>
    %c0_68 = arith.constant 0 : index
    %c0_69 = arith.constant 0 : index
    %74 = vector.load %arg8[%c0_68, %c0_69] : memref<32x4xf32, #tpu.memory_space<vmem>>, vector<32x4xf32>
    %cst_70 = arith.constant dense<0.000000e+00> : vector<32x2xf32>
    %75 = tpu.matmul %74, %73, %cst_70 {dimension_numbers = #tpu.dot_dimension_numbers<[1], [0], [0], [1], [0, 0, 1, 1], [], []>} : vector<32x4xf32>, vector<4x2xf32>, vector<32x2xf32> -> vector<32x2xf32>
    %c0_71 = arith.constant 0 : index
    %c0_72 = arith.constant 0 : index
    %76 = vector.load %arg9[%c0_71, %c0_72] : memref<32x1xf32, #tpu.memory_space<vmem>>, vector<32x1xf32>
    %77 = vector.broadcast %76 : vector<32x1xf32> to vector<32x2xf32>
    %78 = arith.addf %75, %77 : vector<32x2xf32>
    %c0_73 = arith.constant 0 : index
    %c0_74 = arith.constant 0 : index
    %c0_75 = arith.constant 0 : index
    %79 = vector.load %arg10[%c0_73, %c0_74, %c0_75] : memref<4x16x8xf32, #tpu.memory_space<vmem>>, vector<1x16x8xf32>
    %80 = vector.shape_cast %79 : vector<1x16x8xf32> to vector<16x8xf32>
    %81 = vector.extract_strided_slice %78 {offsets = [0, 0], sizes = [8, 2], strides = [1, 1]} : vector<32x2xf32> to vector<8x2xf32>
    %cst_76 = arith.constant dense<0.000000e+00> : vector<16x2xf32>
    %82 = tpu.matmul %80, %81, %cst_76 {dimension_numbers = #tpu.dot_dimension_numbers<[1], [0], [0], [1], [0, 0, 1, 1], [], []>} : vector<16x8xf32>, vector<8x2xf32>, vector<16x2xf32> -> vector<16x2xf32>
    %c0_77 = arith.constant 0 : index
    %c0_78 = arith.constant 0 : index
    %83 = vector.load %arg11[%c0_77, %c0_78] : memref<16x1xf32, #tpu.memory_space<vmem>>, vector<16x1xf32>
    %84 = vector.broadcast %83 : vector<16x1xf32> to vector<16x2xf32>
    %85 = arith.addf %82, %84 : vector<16x2xf32>
    %cst_79 = arith.constant 0.000000e+00 : f32
    %86 = vector.broadcast %cst_79 : f32 to vector<16x2xf32>
    %87 = arith.maximumf %85, %86 : vector<16x2xf32>
    %88 = arith.truncf %87 : vector<16x2xf32> to vector<16x2xbf16>
    %c0_80 = arith.constant 0 : index
    %c0_81 = arith.constant 0 : index
    %c0_82 = arith.constant 0 : index
    %89 = vector.load %arg14[%c0_80, %c0_81, %c0_82] : memref<4x16x2xbf16, #tpu.memory_space<vmem>>, vector<1x16x2xbf16>
    %90 = vector.shape_cast %89 : vector<1x16x2xbf16> to vector<16x2xbf16>
    %91 = vector.shape_cast %88 : vector<16x2xbf16> to vector<1x16x2xbf16>
    tpu.vector_store %arg14[%c0_80, %c0_81, %c0_82], %91 {strides = array<i32>} : memref<4x16x2xbf16, #tpu.memory_space<vmem>>, vector<1x16x2xbf16>,
    %c1_83 = arith.constant 1 : index
    %c0_84 = arith.constant 0 : index
    %c0_85 = arith.constant 0 : index
    %92 = vector.load %arg10[%c1_83, %c0_84, %c0_85] : memref<4x16x8xf32, #tpu.memory_space<vmem>>, vector<1x16x8xf32>
    %93 = vector.shape_cast %92 : vector<1x16x8xf32> to vector<16x8xf32>
    %94 = vector.extract_strided_slice %78 {offsets = [8, 0], sizes = [8, 2], strides = [1, 1]} : vector<32x2xf32> to vector<8x2xf32>
    %cst_86 = arith.constant dense<0.000000e+00> : vector<16x2xf32>
    %95 = tpu.matmul %93, %94, %cst_86 {dimension_numbers = #tpu.dot_dimension_numbers<[1], [0], [0], [1], [0, 0, 1, 1], [], []>} : vector<16x8xf32>, vector<8x2xf32>, vector<16x2xf32> -> vector<16x2xf32>
    %c0_87 = arith.constant 0 : index
    %c0_88 = arith.constant 0 : index
    %96 = vector.load %arg11[%c0_87, %c0_88] : memref<16x1xf32, #tpu.memory_space<vmem>>, vector<16x1xf32>
    %97 = vector.broadcast %96 : vector<16x1xf32> to vector<16x2xf32>
    %98 = arith.addf %95, %97 : vector<16x2xf32>
    %cst_89 = arith.constant 0.000000e+00 : f32
    %99 = vector.broadcast %cst_89 : f32 to vector<16x2xf32>
    %100 = arith.maximumf %98, %99 : vector<16x2xf32>
    %101 = arith.truncf %100 : vector<16x2xf32> to vector<16x2xbf16>
    %c1_90 = arith.constant 1 : index
    %c0_91 = arith.constant 0 : index
    %c0_92 = arith.constant 0 : index
    %102 = vector.load %arg14[%c1_90, %c0_91, %c0_92] : memref<4x16x2xbf16, #tpu.memory_space<vmem>>, vector<1x16x2xbf16>
    %103 = vector.shape_cast %102 : vector<1x16x2xbf16> to vector<16x2xbf16>
    %104 = vector.shape_cast %101 : vector<16x2xbf16> to vector<1x16x2xbf16>
    tpu.vector_store %arg14[%c1_90, %c0_91, %c0_92], %104 {strides = array<i32>} : memref<4x16x2xbf16, #tpu.memory_space<vmem>>, vector<1x16x2xbf16>,
    %c2_93 = arith.constant 2 : index
    %c0_94 = arith.constant 0 : index
    %c0_95 = arith.constant 0 : index
    %105 = vector.load %arg10[%c2_93, %c0_94, %c0_95] : memref<4x16x8xf32, #tpu.memory_space<vmem>>, vector<1x16x8xf32>
    %106 = vector.shape_cast %105 : vector<1x16x8xf32> to vector<16x8xf32>
    %107 = vector.extract_strided_slice %78 {offsets = [16, 0], sizes = [8, 2], strides = [1, 1]} : vector<32x2xf32> to vector<8x2xf32>
    %cst_96 = arith.constant dense<0.000000e+00> : vector<16x2xf32>
    %108 = tpu.matmul %106, %107, %cst_96 {dimension_numbers = #tpu.dot_dimension_numbers<[1], [0], [0], [1], [0, 0, 1, 1], [], []>} : vector<16x8xf32>, vector<8x2xf32>, vector<16x2xf32> -> vector<16x2xf32>
    %c0_97 = arith.constant 0 : index
    %c0_98 = arith.constant 0 : index
    %109 = vector.load %arg11[%c0_97, %c0_98] : memref<16x1xf32, #tpu.memory_space<vmem>>, vector<16x1xf32>
    %110 = vector.broadcast %109 : vector<16x1xf32> to vector<16x2xf32>
    %111 = arith.addf %108, %110 : vector<16x2xf32>
    %cst_99 = arith.constant 0.000000e+00 : f32
    %112 = vector.broadcast %cst_99 : f32 to vector<16x2xf32>
    %113 = arith.maximumf %111, %112 : vector<16x2xf32>
    %114 = arith.truncf %113 : vector<16x2xf32> to vector<16x2xbf16>
    %c2_100 = arith.constant 2 : index
    %c0_101 = arith.constant 0 : index
    %c0_102 = arith.constant 0 : index
    %115 = vector.load %arg14[%c2_100, %c0_101, %c0_102] : memref<4x16x2xbf16, #tpu.memory_space<vmem>>, vector<1x16x2xbf16>
    %116 = vector.shape_cast %115 : vector<1x16x2xbf16> to vector<16x2xbf16>
    %117 = vector.shape_cast %114 : vector<16x2xbf16> to vector<1x16x2xbf16>
    tpu.vector_store %arg14[%c2_100, %c0_101, %c0_102], %117 {strides = array<i32>} : memref<4x16x2xbf16, #tpu.memory_space<vmem>>, vector<1x16x2xbf16>,
    %c3_103 = arith.constant 3 : index
    %c0_104 = arith.constant 0 : index
    %c0_105 = arith.constant 0 : index
    %118 = vector.load %arg10[%c3_103, %c0_104, %c0_105] : memref<4x16x8xf32, #tpu.memory_space<vmem>>, vector<1x16x8xf32>
    %119 = vector.shape_cast %118 : vector<1x16x8xf32> to vector<16x8xf32>
    %120 = vector.extract_strided_slice %78 {offsets = [24, 0], sizes = [8, 2], strides = [1, 1]} : vector<32x2xf32> to vector<8x2xf32>
    %cst_106 = arith.constant dense<0.000000e+00> : vector<16x2xf32>
    %121 = tpu.matmul %119, %120, %cst_106 {dimension_numbers = #tpu.dot_dimension_numbers<[1], [0], [0], [1], [0, 0, 1, 1], [], []>} : vector<16x8xf32>, vector<8x2xf32>, vector<16x2xf32> -> vector<16x2xf32>
    %c0_107 = arith.constant 0 : index
    %c0_108 = arith.constant 0 : index
    %122 = vector.load %arg11[%c0_107, %c0_108] : memref<16x1xf32, #tpu.memory_space<vmem>>, vector<16x1xf32>
    %123 = vector.broadcast %122 : vector<16x1xf32> to vector<16x2xf32>
    %124 = arith.addf %121, %123 : vector<16x2xf32>
    %cst_109 = arith.constant 0.000000e+00 : f32
    %125 = vector.broadcast %cst_109 : f32 to vector<16x2xf32>
    %126 = arith.maximumf %124, %125 : vector<16x2xf32>
    %127 = arith.truncf %126 : vector<16x2xf32> to vector<16x2xbf16>
    %c3_110 = arith.constant 3 : index
    %c0_111 = arith.constant 0 : index
    %c0_112 = arith.constant 0 : index
    %128 = vector.load %arg14[%c3_110, %c0_111, %c0_112] : memref<4x16x2xbf16, #tpu.memory_space<vmem>>, vector<1x16x2xbf16>
    %129 = vector.shape_cast %128 : vector<1x16x2xbf16> to vector<16x2xbf16>
    %130 = vector.shape_cast %127 : vector<16x2xbf16> to vector<1x16x2xbf16>
    tpu.vector_store %arg14[%c3_110, %c0_111, %c0_112], %130 {strides = array<i32>} : memref<4x16x2xbf16, #tpu.memory_space<vmem>>, vector<1x16x2xbf16>,
    %c0_113 = arith.constant 0 : index
    %c0_114 = arith.constant 0 : index
    %131 = vector.load %arg12[%c0_113, %c0_114] : memref<4x2xf32, #tpu.memory_space<vmem>>, vector<4x2xf32>
    tpu.vector_store %arg12[%c0_113, %c0_114], %64 {strides = array<i32>} : memref<4x2xf32, #tpu.memory_space<vmem>>, vector<4x2xf32>,
    %c0_115 = arith.constant 0 : index
    %c0_116 = arith.constant 0 : index
    %132 = vector.load %arg13[%c0_115, %c0_116] : memref<4x2xf32, #tpu.memory_space<vmem>>, vector<4x2xf32>
    tpu.vector_store %arg13[%c0_115, %c0_116], %67 {strides = array<i32>} : memref<4x2xf32, #tpu.memory_space<vmem>>, vector<4x2xf32>,
    return
  }
}

module attributes {stable_mosaic.version = 11 : i64} {
  func.func @_conv_gemm_kernel(%arg0: i32, %arg1: memref<32x1024xbf16, #tpu.memory_space<vmem>>, %arg2: memref<32x1xf32, #tpu.memory_space<vmem>>, %arg3: memref<1024x128xbf16, #tpu.memory_space<vmem>>, %arg4: memref<32x128xbf16, #tpu.memory_space<vmem>>) attributes {dimension_semantics = [#tpu.dimension_semantics<parallel>], iteration_bounds = array<i64: 1>, scalar_prefetch = 0 : i64, scratch_operands = 0 : i64, tpu.core_type = #tpu.core_type<tc>, window_params = [{pipeline_mode = #tpu.pipeline_mode<synchronous>, transform_indices = @transform_0, window_bounds = array<i64: 32, 1024>}, {pipeline_mode = #tpu.pipeline_mode<synchronous>, transform_indices = @transform_1, window_bounds = array<i64: 32, 1>}, {transform_indices = @transform_2, window_bounds = array<i64: 1024, 128>}, {transform_indices = @transform_3, window_bounds = array<i64: 32, 128>}]} {
    %c0 = arith.constant 0 : index
    %c0_0 = arith.constant 0 : index
    %0 = vector.load %arg1[%c0, %c0_0] : memref<32x1024xbf16, #tpu.memory_space<vmem>>, vector<32x1024xbf16>
    %c0_1 = arith.constant 0 : index
    %c0_2 = arith.constant 0 : index
    %1 = vector.load %arg3[%c0_1, %c0_2] : memref<1024x128xbf16, #tpu.memory_space<vmem>>, vector<1024x128xbf16>
    %cst = arith.constant dense<0.000000e+00> : vector<32x128xf32>
    %2 = tpu.matmul %0, %1, %cst {dimension_numbers = #tpu.dot_dimension_numbers<[1], [0], [0], [1], [0, 0, 1, 1], [], []>} : vector<32x1024xbf16>, vector<1024x128xbf16>, vector<32x128xf32> -> vector<32x128xf32>
    %c0_3 = arith.constant 0 : index
    %c0_4 = arith.constant 0 : index
    %3 = vector.load %arg2[%c0_3, %c0_4] : memref<32x1xf32, #tpu.memory_space<vmem>>, vector<32x1xf32>
    %4 = vector.broadcast %3 : vector<32x1xf32> to vector<32x128xf32>
    %5 = arith.addf %2, %4 : vector<32x128xf32>
    %cst_5 = arith.constant 0.000000e+00 : f32
    %6 = vector.broadcast %cst_5 : f32 to vector<32x128xf32>
    %7 = arith.maximumf %5, %6 : vector<32x128xf32>
    %8 = arith.truncf %7 : vector<32x128xf32> to vector<32x128xbf16>
    %c0_6 = arith.constant 0 : index
    %c0_7 = arith.constant 0 : index
    %9 = vector.load %arg4[%c0_6, %c0_7] : memref<32x128xbf16, #tpu.memory_space<vmem>>, vector<32x128xbf16>
    tpu.vector_store %arg4[%c0_6, %c0_7], %8 {strides = array<i32>} : memref<32x128xbf16, #tpu.memory_space<vmem>>, vector<32x128xbf16>,
    return
  }
  func.func @transform_0(%arg0: i32) -> (i32, i32) {
    %c0_i32 = arith.constant 0 : i32
    %c0_i32_0 = arith.constant 0 : i32
    %c0_i32_1 = arith.constant 0 : i32
    return %c0_i32, %c0_i32_0 : i32, i32
  }
  func.func @transform_1(%arg0: i32) -> (i32, i32) {
    %c0_i32 = arith.constant 0 : i32
    %c0_i32_0 = arith.constant 0 : i32
    %c0_i32_1 = arith.constant 0 : i32
    return %c0_i32, %c0_i32_0 : i32, i32
  }
  func.func @transform_2(%arg0: i32) -> (i32, i32) {
    %c0_i32 = arith.constant 0 : i32
    %c0_i32_0 = arith.constant 0 : i32
    return %c0_i32, %arg0 : i32, i32
  }
  func.func @transform_3(%arg0: i32) -> (i32, i32) {
    %c0_i32 = arith.constant 0 : i32
    %c0_i32_0 = arith.constant 0 : i32
    return %c0_i32, %arg0 : i32, i32
  }
}

module attributes {stable_mosaic.version = 11 : i64} {
  func.func @_conv_gemm_kernel(%arg0: i32, %arg1: memref<16x288xbf16, #tpu.memory_space<vmem>>, %arg2: memref<16x1xf32, #tpu.memory_space<vmem>>, %arg3: memref<288x512xbf16, #tpu.memory_space<vmem>>, %arg4: memref<16x512xbf16, #tpu.memory_space<vmem>>) attributes {dimension_semantics = [#tpu.dimension_semantics<parallel>], iteration_bounds = array<i64: 1>, scalar_prefetch = 0 : i64, scratch_operands = 0 : i64, tpu.core_type = #tpu.core_type<tc>, window_params = [{pipeline_mode = #tpu.pipeline_mode<synchronous>, transform_indices = @transform_0, window_bounds = array<i64: 16, 288>}, {pipeline_mode = #tpu.pipeline_mode<synchronous>, transform_indices = @transform_1, window_bounds = array<i64: 16, 1>}, {transform_indices = @transform_2, window_bounds = array<i64: 288, 512>}, {transform_indices = @transform_3, window_bounds = array<i64: 16, 512>}]} {
    %c0 = arith.constant 0 : index
    %c0_0 = arith.constant 0 : index
    %0 = vector.load %arg1[%c0, %c0_0] : memref<16x288xbf16, #tpu.memory_space<vmem>>, vector<16x288xbf16>
    %c0_1 = arith.constant 0 : index
    %c0_2 = arith.constant 0 : index
    %1 = vector.load %arg3[%c0_1, %c0_2] : memref<288x512xbf16, #tpu.memory_space<vmem>>, vector<288x512xbf16>
    %cst = arith.constant dense<0.000000e+00> : vector<16x512xf32>
    %2 = tpu.matmul %0, %1, %cst {dimension_numbers = #tpu.dot_dimension_numbers<[1], [0], [0], [1], [0, 0, 1, 1], [], []>} : vector<16x288xbf16>, vector<288x512xbf16>, vector<16x512xf32> -> vector<16x512xf32>
    %c0_3 = arith.constant 0 : index
    %c0_4 = arith.constant 0 : index
    %3 = vector.load %arg2[%c0_3, %c0_4] : memref<16x1xf32, #tpu.memory_space<vmem>>, vector<16x1xf32>
    %4 = vector.broadcast %3 : vector<16x1xf32> to vector<16x512xf32>
    %5 = arith.addf %2, %4 : vector<16x512xf32>
    %cst_5 = arith.constant 0.000000e+00 : f32
    %6 = vector.broadcast %cst_5 : f32 to vector<16x512xf32>
    %7 = arith.maximumf %5, %6 : vector<16x512xf32>
    %8 = arith.truncf %7 : vector<16x512xf32> to vector<16x512xbf16>
    %c0_6 = arith.constant 0 : index
    %c0_7 = arith.constant 0 : index
    %9 = vector.load %arg4[%c0_6, %c0_7] : memref<16x512xbf16, #tpu.memory_space<vmem>>, vector<16x512xbf16>
    tpu.vector_store %arg4[%c0_6, %c0_7], %8 {strides = array<i32>} : memref<16x512xbf16, #tpu.memory_space<vmem>>, vector<16x512xbf16>,
    return
  }
  func.func @transform_0(%arg0: i32) -> (i32, i32) {
    %c0_i32 = arith.constant 0 : i32
    %c0_i32_0 = arith.constant 0 : i32
    %c0_i32_1 = arith.constant 0 : i32
    return %c0_i32, %c0_i32_0 : i32, i32
  }
  func.func @transform_1(%arg0: i32) -> (i32, i32) {
    %c0_i32 = arith.constant 0 : i32
    %c0_i32_0 = arith.constant 0 : i32
    %c0_i32_1 = arith.constant 0 : i32
    return %c0_i32, %c0_i32_0 : i32, i32
  }
  func.func @transform_2(%arg0: i32) -> (i32, i32) {
    %c0_i32 = arith.constant 0 : i32
    %c0_i32_0 = arith.constant 0 : i32
    return %c0_i32, %arg0 : i32, i32
  }
  func.func @transform_3(%arg0: i32) -> (i32, i32) {
    %c0_i32 = arith.constant 0 : i32
    %c0_i32_0 = arith.constant 0 : i32
    return %c0_i32, %arg0 : i32, i32
  }
}

module attributes {stable_mosaic.version = 11 : i64} {
  func.func @_conv_gemm_kernel(%arg0: i32, %arg1: memref<1x144xbf16, #tpu.memory_space<vmem>>, %arg2: memref<1x1xf32, #tpu.memory_space<vmem>>, %arg3: memref<144x1024xbf16, #tpu.memory_space<vmem>>, %arg4: memref<1x1024xf32, #tpu.memory_space<vmem>>) attributes {dimension_semantics = [#tpu.dimension_semantics<parallel>], iteration_bounds = array<i64: 2>, scalar_prefetch = 0 : i64, scratch_operands = 0 : i64, tpu.core_type = #tpu.core_type<tc>, window_params = [{pipeline_mode = #tpu.pipeline_mode<synchronous>, transform_indices = @transform_0, window_bounds = array<i64: 1, 144>}, {pipeline_mode = #tpu.pipeline_mode<synchronous>, transform_indices = @transform_1, window_bounds = array<i64: 1, 1>}, {transform_indices = @transform_2, window_bounds = array<i64: 144, 1024>}, {transform_indices = @transform_3, window_bounds = array<i64: 1, 1024>}]} {
    %c0 = arith.constant 0 : index
    %c0_0 = arith.constant 0 : index
    %0 = vector.load %arg1[%c0, %c0_0] : memref<1x144xbf16, #tpu.memory_space<vmem>>, vector<1x144xbf16>
    %c0_1 = arith.constant 0 : index
    %c0_2 = arith.constant 0 : index
    %1 = vector.load %arg3[%c0_1, %c0_2] : memref<144x1024xbf16, #tpu.memory_space<vmem>>, vector<144x1024xbf16>
    %cst = arith.constant dense<0.000000e+00> : vector<1x1024xf32>
    %2 = tpu.matmul %0, %1, %cst {dimension_numbers = #tpu.dot_dimension_numbers<[1], [0], [0], [1], [0, 0, 1, 1], [], []>} : vector<1x144xbf16>, vector<144x1024xbf16>, vector<1x1024xf32> -> vector<1x1024xf32>
    %c0_3 = arith.constant 0 : index
    %c0_4 = arith.constant 0 : index
    %3 = vector.load %arg2[%c0_3, %c0_4] : memref<1x1xf32, #tpu.memory_space<vmem>>, vector<1x1xf32>
    %4 = vector.broadcast %3 : vector<1x1xf32> to vector<1x1024xf32>
    %5 = arith.addf %2, %4 : vector<1x1024xf32>
    %6 = arith.negf %5 : vector<1x1024xf32>
    %7 = math.exp %6 : vector<1x1024xf32>
    %cst_5 = arith.constant 1.000000e+00 : f32
    %8 = vector.broadcast %cst_5 : f32 to vector<1x1024xf32>
    %9 = arith.addf %8, %7 : vector<1x1024xf32>
    %10 = arith.divf %8, %9 : vector<1x1024xf32>
    %c0_6 = arith.constant 0 : index
    %c0_7 = arith.constant 0 : index
    %11 = vector.load %arg4[%c0_6, %c0_7] : memref<1x1024xf32, #tpu.memory_space<vmem>>, vector<1x1024xf32>
    tpu.vector_store %arg4[%c0_6, %c0_7], %10 {strides = array<i32>} : memref<1x1024xf32, #tpu.memory_space<vmem>>, vector<1x1024xf32>,
    return
  }
  func.func @transform_0(%arg0: i32) -> (i32, i32) {
    %c0_i32 = arith.constant 0 : i32
    %c0_i32_0 = arith.constant 0 : i32
    %c0_i32_1 = arith.constant 0 : i32
    return %c0_i32, %c0_i32_0 : i32, i32
  }
  func.func @transform_1(%arg0: i32) -> (i32, i32) {
    %c0_i32 = arith.constant 0 : i32
    %c0_i32_0 = arith.constant 0 : i32
    %c0_i32_1 = arith.constant 0 : i32
    return %c0_i32, %c0_i32_0 : i32, i32
  }
  func.func @transform_2(%arg0: i32) -> (i32, i32) {
    %c0_i32 = arith.constant 0 : i32
    %c0_i32_0 = arith.constant 0 : i32
    return %c0_i32, %arg0 : i32, i32
  }
  func.func @transform_3(%arg0: i32) -> (i32, i32) {
    %c0_i32 = arith.constant 0 : i32
    %c0_i32_0 = arith.constant 0 : i32
    return %c0_i32, %arg0 : i32, i32
  }
}

</mosaic_0001>

<llo_original>
// kernel: forward.7
$region0: #{forward.7}
  #allocation0 [shape = 'u32[]', space=smem, size = 0x4, offset = 0x4, fixed_abs, tag = 'smem constant byte address 0x4 - core index']
  #allocation1 [shape = 'u32[144,128]{1,0:T(1,128)}', space=vmem, size = 0x12000, scoped, tag = 'internal scratch']
  %s0 = inlined_call_operand.hbm [shape: bf16[16,9], index: 0, kind: input, shape index: {}]
  %s1 = inlined_call_operand.vmem [shape: f32[16,1], index: 1, kind: input, shape index: {}]
  %s2 = inlined_call_operand.vmem [shape: bf16[9,800], index: 2, kind: input, shape index: {}]
  %s3 = inlined_call_operand.vmem [shape: bf16[16,800], index: 3, kind: output, shape index: {}]
  %s4 = sld [smem:[#allocation0]]
  $region26: #{forward.7} parent=0
    _
  %s6 = ssub.s32 1, %s4
  %s7 = scalar_select 0, %s6, %s4
  $region1: #{forward.7} parent=0
    #allocation2 [shape = 'u8[4096]{0}', space=vmem, size = 0x1000, scoped, tag = 'input window, operand 0, single buffered']
    #allocation3 [shape = 's32[1]{0}', space=sflag, size = 0x4, scoped, tag = 'scoped memory for forward.7']
    %8 = vsyncpa [#allocation3], 0
    // Predicated region
    $region2: #{forward.7} parent=1 // pred_check
      _
    $region3: #{forward.7} parent=1 // pred_check_branch
      %10 = sbr.rel (0) target = $region5
    $region4: #{forward.7} parent=1 // pred_region
      %s12 = ssub.s32 128, 128
      %13 = vsyncadd [#allocation3], %s12
      %s14 = sshll.u32 [#allocation2], 4
      %s15 = int_to_ptr.vmem [resolvable:$true] %s14
      %20 = dma.hbm_to_vmem [thread:$0]  %s0, 128, %s15, [#allocation3], 64, 64, 4
    $region5: #{forward.7} parent=1 // pred_fallthru
      _
    // Predicated region
    $region6: #{forward.7} parent=1 // pred_check
      _
    $region7: #{forward.7} parent=1 // pred_check_branch
      %22 = sbr.rel (0) target = $region9
    $region8: #{forward.7} parent=1 // pred_region
      _
    $region9: #{forward.7} parent=1 // pred_fallthru
      _
    // Predicated region
    $region10: #{forward.7} parent=1 // pred_check
      _
    $region11: #{forward.7} parent=1 // pred_check_branch
      %24 = sbr.rel (0) target = $region13
    $region12: #{forward.7} parent=1 // pred_region
      _
    $region13: #{forward.7} parent=1 // pred_fallthru
      _
    // Predicated region
    $region14: #{forward.7} parent=1 // pred_check
      _
    $region15: #{forward.7} parent=1 // pred_check_branch
      %26 = sbr.rel (0) target = $region17
    $region16: #{forward.7} parent=1 // pred_region
      %27 = dma.done [#allocation3], 128
    $region17: #{forward.7} parent=1 // pred_fallthru
      _
    %v29 = vld [vmem:[#allocation2] sm:$0xf]
    %v30 = vld [vmem:[#allocation2 + $0x4] sm:$0xf]
    %v31 = vld [vmem:[%s2] sm:$0xff]
    %v32 = vld [vmem:[%s2 + $0x8] sm:$0xff]
    %v33 = vld [vmem:[%s2 + $0x10] sm:$0xff]
    %v34 = vld [vmem:[%s2 + $0x18] sm:$0xf]
    %v35 = vld [vmem:[%s2 + $0x1c] sm:$0x11]
    %v36 = vld [vmem:[%s2 + $0x24] sm:$0x11]
    %v37 = vld [vmem:[%s2 + $0x2c] sm:$0x11]
    %v38 = vld [vmem:[%s2 + $0x34] sm:$0x1]
    %v39 = vld [vmem:[%s1] sm:$0xff]
    %v40 = vld [vmem:[%s1 + $0x8] sm:$0xff]
    %42 = vset.pattern.permute.xlu0 0
    %43 = vperm.xlu0 %42, %v39
    %v44 = vpop.permute.xlu0 %43
    %47 = vset.pattern.permute.xlu0 0
    %48 = vperm.xlu0 %47, %v40
    %v49 = vpop.permute.xlu0 %48
    %v53 = vunpack.c.l.b16 %v29
    %v54 = vunpack.c.l.b16 %v30
    %v55 = vpack.c.b16 %v54, %v53
    %v64 = vunpack.c.l.b16 %v31
    %v65 = vunpack.c.h.b16 %v31
    %v66 = vunpack.c.l.b16 %v32
    %v67 = vunpack.c.h.b16 %v32
    %v68 = vunpack.c.l.b16 %v33
    %v69 = vunpack.c.h.b16 %v33
    %v70 = vunpack.c.l.b16 %v34
    %v71 = vunpack.c.l.b16 %v35
    %v72 = vunpack.c.h.b16 %v35
    %v73 = vunpack.c.l.b16 %v36
    %v74 = vunpack.c.h.b16 %v36
    %v75 = vunpack.c.l.b16 %v37
    %v76 = vunpack.c.h.b16 %v37
    %v77 = vunpack.c.l.b16 %v38
    %v78 = vpack.c.b16 %v71, %v64
    %v79 = vpack.c.b16 %v72, %v65
    %v80 = vpack.c.b16 %v73, %v66
    %v81 = vpack.c.b16 %v74, %v67
    %v82 = vpack.c.b16 %v75, %v68
    %v83 = vpack.c.b16 %v76, %v69
    %v84 = vpack.c.b16 %v77, %v70
    %vm85 = vcmask 72704
    %v87 = vsel %vm85, %v55, 0
    %vm89 = vcmask 1043456
    %vm90 = vcmask 1044480
    %v91 = vsel %vm89, 4294967295, 65535
    %v92 = vsel %vm90, %v91, 0
    %v94 = vand.u32 %v78, %v92
    %v97 = vand.u32 %v79, %v92
    %v100 = vand.u32 %v80, %v92
    %v103 = vand.u32 %v81, %v92
    %v106 = vand.u32 %v82, %v92
    %v109 = vand.u32 %v83, %v92
    %v112 = vand.u32 %v84, %v92
    %114 = vmatprep.subr.bf16.mxu0 %v97
    %115 = vmatpush1.bf16.msra.mxu0 %v94
    %116 = vmatprep.subr.bf16.mxu0 0
    %117 = vmatpush1.bf16.msra.mxu0 0
    %118 = vmatprep.subr.bf16.mxu0 0
    %119 = vmatpush1.bf16.msra.mxu0 0
    %120 = vmatprep.subr.bf16.mxu0 0
    %121 = vmatpush1.bf16.msra.mxu0 0
    %122 = vmatprep.subr.bf16.mxu0 0
    %123 = vmatpush1.bf16.msra.mxu0 0
    %124 = vmatprep.subr.bf16.mxu0 0
    %125 = vmatpush1.bf16.msra.mxu0 0
    %126 = vmatprep.subr.bf16.mxu0 0
    %127 = vmatpush1.bf16.msra.mxu0 0
    %128 = vmatprep.subr.bf16.mxu0 0
    %129 = vmatpush1.bf16.msra.mxu0 0
    %130 = vmatprep.subr.bf16.mxu0 0
    %131 = vmatpush1.bf16.msra.mxu0 0
    %132 = vmatprep.subr.bf16.mxu0 0
    %133 = vmatpush1.bf16.msra.mxu0 0
    %134 = vmatprep.subr.bf16.mxu0 0
    %135 = vmatpush1.bf16.msra.mxu0 0
    %136 = vmatprep.subr.bf16.mxu0 0
    %137 = vmatpush1.bf16.msra.mxu0 0
    %138 = vmatprep.subr.bf16.mxu0 0
    %139 = vmatpush1.bf16.msra.mxu0 0
    %140 = vmatprep.subr.bf16.mxu0 0
    %141 = vmatpush1.bf16.msra.mxu0 0
    %142 = vmatprep.subr.bf16.mxu0 0
    %143 = vmatpush1.bf16.msra.mxu0 0
    %144 = vmatprep.subr.bf16.mxu0 0
    %145 = vmatpush1.bf16.msra.mxu0 0
    %146 = vmatprep.mubr.bf16.mxu0 0
    %147 = vmatmul.mubr.bf16.gmra.mrb[0].mxu0 %v87
    %v148 = vpop.f32.mrb[0].mxu0
    %v149 = vadd.f32 %v44, %v148
    %v150 = vpop.f32.mrb[0].mxu0
    %v151 = vadd.f32 %v44, %v150
    %v152 = vpop.f32.mrb[0].mxu0
    %v153 = vadd.f32 %v49, %v152
    %v154 = vpop.f32.mrb[0].mxu0
    %v155 = vadd.f32 %v49, %v154
    %156 = vdwg.mxu0
    %157 = vmatprep.subr.bf16.mxu0 %v103
    %158 = vmatpush1.bf16.msra.mxu0 %v100
    %159 = vmatprep.subr.bf16.mxu0 0
    %160 = vmatpush1.bf16.msra.mxu0 0
    %161 = vmatprep.subr.bf16.mxu0 0
    %162 = vmatpush1.bf16.msra.mxu0 0
    %163 = vmatprep.subr.bf16.mxu0 0
    %164 = vmatpush1.bf16.msra.mxu0 0
    %165 = vmatprep.subr.bf16.mxu0 0
    %166 = vmatpush1.bf16.msra.mxu0 0
    %167 = vmatprep.subr.bf16.mxu0 0
    %168 = vmatpush1.bf16.msra.mxu0 0
    %169 = vmatprep.subr.bf16.mxu0 0
    %170 = vmatpush1.bf16.msra.mxu0 0
    %171 = vmatprep.subr.bf16.mxu0 0
    %172 = vmatpush1.bf16.msra.mxu0 0
    %173 = vmatprep.subr.bf16.mxu0 0
    %174 = vmatpush1.bf16.msra.mxu0 0
    %175 = vmatprep.subr.bf16.mxu0 0
    %176 = vmatpush1.bf16.msra.mxu0 0
    %177 = vmatprep.subr.bf16.mxu0 0
    %178 = vmatpush1.bf16.msra.mxu0 0
    %179 = vmatprep.subr.bf16.mxu0 0
    %180 = vmatpush1.bf16.msra.mxu0 0
    %181 = vmatprep.subr.bf16.mxu0 0
    %182 = vmatpush1.bf16.msra.mxu0 0
    %183 = vmatprep.subr.bf16.mxu0 0
    %184 = vmatpush1.bf16.msra.mxu0 0
    %185 = vmatprep.subr.bf16.mxu0 0
    %186 = vmatpush1.bf16.msra.mxu0 0
    %187 = vmatprep.subr.bf16.mxu0 0
    %188 = vmatpush1.bf16.msra.mxu0 0
    %189 = vmatprep.mubr.bf16.mxu0 0
    %190 = vmatmul.mubr.bf16.gmra.mrb[0].mxu0 %v87
    %v191 = vpop.f32.mrb[0].mxu0
    %v192 = vadd.f32 %v44, %v191
    %v193 = vpop.f32.mrb[0].mxu0
    %v194 = vadd.f32 %v44, %v193
    %v195 = vpop.f32.mrb[0].mxu0
    %v196 = vadd.f32 %v49, %v195
    %v197 = vpop.f32.mrb[0].mxu0
    %v198 = vadd.f32 %v49, %v197
    %199 = vdwg.mxu0
    %200 = vmatprep.subr.bf16.mxu0 %v109
    %201 = vmatpush1.bf16.msra.mxu0 %v106
    %202 = vmatprep.subr.bf16.mxu0 0
    %203 = vmatpush1.bf16.msra.mxu0 0
    %204 = vmatprep.subr.bf16.mxu0 0
    %205 = vmatpush1.bf16.msra.mxu0 0
    %206 = vmatprep.subr.bf16.mxu0 0
    %207 = vmatpush1.bf16.msra.mxu0 0
    %208 = vmatprep.subr.bf16.mxu0 0
    %209 = vmatpush1.bf16.msra.mxu0 0
    %210 = vmatprep.subr.bf16.mxu0 0
    %211 = vmatpush1.bf16.msra.mxu0 0
    %212 = vmatprep.subr.bf16.mxu0 0
    %213 = vmatpush1.bf16.msra.mxu0 0
    %214 = vmatprep.subr.bf16.mxu0 0
    %215 = vmatpush1.bf16.msra.mxu0 0
    %216 = vmatprep.subr.bf16.mxu0 0
    %217 = vmatpush1.bf16.msra.mxu0 0
    %218 = vmatprep.subr.bf16.mxu0 0
    %219 = vmatpush1.bf16.msra.mxu0 0
    %220 = vmatprep.subr.bf16.mxu0 0
    %221 = vmatpush1.bf16.msra.mxu0 0
    %222 = vmatprep.subr.bf16.mxu0 0
    %223 = vmatpush1.bf16.msra.mxu0 0
    %224 = vmatprep.subr.bf16.mxu0 0
    %225 = vmatpush1.bf16.msra.mxu0 0
    %226 = vmatprep.subr.bf16.mxu0 0
    %227 = vmatpush1.bf16.msra.mxu0 0
    %228 = vmatprep.subr.bf16.mxu0 0
    %229 = vmatpush1.bf16.msra.mxu0 0
    %230 = vmatprep.subr.bf16.mxu0 0
    %231 = vmatpush1.bf16.msra.mxu0 0
    %232 = vmatprep.mubr.bf16.mxu0 0
    %233 = vmatmul.mubr.bf16.gmra.mrb[0].mxu0 %v87
    %v234 = vpop.f32.mrb[0].mxu0
    %v235 = vadd.f32 %v44, %v234
    %v236 = vpop.f32.mrb[0].mxu0
    %v237 = vadd.f32 %v44, %v236
    %v238 = vpop.f32.mrb[0].mxu0
    %v239 = vadd.f32 %v49, %v238
    %v240 = vpop.f32.mrb[0].mxu0
    %v241 = vadd.f32 %v49, %v240
    %242 = vdwg.mxu0
    %243 = vmatprep.subr.bf16.mxu0 0
    %244 = vmatpush1.bf16.msra.mxu0 %v112
    %245 = vmatprep.subr.bf16.mxu0 0
    %246 = vmatpush1.bf16.msra.mxu0 0
    %247 = vmatprep.subr.bf16.mxu0 0
    %248 = vmatpush1.bf16.msra.mxu0 0
    %249 = vmatprep.subr.bf16.mxu0 0
    %250 = vmatpush1.bf16.msra.mxu0 0
    %251 = vmatprep.subr.bf16.mxu0 0
    %252 = vmatpush1.bf16.msra.mxu0 0
    %253 = vmatprep.subr.bf16.mxu0 0
    %254 = vmatpush1.bf16.msra.mxu0 0
    %255 = vmatprep.subr.bf16.mxu0 0
    %256 = vmatpush1.bf16.msra.mxu0 0
    %257 = vmatprep.subr.bf16.mxu0 0
    %258 = vmatpush1.bf16.msra.mxu0 0
    %259 = vmatprep.subr.bf16.mxu0 0
    %260 = vmatpush1.bf16.msra.mxu0 0
    %261 = vmatprep.subr.bf16.mxu0 0
    %262 = vmatpush1.bf16.msra.mxu0 0
    %263 = vmatprep.subr.bf16.mxu0 0
    %264 = vmatpush1.bf16.msra.mxu0 0
    %265 = vmatprep.subr.bf16.mxu0 0
    %266 = vmatpush1.bf16.msra.mxu0 0
    %267 = vmatprep.subr.bf16.mxu0 0
    %268 = vmatpush1.bf16.msra.mxu0 0
    %269 = vmatprep.subr.bf16.mxu0 0
    %270 = vmatpush1.bf16.msra.mxu0 0
    %271 = vmatprep.subr.bf16.mxu0 0
    %272 = vmatpush1.bf16.msra.mxu0 0
    %273 = vmatprep.subr.bf16.mxu0 0
    %274 = vmatpush1.bf16.msra.mxu0 0
    %275 = vmatprep.mubr.bf16.mxu0 0
    %276 = vmatmul.mubr.bf16.gmra.mrb[0].mxu0 %v87
    %v277 = vpop.f32.mrb[0].mxu0
    %v278 = vadd.f32 %v44, %v277
    %v279 = vpop.f32.mrb[0].mxu0
    %v280 = vpop.f32.mrb[0].mxu0
    %v281 = vadd.f32 %v49, %v280
    %v282 = vpop.f32.mrb[0].mxu0
    %283 = vdwg.mxu0
    %v284 = vmax.f32 %v149, 0.0
    %v285 = vmax.f32 %v151, 0.0
    %v286 = vmax.f32 %v192, 0.0
    %v287 = vmax.f32 %v194, 0.0
    %v288 = vmax.f32 %v235, 0.0
    %v289 = vmax.f32 %v237, 0.0
    %v290 = vmax.f32 %v278, 0.0
    %v291 = vmax.f32 %v153, 0.0
    %v292 = vmax.f32 %v155, 0.0
    %v293 = vmax.f32 %v196, 0.0
    %v294 = vmax.f32 %v198, 0.0
    %v295 = vmax.f32 %v239, 0.0
    %v296 = vmax.f32 %v241, 0.0
    %v297 = vmax.f32 %v281, 0.0
    %v298 = vpack.c.bf16 %v291, %v284
    %v299 = vpack.c.bf16 %v292, %v285
    %v300 = vpack.c.bf16 %v293, %v286
    %v301 = vpack.c.bf16 %v294, %v287
    %v302 = vpack.c.bf16 %v295, %v288
    %v303 = vpack.c.bf16 %v296, %v289
    %v304 = vpack.c.bf16 %v297, %v290
    %v312 = vunpack.c.l.b16 %v298
    %v313 = vunpack.c.l.b16 %v299
    %v314 = vunpack.c.l.b16 %v300
    %v315 = vunpack.c.l.b16 %v301
    %v316 = vunpack.c.l.b16 %v302
    %v317 = vunpack.c.l.b16 %v303
    %v318 = vunpack.c.l.b16 %v304
    %v319 = vunpack.c.h.b16 %v298
    %v320 = vunpack.c.h.b16 %v299
    %v321 = vunpack.c.h.b16 %v300
    %v322 = vunpack.c.h.b16 %v301
    %v323 = vunpack.c.h.b16 %v302
    %v324 = vunpack.c.h.b16 %v303
    %v325 = vunpack.c.h.b16 %v304
    %v326 = vpack.c.b16 %v313, %v312
    %v327 = vpack.c.b16 %v315, %v314
    %v328 = vpack.c.b16 %v317, %v316
    %v329 = vpack.c.b16 %v318, %v318
    %v330 = vpack.c.b16 %v320, %v319
    %v331 = vpack.c.b16 %v322, %v321
    %v332 = vpack.c.b16 %v324, %v323
    %v333 = vpack.c.b16 %v325, %v325
    %342 = vst [vmem:[%s3] sm:$0xff] %v326
    %343 = vst [vmem:[%s3 + $0x8] sm:$0xff] %v327
    %344 = vst [vmem:[%s3 + $0x10] sm:$0xff] %v328
    %vm345 = vcmask 257024
    %346 = vst.msk [vmem:[%s3 + $0x18] sm:$0xf] %vm345, %v329
    %347 = vst [vmem:[%s3 + $0x1c] sm:$0xff] %v330
    %348 = vst [vmem:[%s3 + $0x24] sm:$0xff] %v331
    %349 = vst [vmem:[%s3 + $0x2c] sm:$0xff] %v332
    %350 = vst.msk [vmem:[%s3 + $0x34] sm:$0xf] %vm345, %v333
    // Predicated region
    $region18: #{forward.7} parent=1 // pred_check
      _
    $region19: #{forward.7} parent=1 // pred_check_branch
      %352 = sbr.rel (0) target = $region21
    $region20: #{forward.7} parent=1 // pred_region
      _
    $region21: #{forward.7} parent=1 // pred_fallthru
      _
    // Predicated region
    $region22: #{forward.7} parent=1 // pred_check
      _
    $region23: #{forward.7} parent=1 // pred_check_branch
      %354 = sbr.rel (0) target = $region25
    $region24: #{forward.7} parent=1 // pred_region
      _
    $region25: #{forward.7} parent=1 // pred_fallthru
      _
    %355 = vsyncpa [#allocation3], 1

// kernel: forward.8
$region0: #{forward.8}
  #allocation0 [shape = 'u32[]', space=smem, size = 0x4, offset = 0x4, fixed_abs, tag = 'smem constant byte address 0x4 - core index']
  #allocation1 [shape = 'u32[144,128]{1,0:T(1,128)}', space=vmem, size = 0x12000, scoped, tag = 'internal scratch']
  %s0 = inlined_call_operand.vmem [shape: bf16[32,144], index: 0, kind: input, shape index: {}]
  %s1 = inlined_call_operand.vmem [shape: f32[32,1], index: 1, kind: input, shape index: {}]
  %s2 = inlined_call_operand.vmem [shape: bf16[144,200], index: 2, kind: input, shape index: {}]
  %s3 = inlined_call_operand.vmem [shape: bf16[32,200], index: 3, kind: output, shape index: {}]
  %s4 = sld [smem:[#allocation0]]
  $region22: #{forward.8} parent=0
    _
  %s6 = ssub.s32 1, %s4
  %s7 = scalar_select 0, %s6, %s4
  // Predicated region
  $region2: #{forward.8} parent=0 // pred_check
    _
  $region3: #{forward.8} parent=0 // pred_check_branch
    %9 = sbr.rel (0) target = $region5
  $region4: #{forward.8} parent=0 // pred_region
    _
  $region5: #{forward.8} parent=0 // pred_fallthru
    _
  // Predicated region
  $region6: #{forward.8} parent=0 // pred_check
    _
  $region7: #{forward.8} parent=0 // pred_check_branch
    %11 = sbr.rel (0) target = $region9
  $region8: #{forward.8} parent=0 // pred_region
    _
  $region9: #{forward.8} parent=0 // pred_fallthru
    _
  // Predicated region
  $region10: #{forward.8} parent=0 // pred_check
    _
  $region11: #{forward.8} parent=0 // pred_check_branch
    %13 = sbr.rel (0) target = $region13
  $region12: #{forward.8} parent=0 // pred_region
    _
  $region13: #{forward.8} parent=0 // pred_fallthru
    _
  %v15 = vld [vmem:[%s0] sm:$0xff]
  %v16 = vld [vmem:[%s0 + $0x8] sm:$0xff]
  %v17 = vld [vmem:[%s0 + $0x10] sm:$0xff]
  %v18 = vld [vmem:[%s0 + $0x18] sm:$0xff]
  %v19 = vld [vmem:[%s2] sm:$0xff]
  %v20 = vld [vmem:[%s2 + $0x8] sm:$0xff]
  %v21 = vld [vmem:[%s2 + $0x10] sm:$0xff]
  %v22 = vld [vmem:[%s2 + $0x18] sm:$0xff]
  %v23 = vld [vmem:[%s2 + $0x20] sm:$0xff]
  %v24 = vld [vmem:[%s2 + $0x28] sm:$0xff]
  %v25 = vld [vmem:[%s2 + $0x30] sm:$0xff]
  %v26 = vld [vmem:[%s2 + $0x38] sm:$0xff]
  %v27 = vld [vmem:[%s2 + $0x40] sm:$0xff]
  %v28 = vld [vmem:[%s2 + $0x48] sm:$0xff]
  %v29 = vld [vmem:[%s2 + $0x50] sm:$0xff]
  %v30 = vld [vmem:[%s2 + $0x58] sm:$0xff]
  %v31 = vld [vmem:[%s2 + $0x60] sm:$0xff]
  %v32 = vld [vmem:[%s2 + $0x68] sm:$0xff]
  %v33 = vld [vmem:[%s2 + $0x70] sm:$0xff]
  %v34 = vld [vmem:[%s2 + $0x78] sm:$0xff]
  %v35 = vld [vmem:[%s2 + $0x80] sm:$0xff]
  %v36 = vld [vmem:[%s2 + $0x88] sm:$0xff]
  %v37 = vld [vmem:[%s1] sm:$0xff]
  %v38 = vld [vmem:[%s1 + $0x8] sm:$0xff]
  %v39 = vld [vmem:[%s1 + $0x10] sm:$0xff]
  %v40 = vld [vmem:[%s1 + $0x18] sm:$0xff]
  %42 = vset.pattern.permute.xlu0 0
  %43 = vperm.xlu0 %42, %v37
  %v44 = vpop.permute.xlu0 %43
  %47 = vset.pattern.permute.xlu0 0
  %48 = vperm.xlu0 %47, %v38
  %v49 = vpop.permute.xlu0 %48
  %52 = vset.pattern.permute.xlu0 0
  %53 = vperm.xlu0 %52, %v39
  %v54 = vpop.permute.xlu0 %53
  %57 = vset.pattern.permute.xlu0 0
  %58 = vperm.xlu0 %57, %v40
  %v59 = vpop.permute.xlu0 %58
  %v65 = vunpack.c.l.b16 %v15
  %v66 = vunpack.c.h.b16 %v15
  %v67 = vunpack.c.l.b16 %v16
  %v68 = vunpack.c.h.b16 %v16
  %v69 = vunpack.c.l.b16 %v17
  %v70 = vunpack.c.h.b16 %v17
  %v71 = vunpack.c.l.b16 %v18
  %v72 = vunpack.c.h.b16 %v18
  %v73 = vpack.c.b16 %v67, %v65
  %v74 = vpack.c.b16 %v68, %v66
  %v75 = vpack.c.b16 %v71, %v69
  %v76 = vpack.c.b16 %v72, %v70
  %v97 = vunpack.c.l.b16 %v19
  %v98 = vunpack.c.h.b16 %v19
  %v99 = vunpack.c.l.b16 %v20
  %v100 = vunpack.c.h.b16 %v20
  %v101 = vunpack.c.l.b16 %v21
  %v102 = vunpack.c.h.b16 %v21
  %v103 = vunpack.c.l.b16 %v22
  %v104 = vunpack.c.h.b16 %v22
  %v105 = vunpack.c.l.b16 %v23
  %v106 = vunpack.c.h.b16 %v23
  %v107 = vunpack.c.l.b16 %v24
  %v108 = vunpack.c.h.b16 %v24
  %v109 = vunpack.c.l.b16 %v25
  %v110 = vunpack.c.h.b16 %v25
  %v111 = vunpack.c.l.b16 %v26
  %v112 = vunpack.c.h.b16 %v26
  %v113 = vunpack.c.l.b16 %v27
  %v114 = vunpack.c.h.b16 %v27
  %v115 = vunpack.c.l.b16 %v28
  %v116 = vunpack.c.h.b16 %v28
  %v117 = vunpack.c.l.b16 %v29
  %v118 = vunpack.c.h.b16 %v29
  %v119 = vunpack.c.l.b16 %v30
  %v120 = vunpack.c.h.b16 %v30
  %v121 = vunpack.c.l.b16 %v31
  %v122 = vunpack.c.h.b16 %v31
  %v123 = vunpack.c.l.b16 %v32
  %v124 = vunpack.c.h.b16 %v32
  %v125 = vunpack.c.l.b16 %v33
  %v126 = vunpack.c.h.b16 %v33
  %v127 = vunpack.c.l.b16 %v34
  %v128 = vunpack.c.h.b16 %v34
  %v129 = vunpack.c.l.b16 %v35
  %v130 = vunpack.c.h.b16 %v35
  %v131 = vunpack.c.l.b16 %v36
  %v132 = vunpack.c.h.b16 %v36
  %v133 = vpack.c.b16 %v99, %v97
  %v134 = vpack.c.b16 %v100, %v98
  %v135 = vpack.c.b16 %v103, %v101
  %v136 = vpack.c.b16 %v104, %v102
  %v137 = vpack.c.b16 %v107, %v105
  %v138 = vpack.c.b16 %v108, %v106
  %v139 = vpack.c.b16 %v111, %v109
  %v140 = vpack.c.b16 %v112, %v110
  %v141 = vpack.c.b16 %v115, %v113
  %v142 = vpack.c.b16 %v116, %v114
  %v143 = vpack.c.b16 %v119, %v117
  %v144 = vpack.c.b16 %v120, %v118
  %v145 = vpack.c.b16 %v123, %v121
  %v146 = vpack.c.b16 %v124, %v122
  %v147 = vpack.c.b16 %v127, %v125
  %v148 = vpack.c.b16 %v128, %v126
  %v149 = vpack.c.b16 %v131, %v129
  %v150 = vpack.c.b16 %v132, %v130
  %vm169 = vcmask 130048
  %v171 = vsel %vm169, %v74, 0
  %v174 = vsel %vm169, %v76, 0
  %176 = vmatprep.subr.bf16.mxu0 %v134
  %177 = vmatpush1.bf16.msra.mxu0 %v133
  %178 = vmatprep.subr.bf16.mxu0 %v136
  %179 = vmatpush1.bf16.msra.mxu0 %v135
  %180 = vmatprep.subr.bf16.mxu0 %v138
  %181 = vmatpush1.bf16.msra.mxu0 %v137
  %182 = vmatprep.subr.bf16.mxu0 %v140
  %183 = vmatpush1.bf16.msra.mxu0 %v139
  %184 = vmatprep.subr.bf16.mxu0 %v142
  %185 = vmatpush1.bf16.msra.mxu0 %v141
  %186 = vmatprep.subr.bf16.mxu0 %v144
  %187 = vmatpush1.bf16.msra.mxu0 %v143
  %188 = vmatprep.subr.bf16.mxu0 %v146
  %189 = vmatpush1.bf16.msra.mxu0 %v145
  %190 = vmatprep.subr.bf16.mxu0 %v148
  %191 = vmatpush1.bf16.msra.mxu0 %v147
  %192 = vmatprep.subr.bf16.mxu0 %v150
  %193 = vmatpush1.bf16.msra.mxu0 %v149
  %194 = vmatprep.subr.bf16.mxu0 0
  %195 = vmatpush1.bf16.msra.mxu0 0
  %196 = vmatprep.subr.bf16.mxu0 0
  %197 = vmatpush1.bf16.msra.mxu0 0
  %198 = vmatprep.subr.bf16.mxu0 0
  %199 = vmatpush1.bf16.msra.mxu0 0
  %200 = vmatprep.subr.bf16.mxu0 0
  %201 = vmatpush1.bf16.msra.mxu0 0
  %202 = vmatprep.subr.bf16.mxu0 0
  %203 = vmatpush1.bf16.msra.mxu0 0
  %204 = vmatprep.subr.bf16.mxu0 0
  %205 = vmatpush1.bf16.msra.mxu0 0
  %206 = vmatprep.subr.bf16.mxu0 0
  %207 = vmatpush1.bf16.msra.mxu0 0
  %208 = vmatprep.mubr.bf16.mxu0 %v171
  %209 = vmatmul.mubr.bf16.gmra.mrb[0].mxu0 %v73
  %v210 = vpop.f32.mrb[0].mxu0
  %v211 = vadd.f32 %v44, %v210
  %v212 = vpop.f32.mrb[0].mxu0
  %v213 = vadd.f32 %v44, %v212
  %v214 = vpop.f32.mrb[0].mxu0
  %v215 = vadd.f32 %v49, %v214
  %v216 = vpop.f32.mrb[0].mxu0
  %v217 = vadd.f32 %v49, %v216
  %218 = vmatprep.mubr.bf16.mxu0 %v174
  %219 = vmatmul.mubr.bf16.gmra.mrb[0].mxu0 %v75
  %v220 = vpop.f32.mrb[0].mxu0
  %v221 = vadd.f32 %v54, %v220
  %v222 = vpop.f32.mrb[0].mxu0
  %v223 = vadd.f32 %v54, %v222
  %v224 = vpop.f32.mrb[0].mxu0
  %v225 = vadd.f32 %v59, %v224
  %v226 = vpop.f32.mrb[0].mxu0
  %v227 = vadd.f32 %v59, %v226
  %228 = vdwg.mxu0
  %v229 = vmax.f32 %v211, 0.0
  %v230 = vmax.f32 %v213, 0.0
  %v231 = vmax.f32 %v215, 0.0
  %v232 = vmax.f32 %v217, 0.0
  %v233 = vmax.f32 %v221, 0.0
  %v234 = vmax.f32 %v223, 0.0
  %v235 = vmax.f32 %v225, 0.0
  %v236 = vmax.f32 %v227, 0.0
  %v237 = vpack.c.bf16 %v231, %v229
  %v238 = vpack.c.bf16 %v232, %v230
  %v239 = vpack.c.bf16 %v235, %v233
  %v240 = vpack.c.bf16 %v236, %v234
  %v245 = vunpack.c.l.b16 %v237
  %v246 = vunpack.c.l.b16 %v238
  %v247 = vunpack.c.h.b16 %v237
  %v248 = vunpack.c.h.b16 %v238
  %v249 = vunpack.c.l.b16 %v239
  %v250 = vunpack.c.l.b16 %v240
  %v251 = vunpack.c.h.b16 %v239
  %v252 = vunpack.c.h.b16 %v240
  %v253 = vpack.c.b16 %v246, %v245
  %v254 = vpack.c.b16 %v248, %v247
  %v255 = vpack.c.b16 %v250, %v249
  %v256 = vpack.c.b16 %v252, %v251
  %vm261 = vcmask 1043456
  %vm262 = vcmask 588804
  %vm263 = vmor %vm262, %vm261
  %264 = vst.msk [vmem:[%s3] sm:$0xff] %vm263, %v253
  %265 = vst.msk [vmem:[%s3 + $0x8] sm:$0xff] %vm263, %v254
  %266 = vst.msk [vmem:[%s3 + $0x10] sm:$0xff] %vm263, %v255
  %267 = vst.msk [vmem:[%s3 + $0x18] sm:$0xff] %vm263, %v256
  // Predicated region
  $region14: #{forward.8} parent=0 // pred_check
    _
  $region15: #{forward.8} parent=0 // pred_check_branch
    %269 = sbr.rel (0) target = $region17
  $region16: #{forward.8} parent=0 // pred_region
    _
  $region17: #{forward.8} parent=0 // pred_fallthru
    _
  // Predicated region
  $region18: #{forward.8} parent=0 // pred_check
    _
  $region19: #{forward.8} parent=0 // pred_check_branch
    %271 = sbr.rel (0) target = $region21
  $region20: #{forward.8} parent=0 // pred_region
    _
  $region21: #{forward.8} parent=0 // pred_fallthru
    _

// kernel: forward.9
$region0: #{forward.9}
  #allocation0 [shape = 'u32[]', space=smem, size = 0x4, offset = 0x4, fixed_abs, tag = 'smem constant byte address 0x4 - core index']
  #allocation1 [shape = 'u32[144,128]{1,0:T(1,128)}', space=vmem, size = 0x12000, scoped, tag = 'internal scratch']
  %s0 = inlined_call_operand.vmem [shape: bf16[16,2048], index: 0, kind: input, shape index: {}]
  %s1 = inlined_call_operand.vmem [shape: f32[16,1], index: 1, kind: input, shape index: {}]
  %s2 = inlined_call_operand.vmem [shape: bf16[2048,18], index: 2, kind: input, shape index: {}]
  %s3 = inlined_call_operand.vmem [shape: bf16[16,18], index: 3, kind: output, shape index: {}]
  %s4 = sld [smem:[#allocation0]]
  $region22: #{forward.9} parent=0
    _
  %s6 = ssub.s32 1, %s4
  %s7 = scalar_select 0, %s6, %s4
  // Predicated region
  $region2: #{forward.9} parent=0 // pred_check
    _
  $region3: #{forward.9} parent=0 // pred_check_branch
    %9 = sbr.rel (0) target = $region5
  $region4: #{forward.9} parent=0 // pred_region
    _
  $region5: #{forward.9} parent=0 // pred_fallthru
    _
  // Predicated region
  $region6: #{forward.9} parent=0 // pred_check
    _
  $region7: #{forward.9} parent=0 // pred_check_branch
    %11 = sbr.rel (0) target = $region9
  $region8: #{forward.9} parent=0 // pred_region
    _
  $region9: #{forward.9} parent=0 // pred_fallthru
    _
  // Predicated region
  $region10: #{forward.9} parent=0 // pred_check
    _
  $region11: #{forward.9} parent=0 // pred_check_branch
    %13 = sbr.rel (0) target = $region13
  $region12: #{forward.9} parent=0 // pred_region
    _
  $region13: #{forward.9} parent=0 // pred_fallthru
    _
  %v15 = vld [vmem:[%s0] sm:$0xff]
  %v16 = vld [vmem:[%s0 + $0x8] sm:$0xff]
  %v17 = vld [vmem:[%s0 + $0x10] sm:$0xff]
  %v18 = vld [vmem:[%s0 + $0x18] sm:$0xff]
  %v19 = vld [vmem:[%s0 + $0x20] sm:$0xff]
  %v20 = vld [vmem:[%s0 + $0x28] sm:$0xff]
  %v21 = vld [vmem:[%s0 + $0x30] sm:$0xff]
  %v22 = vld [vmem:[%s0 + $0x38] sm:$0xff]
  %v23 = vld [vmem:[%s0 + $0x40] sm:$0xff]
  %v24 = vld [vmem:[%s0 + $0x48] sm:$0xff]
  %v25 = vld [vmem:[%s0 + $0x50] sm:$0xff]
  %v26 = vld [vmem:[%s0 + $0x58] sm:$0xff]
  %v27 = vld [vmem:[%s0 + $0x60] sm:$0xff]
  %v28 = vld [vmem:[%s0 + $0x68] sm:$0xff]
  %v29 = vld [vmem:[%s0 + $0x70] sm:$0xff]
  %v30 = vld [vmem:[%s0 + $0x78] sm:$0xff]
  %v31 = vld [vmem:[%s2] sm:$0xf]
  %v32 = vld [vmem:[%s2 + $0x4] sm:$0xf]
  %v33 = vld [vmem:[%s2 + $0x8] sm:$0xf]
  %v34 = vld [vmem:[%s2 + $0xc] sm:$0xf]
  %v35 = vld [vmem:[%s2 + $0x10] sm:$0xf]
  %v36 = vld [vmem:[%s2 + $0x14] sm:$0xf]
  %v37 = vld [vmem:[%s2 + $0x18] sm:$0xf]
  %v38 = vld [vmem:[%s2 + $0x1c] sm:$0xf]
  %v39 = vld [vmem:[%s2 + $0x20] sm:$0xf]
  %v40 = vld [vmem:[%s2 + $0x24] sm:$0xf]
  %v41 = vld [vmem:[%s2 + $0x28] sm:$0xf]
  %v42 = vld [vmem:[%s2 + $0x2c] sm:$0xf]
  %v43 = vld [vmem:[%s2 + $0x30] sm:$0xf]
  %v44 = vld [vmem:[%s2 + $0x34] sm:$0xf]
  %v45 = vld [vmem:[%s2 + $0x38] sm:$0xf]
  %v46 = vld [vmem:[%s2 + $0x3c] sm:$0xf]
  %v47 = vld [vmem:[%s2 + $0x40] sm:$0xf]
  %v48 = vld [vmem:[%s2 + $0x44] sm:$0xf]
  %v49 = vld [vmem:[%s2 + $0x48] sm:$0xf]
  %v50 = vld [vmem:[%s2 + $0x4c] sm:$0xf]
  %v51 = vld [vmem:[%s2 + $0x50] sm:$0xf]
  %v52 = vld [vmem:[%s2 + $0x54] sm:$0xf]
  %v53 = vld [vmem:[%s2 + $0x58] sm:$0xf]
  %v54 = vld [vmem:[%s2 + $0x5c] sm:$0xf]
  %v55 = vld [vmem:[%s2 + $0x60] sm:$0xf]
  %v56 = vld [vmem:[%s2 + $0x64] sm:$0xf]
  %v57 = vld [vmem:[%s2 + $0x68] sm:$0xf]
  %v58 = vld [vmem:[%s2 + $0x6c] sm:$0xf]
  %v59 = vld [vmem:[%s2 + $0x70] sm:$0xf]
  %v60 = vld [vmem:[%s2 + $0x74] sm:$0xf]
  %v61 = vld [vmem:[%s2 + $0x78] sm:$0xf]
  %v62 = vld [vmem:[%s2 + $0x7c] sm:$0xf]
  %v63 = vld [vmem:[%s2 + $0x80] sm:$0xf]
  %v64 = vld [vmem:[%s2 + $0x84] sm:$0xf]
  %v65 = vld [vmem:[%s2 + $0x88] sm:$0xf]
  %v66 = vld [vmem:[%s2 + $0x8c] sm:$0xf]
  %v67 = vld [vmem:[%s2 + $0x90] sm:$0xf]
  %v68 = vld [vmem:[%s2 + $0x94] sm:$0xf]
  %v69 = vld [vmem:[%s2 + $0x98] sm:$0xf]
  %v70 = vld [vmem:[%s2 + $0x9c] sm:$0xf]
  %v71 = vld [vmem:[%s2 + $0xa0] sm:$0xf]
  %v72 = vld [vmem:[%s2 + $0xa4] sm:$0xf]
  %v73 = vld [vmem:[%s2 + $0xa8] sm:$0xf]
  %v74 = vld [vmem:[%s2 + $0xac] sm:$0xf]
  %v75 = vld [vmem:[%s2 + $0xb0] sm:$0xf]
  %v76 = vld [vmem:[%s2 + $0xb4] sm:$0xf]
  %v77 = vld [vmem:[%s2 + $0xb8] sm:$0xf]
  %v78 = vld [vmem:[%s2 + $0xbc] sm:$0xf]
  %v79 = vld [vmem:[%s2 + $0xc0] sm:$0xf]
  %v80 = vld [vmem:[%s2 + $0xc4] sm:$0xf]
  %v81 = vld [vmem:[%s2 + $0xc8] sm:$0xf]
  %v82 = vld [vmem:[%s2 + $0xcc] sm:$0xf]
  %v83 = vld [vmem:[%s2 + $0xd0] sm:$0xf]
  %v84 = vld [vmem:[%s2 + $0xd4] sm:$0xf]
  %v85 = vld [vmem:[%s2 + $0xd8] sm:$0xf]
  %v86 = vld [vmem:[%s2 + $0xdc] sm:$0xf]
  %v87 = vld [vmem:[%s2 + $0xe0] sm:$0xf]
  %v88 = vld [vmem:[%s2 + $0xe4] sm:$0xf]
  %v89 = vld [vmem:[%s2 + $0xe8] sm:$0xf]
  %v90 = vld [vmem:[%s2 + $0xec] sm:$0xf]
  %v91 = vld [vmem:[%s2 + $0xf0] sm:$0xf]
  %v92 = vld [vmem:[%s2 + $0xf4] sm:$0xf]
  %v93 = vld [vmem:[%s2 + $0xf8] sm:$0xf]
  %v94 = vld [vmem:[%s2 + $0xfc] sm:$0xf]
  %v95 = vld [vmem:[%s2 + $0x100] sm:$0xf]
  %v96 = vld [vmem:[%s2 + $0x104] sm:$0xf]
  %v97 = vld [vmem:[%s2 + $0x108] sm:$0xf]
  %v98 = vld [vmem:[%s2 + $0x10c] sm:$0xf]
  %v99 = vld [vmem:[%s2 + $0x110] sm:$0xf]
  %v100 = vld [vmem:[%s2 + $0x114] sm:$0xf]
  %v101 = vld [vmem:[%s2 + $0x118] sm:$0xf]
  %v102 = vld [vmem:[%s2 + $0x11c] sm:$0xf]
  %v103 = vld [vmem:[%s2 + $0x120] sm:$0xf]
  %v104 = vld [vmem:[%s2 + $0x124] sm:$0xf]
  %v105 = vld [vmem:[%s2 + $0x128] sm:$0xf]
  %v106 = vld [vmem:[%s2 + $0x12c] sm:$0xf]
  %v107 = vld [vmem:[%s2 + $0x130] sm:$0xf]
  %v108 = vld [vmem:[%s2 + $0x134] sm:$0xf]
  %v109 = vld [vmem:[%s2 + $0x138] sm:$0xf]
  %v110 = vld [vmem:[%s2 + $0x13c] sm:$0xf]
  %v111 = vld [vmem:[%s2 + $0x140] sm:$0xf]
  %v112 = vld [vmem:[%s2 + $0x144] sm:$0xf]
  %v113 = vld [vmem:[%s2 + $0x148] sm:$0xf]
  %v114 = vld [vmem:[%s2 + $0x14c] sm:$0xf]
  %v115 = vld [vmem:[%s2 + $0x150] sm:$0xf]
  %v116 = vld [vmem:[%s2 + $0x154] sm:$0xf]
  %v117 = vld [vmem:[%s2 + $0x158] sm:$0xf]
  %v118 = vld [vmem:[%s2 + $0x15c] sm:$0xf]
  %v119 = vld [vmem:[%s2 + $0x160] sm:$0xf]
  %v120 = vld [vmem:[%s2 + $0x164] sm:$0xf]
  %v121 = vld [vmem:[%s2 + $0x168] sm:$0xf]
  %v122 = vld [vmem:[%s2 + $0x16c] sm:$0xf]
  %v123 = vld [vmem:[%s2 + $0x170] sm:$0xf]
  %v124 = vld [vmem:[%s2 + $0x174] sm:$0xf]
  %v125 = vld [vmem:[%s2 + $0x178] sm:$0xf]
  %v126 = vld [vmem:[%s2 + $0x17c] sm:$0xf]
  %v127 = vld [vmem:[%s2 + $0x180] sm:$0xf]
  %v128 = vld [vmem:[%s2 + $0x184] sm:$0xf]
  %v129 = vld [vmem:[%s2 + $0x188] sm:$0xf]
  %v130 = vld [vmem:[%s2 + $0x18c] sm:$0xf]
  %v131 = vld [vmem:[%s2 + $0x190] sm:$0xf]
  %v132 = vld [vmem:[%s2 + $0x194] sm:$0xf]
  %v133 = vld [vmem:[%s2 + $0x198] sm:$0xf]
  %v134 = vld [vmem:[%s2 + $0x19c] sm:$0xf]
  %v135 = vld [vmem:[%s2 + $0x1a0] sm:$0xf]
  %v136 = vld [vmem:[%s2 + $0x1a4] sm:$0xf]
  %v137 = vld [vmem:[%s2 + $0x1a8] sm:$0xf]
  %v138 = vld [vmem:[%s2 + $0x1ac] sm:$0xf]
  %v139 = vld [vmem:[%s2 + $0x1b0] sm:$0xf]
  %v140 = vld [vmem:[%s2 + $0x1b4] sm:$0xf]
  %v141 = vld [vmem:[%s2 + $0x1b8] sm:$0xf]
  %v142 = vld [vmem:[%s2 + $0x1bc] sm:$0xf]
  %v143 = vld [vmem:[%s2 + $0x1c0] sm:$0xf]
  %v144 = vld [vmem:[%s2 + $0x1c4] sm:$0xf]
  %v145 = vld [vmem:[%s2 + $0x1c8] sm:$0xf]
  %v146 = vld [vmem:[%s2 + $0x1cc] sm:$0xf]
  %v147 = vld [vmem:[%s2 + $0x1d0] sm:$0xf]
  %v148 = vld [vmem:[%s2 + $0x1d4] sm:$0xf]
  %v149 = vld [vmem:[%s2 + $0x1d8] sm:$0xf]
  %v150 = vld [vmem:[%s2 + $0x1dc] sm:$0xf]
  %v151 = vld [vmem:[%s2 + $0x1e0] sm:$0xf]
  %v152 = vld [vmem:[%s2 + $0x1e4] sm:$0xf]
  %v153 = vld [vmem:[%s2 + $0x1e8] sm:$0xf]
  %v154 = vld [vmem:[%s2 + $0x1ec] sm:$0xf]
  %v155 = vld [vmem:[%s2 + $0x1f0] sm:$0xf]
  %v156 = vld [vmem:[%s2 + $0x1f4] sm:$0xf]
  %v157 = vld [vmem:[%s2 + $0x1f8] sm:$0xf]
  %v158 = vld [vmem:[%s2 + $0x1fc] sm:$0xf]
  %v159 = vld [vmem:[%s2 + $0x200] sm:$0xf]
  %v160 = vld [vmem:[%s2 + $0x204] sm:$0xf]
  %v161 = vld [vmem:[%s2 + $0x208] sm:$0xf]
  %v162 = vld [vmem:[%s2 + $0x20c] sm:$0xf]
  %v163 = vld [vmem:[%s2 + $0x210] sm:$0xf]
  %v164 = vld [vmem:[%s2 + $0x214] sm:$0xf]
  %v165 = vld [vmem:[%s2 + $0x218] sm:$0xf]
  %v166 = vld [vmem:[%s2 + $0x21c] sm:$0xf]
  %v167 = vld [vmem:[%s2 + $0x220] sm:$0xf]
  %v168 = vld [vmem:[%s2 + $0x224] sm:$0xf]
  %v169 = vld [vmem:[%s2 + $0x228] sm:$0xf]
  %v170 = vld [vmem:[%s2 + $0x22c] sm:$0xf]
  %v171 = vld [vmem:[%s2 + $0x230] sm:$0xf]
  %v172 = vld [vmem:[%s2 + $0x234] sm:$0xf]
  %v173 = vld [vmem:[%s2 + $0x238] sm:$0xf]
  %v174 = vld [vmem:[%s2 + $0x23c] sm:$0xf]
  %v175 = vld [vmem:[%s2 + $0x240] sm:$0xf]
  %v176 = vld [vmem:[%s2 + $0x244] sm:$0xf]
  %v177 = vld [vmem:[%s2 + $0x248] sm:$0xf]
  %v178 = vld [vmem:[%s2 + $0x24c] sm:$0xf]
  %v179 = vld [vmem:[%s2 + $0x250] sm:$0xf]
  %v180 = vld [vmem:[%s2 + $0x254] sm:$0xf]
  %v181 = vld [vmem:[%s2 + $0x258] sm:$0xf]
  %v182 = vld [vmem:[%s2 + $0x25c] sm:$0xf]
  %v183 = vld [vmem:[%s2 + $0x260] sm:$0xf]
  %v184 = vld [vmem:[%s2 + $0x264] sm:$0xf]
  %v185 = vld [vmem:[%s2 + $0x268] sm:$0xf]
  %v186 = vld [vmem:[%s2 + $0x26c] sm:$0xf]
  %v187 = vld [vmem:[%s2 + $0x270] sm:$0xf]
  %v188 = vld [vmem:[%s2 + $0x274] sm:$0xf]
  %v189 = vld [vmem:[%s2 + $0x278] sm:$0xf]
  %v190 = vld [vmem:[%s2 + $0x27c] sm:$0xf]
  %v191 = vld [vmem:[%s2 + $0x280] sm:$0xf]
  %v192 = vld [vmem:[%s2 + $0x284] sm:$0xf]
  %v193 = vld [vmem:[%s2 + $0x288] sm:$0xf]
  %v194 = vld [vmem:[%s2 + $0x28c] sm:$0xf]
  %v195 = vld [vmem:[%s2 + $0x290] sm:$0xf]
  %v196 = vld [vmem:[%s2 + $0x294] sm:$0xf]
  %v197 = vld [vmem:[%s2 + $0x298] sm:$0xf]
  %v198 = vld [vmem:[%s2 + $0x29c] sm:$0xf]
  %v199 = vld [vmem:[%s2 + $0x2a0] sm:$0xf]
  %v200 = vld [vmem:[%s2 + $0x2a4] sm:$0xf]
  %v201 = vld [vmem:[%s2 + $0x2a8] sm:$0xf]
  %v202 = vld [vmem:[%s2 + $0x2ac] sm:$0xf]
  %v203 = vld [vmem:[%s2 + $0x2b0] sm:$0xf]
  %v204 = vld [vmem:[%s2 + $0x2b4] sm:$0xf]
  %v205 = vld [vmem:[%s2 + $0x2b8] sm:$0xf]
  %v206 = vld [vmem:[%s2 + $0x2bc] sm:$0xf]
  %v207 = vld [vmem:[%s2 + $0x2c0] sm:$0xf]
  %v208 = vld [vmem:[%s2 + $0x2c4] sm:$0xf]
  %v209 = vld [vmem:[%s2 + $0x2c8] sm:$0xf]
  %v210 = vld [vmem:[%s2 + $0x2cc] sm:$0xf]
  %v211 = vld [vmem:[%s2 + $0x2d0] sm:$0xf]
  %v212 = vld [vmem:[%s2 + $0x2d4] sm:$0xf]
  %v213 = vld [vmem:[%s2 + $0x2d8] sm:$0xf]
  %v214 = vld [vmem:[%s2 + $0x2dc] sm:$0xf]
  %v215 = vld [vmem:[%s2 + $0x2e0] sm:$0xf]
  %v216 = vld [vmem:[%s2 + $0x2e4] sm:$0xf]
  %v217 = vld [vmem:[%s2 + $0x2e8] sm:$0xf]
  %v218 = vld [vmem:[%s2 + $0x2ec] sm:$0xf]
  %v219 = vld [vmem:[%s2 + $0x2f0] sm:$0xf]
  %v220 = vld [vmem:[%s2 + $0x2f4] sm:$0xf]
  %v221 = vld [vmem:[%s2 + $0x2f8] sm:$0xf]
  %v222 = vld [vmem:[%s2 + $0x2fc] sm:$0xf]
  %v223 = vld [vmem:[%s2 + $0x300] sm:$0xf]
  %v224 = vld [vmem:[%s2 + $0x304] sm:$0xf]
  %v225 = vld [vmem:[%s2 + $0x308] sm:$0xf]
  %v226 = vld [vmem:[%s2 + $0x30c] sm:$0xf]
  %v227 = vld [vmem:[%s2 + $0x310] sm:$0xf]
  %v228 = vld [vmem:[%s2 + $0x314] sm:$0xf]
  %v229 = vld [vmem:[%s2 + $0x318] sm:$0xf]
  %v230 = vld [vmem:[%s2 + $0x31c] sm:$0xf]
  %v231 = vld [vmem:[%s2 + $0x320] sm:$0xf]
  %v232 = vld [vmem:[%s2 + $0x324] sm:$0xf]
  %v233 = vld [vmem:[%s2 + $0x328] sm:$0xf]
  %v234 = vld [vmem:[%s2 + $0x32c] sm:$0xf]
  %v235 = vld [vmem:[%s2 + $0x330] sm:$0xf]
  %v236 = vld [vmem:[%s2 + $0x334] sm:$0xf]
  %v237 = vld [vmem:[%s2 + $0x338] sm:$0xf]
  %v238 = vld [vmem:[%s2 + $0x33c] sm:$0xf]
  %v239 = vld [vmem:[%s2 + $0x340] sm:$0xf]
  %v240 = vld [vmem:[%s2 + $0x344] sm:$0xf]
  %v241 = vld [vmem:[%s2 + $0x348] sm:$0xf]
  %v242 = vld [vmem:[%s2 + $0x34c] sm:$0xf]
  %v243 = vld [vmem:[%s2 + $0x350] sm:$0xf]
  %v244 = vld [vmem:[%s2 + $0x354] sm:$0xf]
  %v245 = vld [vmem:[%s2 + $0x358] sm:$0xf]
  %v246 = vld [vmem:[%s2 + $0x35c] sm:$0xf]
  %v247 = vld [vmem:[%s2 + $0x360] sm:$0xf]
  %v248 = vld [vmem:[%s2 + $0x364] sm:$0xf]
  %v249 = vld [vmem:[%s2 + $0x368] sm:$0xf]
  %v250 = vld [vmem:[%s2 + $0x36c] sm:$0xf]
  %v251 = vld [vmem:[%s2 + $0x370] sm:$0xf]
  %v252 = vld [vmem:[%s2 + $0x374] sm:$0xf]
  %v253 = vld [vmem:[%s2 + $0x378] sm:$0xf]
  %v254 = vld [vmem:[%s2 + $0x37c] sm:$0xf]
  %v255 = vld [vmem:[%s2 + $0x380] sm:$0xf]
  %v256 = vld [vmem:[%s2 + $0x384] sm:$0xf]
  %v257 = vld [vmem:[%s2 + $0x388] sm:$0xf]
  %v258 = vld [vmem:[%s2 + $0x38c] sm:$0xf]
  %v259 = vld [vmem:[%s2 + $0x390] sm:$0xf]
  %v260 = vld [vmem:[%s2 + $0x394] sm:$0xf]
  %v261 = vld [vmem:[%s2 + $0x398] sm:$0xf]
  %v262 = vld [vmem:[%s2 + $0x39c] sm:$0xf]
  %v263 = vld [vmem:[%s2 + $0x3a0] sm:$0xf]
  %v264 = vld [vmem:[%s2 + $0x3a4] sm:$0xf]
  %v265 = vld [vmem:[%s2 + $0x3a8] sm:$0xf]
  %v266 = vld [vmem:[%s2 + $0x3ac] sm:$0xf]
  %v267 = vld [vmem:[%s2 + $0x3b0] sm:$0xf]
  %v268 = vld [vmem:[%s2 + $0x3b4] sm:$0xf]
  %v269 = vld [vmem:[%s2 + $0x3b8] sm:$0xf]
  %v270 = vld [vmem:[%s2 + $0x3bc] sm:$0xf]
  %v271 = vld [vmem:[%s2 + $0x3c0] sm:$0xf]
  %v272 = vld [vmem:[%s2 + $0x3c4] sm:$0xf]
  %v273 = vld [vmem:[%s2 + $0x3c8] sm:$0xf]
  %v274 = vld [vmem:[%s2 + $0x3cc] sm:$0xf]
  %v275 = vld [vmem:[%s2 + $0x3d0] sm:$0xf]
  %v276 = vld [vmem:[%s2 + $0x3d4] sm:$0xf]
  %v277 = vld [vmem:[%s2 + $0x3d8] sm:$0xf]
  %v278 = vld [vmem:[%s2 + $0x3dc] sm:$0xf]
  %v279 = vld [vmem:[%s2 + $0x3e0] sm:$0xf]
  %v280 = vld [vmem:[%s2 + $0x3e4] sm:$0xf]
  %v281 = vld [vmem:[%s2 + $0x3e8] sm:$0xf]
  %v282 = vld [vmem:[%s2 + $0x3ec] sm:$0xf]
  %v283 = vld [vmem:[%s2 + $0x3f0] sm:$0xf]
  %v284 = vld [vmem:[%s2 + $0x3f4] sm:$0xf]
  %v285 = vld [vmem:[%s2 + $0x3f8] sm:$0xf]
  %v286 = vld [vmem:[%s2 + $0x3fc] sm:$0xf]
  %v287 = vld [vmem:[%s1] sm:$0xff]
  %v288 = vld [vmem:[%s1 + $0x8] sm:$0xff]
  %290 = vset.pattern.permute.xlu0 0
  %291 = vperm.xlu0 %290, %v287
  %v292 = vpop.permute.xlu0 %291
  %295 = vset.pattern.permute.xlu0 0
  %296 = vperm.xlu0 %295, %v288
  %v297 = vpop.permute.xlu0 %296
  %v315 = vunpack.c.l.b16 %v15
  %v316 = vunpack.c.h.b16 %v15
  %v317 = vunpack.c.l.b16 %v16
  %v318 = vunpack.c.h.b16 %v16
  %v319 = vunpack.c.l.b16 %v17
  %v320 = vunpack.c.h.b16 %v17
  %v321 = vunpack.c.l.b16 %v18
  %v322 = vunpack.c.h.b16 %v18
  %v323 = vunpack.c.l.b16 %v19
  %v324 = vunpack.c.h.b16 %v19
  %v325 = vunpack.c.l.b16 %v20
  %v326 = vunpack.c.h.b16 %v20
  %v327 = vunpack.c.l.b16 %v21
  %v328 = vunpack.c.h.b16 %v21
  %v329 = vunpack.c.l.b16 %v22
  %v330 = vunpack.c.h.b16 %v22
  %v331 = vunpack.c.l.b16 %v23
  %v332 = vunpack.c.h.b16 %v23
  %v333 = vunpack.c.l.b16 %v24
  %v334 = vunpack.c.h.b16 %v24
  %v335 = vunpack.c.l.b16 %v25
  %v336 = vunpack.c.h.b16 %v25
  %v337 = vunpack.c.l.b16 %v26
  %v338 = vunpack.c.h.b16 %v26
  %v339 = vunpack.c.l.b16 %v27
  %v340 = vunpack.c.h.b16 %v27
  %v341 = vunpack.c.l.b16 %v28
  %v342 = vunpack.c.h.b16 %v28
  %v343 = vunpack.c.l.b16 %v29
  %v344 = vunpack.c.h.b16 %v29
  %v345 = vunpack.c.l.b16 %v30
  %v346 = vunpack.c.h.b16 %v30
  %v347 = vpack.c.b16 %v331, %v315
  %v348 = vpack.c.b16 %v332, %v316
  %v349 = vpack.c.b16 %v333, %v317
  %v350 = vpack.c.b16 %v334, %v318
  %v351 = vpack.c.b16 %v335, %v319
  %v352 = vpack.c.b16 %v336, %v320
  %v353 = vpack.c.b16 %v337, %v321
  %v354 = vpack.c.b16 %v338, %v322
  %v355 = vpack.c.b16 %v339, %v323
  %v356 = vpack.c.b16 %v340, %v324
  %v357 = vpack.c.b16 %v341, %v325
  %v358 = vpack.c.b16 %v342, %v326
  %v359 = vpack.c.b16 %v343, %v327
  %v360 = vpack.c.b16 %v344, %v328
  %v361 = vpack.c.b16 %v345, %v329
  %v362 = vpack.c.b16 %v346, %v330
  %v635 = vunpack.c.l.b16 %v31
  %v636 = vunpack.c.l.b16 %v32
  %v637 = vunpack.c.l.b16 %v33
  %v638 = vunpack.c.l.b16 %v34
  %v639 = vunpack.c.l.b16 %v35
  %v640 = vunpack.c.l.b16 %v36
  %v641 = vunpack.c.l.b16 %v37
  %v642 = vunpack.c.l.b16 %v38
  %v643 = vunpack.c.l.b16 %v39
  %v644 = vunpack.c.l.b16 %v40
  %v645 = vunpack.c.l.b16 %v41
  %v646 = vunpack.c.l.b16 %v42
  %v647 = vunpack.c.l.b16 %v43
  %v648 = vunpack.c.l.b16 %v44
  %v649 = vunpack.c.l.b16 %v45
  %v650 = vunpack.c.l.b16 %v46
  %v651 = vunpack.c.l.b16 %v47
  %v652 = vunpack.c.l.b16 %v48
  %v653 = vunpack.c.l.b16 %v49
  %v654 = vunpack.c.l.b16 %v50
  %v655 = vunpack.c.l.b16 %v51
  %v656 = vunpack.c.l.b16 %v52
  %v657 = vunpack.c.l.b16 %v53
  %v658 = vunpack.c.l.b16 %v54
  %v659 = vunpack.c.l.b16 %v55
  %v660 = vunpack.c.l.b16 %v56
  %v661 = vunpack.c.l.b16 %v57
  %v662 = vunpack.c.l.b16 %v58
  %v663 = vunpack.c.l.b16 %v59
  %v664 = vunpack.c.l.b16 %v60
  %v665 = vunpack.c.l.b16 %v61
  %v666 = vunpack.c.l.b16 %v62
  %v667 = vunpack.c.l.b16 %v63
  %v668 = vunpack.c.l.b16 %v64
  %v669 = vunpack.c.l.b16 %v65
  %v670 = vunpack.c.l.b16 %v66
  %v671 = vunpack.c.l.b16 %v67
  %v672 = vunpack.c.l.b16 %v68
  %v673 = vunpack.c.l.b16 %v69
  %v674 = vunpack.c.l.b16 %v70
  %v675 = vunpack.c.l.b16 %v71
  %v676 = vunpack.c.l.b16 %v72
  %v677 = vunpack.c.l.b16 %v73
  %v678 = vunpack.c.l.b16 %v74
  %v679 = vunpack.c.l.b16 %v75
  %v680 = vunpack.c.l.b16 %v76
  %v681 = vunpack.c.l.b16 %v77
  %v682 = vunpack.c.l.b16 %v78
  %v683 = vunpack.c.l.b16 %v79
  %v684 = vunpack.c.l.b16 %v80
  %v685 = vunpack.c.l.b16 %v81
  %v686 = vunpack.c.l.b16 %v82
  %v687 = vunpack.c.l.b16 %v83
  %v688 = vunpack.c.l.b16 %v84
  %v689 = vunpack.c.l.b16 %v85
  %v690 = vunpack.c.l.b16 %v86
  %v691 = vunpack.c.l.b16 %v87
  %v692 = vunpack.c.l.b16 %v88
  %v693 = vunpack.c.l.b16 %v89
  %v694 = vunpack.c.l.b16 %v90
  %v695 = vunpack.c.l.b16 %v91
  %v696 = vunpack.c.l.b16 %v92
  %v697 = vunpack.c.l.b16 %v93
  %v698 = vunpack.c.l.b16 %v94
  %v699 = vunpack.c.l.b16 %v95
  %v700 = vunpack.c.l.b16 %v96
  %v701 = vunpack.c.l.b16 %v97
  %v702 = vunpack.c.l.b16 %v98
  %v703 = vunpack.c.l.b16 %v99
  %v704 = vunpack.c.l.b16 %v100
  %v705 = vunpack.c.l.b16 %v101
  %v706 = vunpack.c.l.b16 %v102
  %v707 = vunpack.c.l.b16 %v103
  %v708 = vunpack.c.l.b16 %v104
  %v709 = vunpack.c.l.b16 %v105
  %v710 = vunpack.c.l.b16 %v106
  %v711 = vunpack.c.l.b16 %v107
  %v712 = vunpack.c.l.b16 %v108
  %v713 = vunpack.c.l.b16 %v109
  %v714 = vunpack.c.l.b16 %v110
  %v715 = vunpack.c.l.b16 %v111
  %v716 = vunpack.c.l.b16 %v112
  %v717 = vunpack.c.l.b16 %v113
  %v718 = vunpack.c.l.b16 %v114
  %v719 = vunpack.c.l.b16 %v115
  %v720 = vunpack.c.l.b16 %v116
  %v721 = vunpack.c.l.b16 %v117
  %v722 = vunpack.c.l.b16 %v118
  %v723 = vunpack.c.l.b16 %v119
  %v724 = vunpack.c.l.b16 %v120
  %v725 = vunpack.c.l.b16 %v121
  %v726 = vunpack.c.l.b16 %v122
  %v727 = vunpack.c.l.b16 %v123
  %v728 = vunpack.c.l.b16 %v124
  %v729 = vunpack.c.l.b16 %v125
  %v730 = vunpack.c.l.b16 %v126
  %v731 = vunpack.c.l.b16 %v127
  %v732 = vunpack.c.l.b16 %v128
  %v733 = vunpack.c.l.b16 %v129
  %v734 = vunpack.c.l.b16 %v130
  %v735 = vunpack.c.l.b16 %v131
  %v736 = vunpack.c.l.b16 %v132
  %v737 = vunpack.c.l.b16 %v133
  %v738 = vunpack.c.l.b16 %v134
  %v739 = vunpack.c.l.b16 %v135
  %v740 = vunpack.c.l.b16 %v136
  %v741 = vunpack.c.l.b16 %v137
  %v742 = vunpack.c.l.b16 %v138
  %v743 = vunpack.c.l.b16 %v139
  %v744 = vunpack.c.l.b16 %v140
  %v745 = vunpack.c.l.b16 %v141
  %v746 = vunpack.c.l.b16 %v142
  %v747 = vunpack.c.l.b16 %v143
  %v748 = vunpack.c.l.b16 %v144
  %v749 = vunpack.c.l.b16 %v145
  %v750 = vunpack.c.l.b16 %v146
  %v751 = vunpack.c.l.b16 %v147
  %v752 = vunpack.c.l.b16 %v148
  %v753 = vunpack.c.l.b16 %v149
  %v754 = vunpack.c.l.b16 %v150
  %v755 = vunpack.c.l.b16 %v151
  %v756 = vunpack.c.l.b16 %v152
  %v757 = vunpack.c.l.b16 %v153
  %v758 = vunpack.c.l.b16 %v154
  %v759 = vunpack.c.l.b16 %v155
  %v760 = vunpack.c.l.b16 %v156
  %v761 = vunpack.c.l.b16 %v157
  %v762 = vunpack.c.l.b16 %v158
  %v763 = vunpack.c.l.b16 %v159
  %v764 = vunpack.c.l.b16 %v160
  %v765 = vunpack.c.l.b16 %v161
  %v766 = vunpack.c.l.b16 %v162
  %v767 = vunpack.c.l.b16 %v163
  %v768 = vunpack.c.l.b16 %v164
  %v769 = vunpack.c.l.b16 %v165
  %v770 = vunpack.c.l.b16 %v166
  %v771 = vunpack.c.l.b16 %v167
  %v772 = vunpack.c.l.b16 %v168
  %v773 = vunpack.c.l.b16 %v169
  %v774 = vunpack.c.l.b16 %v170
  %v775 = vunpack.c.l.b16 %v171
  %v776 = vunpack.c.l.b16 %v172
  %v777 = vunpack.c.l.b16 %v173
  %v778 = vunpack.c.l.b16 %v174
  %v779 = vunpack.c.l.b16 %v175
  %v780 = vunpack.c.l.b16 %v176
  %v781 = vunpack.c.l.b16 %v177
  %v782 = vunpack.c.l.b16 %v178
  %v783 = vunpack.c.l.b16 %v179
  %v784 = vunpack.c.l.b16 %v180
  %v785 = vunpack.c.l.b16 %v181
  %v786 = vunpack.c.l.b16 %v182
  %v787 = vunpack.c.l.b16 %v183
  %v788 = vunpack.c.l.b16 %v184
  %v789 = vunpack.c.l.b16 %v185
  %v790 = vunpack.c.l.b16 %v186
  %v791 = vunpack.c.l.b16 %v187
  %v792 = vunpack.c.l.b16 %v188
  %v793 = vunpack.c.l.b16 %v189
  %v794 = vunpack.c.l.b16 %v190
  %v795 = vunpack.c.l.b16 %v191
  %v796 = vunpack.c.l.b16 %v192
  %v797 = vunpack.c.l.b16 %v193
  %v798 = vunpack.c.l.b16 %v194
  %v799 = vunpack.c.l.b16 %v195
  %v800 = vunpack.c.l.b16 %v196
  %v801 = vunpack.c.l.b16 %v197
  %v802 = vunpack.c.l.b16 %v198
  %v803 = vunpack.c.l.b16 %v199
  %v804 = vunpack.c.l.b16 %v200
  %v805 = vunpack.c.l.b16 %v201
  %v806 = vunpack.c.l.b16 %v202
  %v807 = vunpack.c.l.b16 %v203
  %v808 = vunpack.c.l.b16 %v204
  %v809 = vunpack.c.l.b16 %v205
  %v810 = vunpack.c.l.b16 %v206
  %v811 = vunpack.c.l.b16 %v207
  %v812 = vunpack.c.l.b16 %v208
  %v813 = vunpack.c.l.b16 %v209
  %v814 = vunpack.c.l.b16 %v210
  %v815 = vunpack.c.l.b16 %v211
  %v816 = vunpack.c.l.b16 %v212
  %v817 = vunpack.c.l.b16 %v213
  %v818 = vunpack.c.l.b16 %v214
  %v819 = vunpack.c.l.b16 %v215
  %v820 = vunpack.c.l.b16 %v216
  %v821 = vunpack.c.l.b16 %v217
  %v822 = vunpack.c.l.b16 %v218
  %v823 = vunpack.c.l.b16 %v219
  %v824 = vunpack.c.l.b16 %v220
  %v825 = vunpack.c.l.b16 %v221
  %v826 = vunpack.c.l.b16 %v222
  %v827 = vunpack.c.l.b16 %v223
  %v828 = vunpack.c.l.b16 %v224
  %v829 = vunpack.c.l.b16 %v225
  %v830 = vunpack.c.l.b16 %v226
  %v831 = vunpack.c.l.b16 %v227
  %v832 = vunpack.c.l.b16 %v228
  %v833 = vunpack.c.l.b16 %v229
  %v834 = vunpack.c.l.b16 %v230
  %v835 = vunpack.c.l.b16 %v231
  %v836 = vunpack.c.l.b16 %v232
  %v837 = vunpack.c.l.b16 %v233
  %v838 = vunpack.c.l.b16 %v234
  %v839 = vunpack.c.l.b16 %v235
  %v840 = vunpack.c.l.b16 %v236
  %v841 = vunpack.c.l.b16 %v237
  %v842 = vunpack.c.l.b16 %v238
  %v843 = vunpack.c.l.b16 %v239
  %v844 = vunpack.c.l.b16 %v240
  %v845 = vunpack.c.l.b16 %v241
  %v846 = vunpack.c.l.b16 %v242
  %v847 = vunpack.c.l.b16 %v243
  %v848 = vunpack.c.l.b16 %v244
  %v849 = vunpack.c.l.b16 %v245
  %v850 = vunpack.c.l.b16 %v246
  %v851 = vunpack.c.l.b16 %v247
  %v852 = vunpack.c.l.b16 %v248
  %v853 = vunpack.c.l.b16 %v249
  %v854 = vunpack.c.l.b16 %v250
  %v855 = vunpack.c.l.b16 %v251
  %v856 = vunpack.c.l.b16 %v252
  %v857 = vunpack.c.l.b16 %v253
  %v858 = vunpack.c.l.b16 %v254
  %v859 = vunpack.c.l.b16 %v255
  %v860 = vunpack.c.l.b16 %v256
  %v861 = vunpack.c.l.b16 %v257
  %v862 = vunpack.c.l.b16 %v258
  %v863 = vunpack.c.l.b16 %v259
  %v864 = vunpack.c.l.b16 %v260
  %v865 = vunpack.c.l.b16 %v261
  %v866 = vunpack.c.l.b16 %v262
  %v867 = vunpack.c.l.b16 %v263
  %v868 = vunpack.c.l.b16 %v264
  %v869 = vunpack.c.l.b16 %v265
  %v870 = vunpack.c.l.b16 %v266
  %v871 = vunpack.c.l.b16 %v267
  %v872 = vunpack.c.l.b16 %v268
  %v873 = vunpack.c.l.b16 %v269
  %v874 = vunpack.c.l.b16 %v270
  %v875 = vunpack.c.l.b16 %v271
  %v876 = vunpack.c.l.b16 %v272
  %v877 = vunpack.c.l.b16 %v273
  %v878 = vunpack.c.l.b16 %v274
  %v879 = vunpack.c.l.b16 %v275
  %v880 = vunpack.c.l.b16 %v276
  %v881 = vunpack.c.l.b16 %v277
  %v882 = vunpack.c.l.b16 %v278
  %v883 = vunpack.c.l.b16 %v279
  %v884 = vunpack.c.l.b16 %v280
  %v885 = vunpack.c.l.b16 %v281
  %v886 = vunpack.c.l.b16 %v282
  %v887 = vunpack.c.l.b16 %v283
  %v888 = vunpack.c.l.b16 %v284
  %v889 = vunpack.c.l.b16 %v285
  %v890 = vunpack.c.l.b16 %v286
  %v891 = vpack.c.b16 %v636, %v635
  %v892 = vpack.c.b16 %v638, %v637
  %v893 = vpack.c.b16 %v640, %v639
  %v894 = vpack.c.b16 %v642, %v641
  %v895 = vpack.c.b16 %v644, %v643
  %v896 = vpack.c.b16 %v646, %v645
  %v897 = vpack.c.b16 %v648, %v647
  %v898 = vpack.c.b16 %v650, %v649
  %v899 = vpack.c.b16 %v652, %v651
  %v900 = vpack.c.b16 %v654, %v653
  %v901 = vpack.c.b16 %v656, %v655
  %v902 = vpack.c.b16 %v658, %v657
  %v903 = vpack.c.b16 %v660, %v659
  %v904 = vpack.c.b16 %v662, %v661
  %v905 = vpack.c.b16 %v664, %v663
  %v906 = vpack.c.b16 %v666, %v665
  %v907 = vpack.c.b16 %v668, %v667
  %v908 = vpack.c.b16 %v670, %v669
  %v909 = vpack.c.b16 %v672, %v671
  %v910 = vpack.c.b16 %v674, %v673
  %v911 = vpack.c.b16 %v676, %v675
  %v912 = vpack.c.b16 %v678, %v677
  %v913 = vpack.c.b16 %v680, %v679
  %v914 = vpack.c.b16 %v682, %v681
  %v915 = vpack.c.b16 %v684, %v683
  %v916 = vpack.c.b16 %v686, %v685
  %v917 = vpack.c.b16 %v688, %v687
  %v918 = vpack.c.b16 %v690, %v689
  %v919 = vpack.c.b16 %v692, %v691
  %v920 = vpack.c.b16 %v694, %v693
  %v921 = vpack.c.b16 %v696, %v695
  %v922 = vpack.c.b16 %v698, %v697
  %v923 = vpack.c.b16 %v700, %v699
  %v924 = vpack.c.b16 %v702, %v701
  %v925 = vpack.c.b16 %v704, %v703
  %v926 = vpack.c.b16 %v706, %v705
  %v927 = vpack.c.b16 %v708, %v707
  %v928 = vpack.c.b16 %v710, %v709
  %v929 = vpack.c.b16 %v712, %v711
  %v930 = vpack.c.b16 %v714, %v713
  %v931 = vpack.c.b16 %v716, %v715
  %v932 = vpack.c.b16 %v718, %v717
  %v933 = vpack.c.b16 %v720, %v719
  %v934 = vpack.c.b16 %v722, %v721
  %v935 = vpack.c.b16 %v724, %v723
  %v936 = vpack.c.b16 %v726, %v725
  %v937 = vpack.c.b16 %v728, %v727
  %v938 = vpack.c.b16 %v730, %v729
  %v939 = vpack.c.b16 %v732, %v731
  %v940 = vpack.c.b16 %v734, %v733
  %v941 = vpack.c.b16 %v736, %v735
  %v942 = vpack.c.b16 %v738, %v737
  %v943 = vpack.c.b16 %v740, %v739
  %v944 = vpack.c.b16 %v742, %v741
  %v945 = vpack.c.b16 %v744, %v743
  %v946 = vpack.c.b16 %v746, %v745
  %v947 = vpack.c.b16 %v748, %v747
  %v948 = vpack.c.b16 %v750, %v749
  %v949 = vpack.c.b16 %v752, %v751
  %v950 = vpack.c.b16 %v754, %v753
  %v951 = vpack.c.b16 %v756, %v755
  %v952 = vpack.c.b16 %v758, %v757
  %v953 = vpack.c.b16 %v760, %v759
  %v954 = vpack.c.b16 %v762, %v761
  %v955 = vpack.c.b16 %v764, %v763
  %v956 = vpack.c.b16 %v766, %v765
  %v957 = vpack.c.b16 %v768, %v767
  %v958 = vpack.c.b16 %v770, %v769
  %v959 = vpack.c.b16 %v772, %v771
  %v960 = vpack.c.b16 %v774, %v773
  %v961 = vpack.c.b16 %v776, %v775
  %v962 = vpack.c.b16 %v778, %v777
  %v963 = vpack.c.b16 %v780, %v779
  %v964 = vpack.c.b16 %v782, %v781
  %v965 = vpack.c.b16 %v784, %v783
  %v966 = vpack.c.b16 %v786, %v785
  %v967 = vpack.c.b16 %v788, %v787
  %v968 = vpack.c.b16 %v790, %v789
  %v969 = vpack.c.b16 %v792, %v791
  %v970 = vpack.c.b16 %v794, %v793
  %v971 = vpack.c.b16 %v796, %v795
  %v972 = vpack.c.b16 %v798, %v797
  %v973 = vpack.c.b16 %v800, %v799
  %v974 = vpack.c.b16 %v802, %v801
  %v975 = vpack.c.b16 %v804, %v803
  %v976 = vpack.c.b16 %v806, %v805
  %v977 = vpack.c.b16 %v808, %v807
  %v978 = vpack.c.b16 %v810, %v809
  %v979 = vpack.c.b16 %v812, %v811
  %v980 = vpack.c.b16 %v814, %v813
  %v981 = vpack.c.b16 %v816, %v815
  %v982 = vpack.c.b16 %v818, %v817
  %v983 = vpack.c.b16 %v820, %v819
  %v984 = vpack.c.b16 %v822, %v821
  %v985 = vpack.c.b16 %v824, %v823
  %v986 = vpack.c.b16 %v826, %v825
  %v987 = vpack.c.b16 %v828, %v827
  %v988 = vpack.c.b16 %v830, %v829
  %v989 = vpack.c.b16 %v832, %v831
  %v990 = vpack.c.b16 %v834, %v833
  %v991 = vpack.c.b16 %v836, %v835
  %v992 = vpack.c.b16 %v838, %v837
  %v993 = vpack.c.b16 %v840, %v839
  %v994 = vpack.c.b16 %v842, %v841
  %v995 = vpack.c.b16 %v844, %v843
  %v996 = vpack.c.b16 %v846, %v845
  %v997 = vpack.c.b16 %v848, %v847
  %v998 = vpack.c.b16 %v850, %v849
  %v999 = vpack.c.b16 %v852, %v851
  %v1000 = vpack.c.b16 %v854, %v853
  %v1001 = vpack.c.b16 %v856, %v855
  %v1002 = vpack.c.b16 %v858, %v857
  %v1003 = vpack.c.b16 %v860, %v859
  %v1004 = vpack.c.b16 %v862, %v861
  %v1005 = vpack.c.b16 %v864, %v863
  %v1006 = vpack.c.b16 %v866, %v865
  %v1007 = vpack.c.b16 %v868, %v867
  %v1008 = vpack.c.b16 %v870, %v869
  %v1009 = vpack.c.b16 %v872, %v871
  %v1010 = vpack.c.b16 %v874, %v873
  %v1011 = vpack.c.b16 %v876, %v875
  %v1012 = vpack.c.b16 %v878, %v877
  %v1013 = vpack.c.b16 %v880, %v879
  %v1014 = vpack.c.b16 %v882, %v881
  %v1015 = vpack.c.b16 %v884, %v883
  %v1016 = vpack.c.b16 %v886, %v885
  %v1017 = vpack.c.b16 %v888, %v887
  %v1018 = vpack.c.b16 %v890, %v889
  %1147 = vmatprep.subr.bf16.mxu0 0
  %1148 = vmatpush1.bf16.msra.mxu0 %v891
  %1149 = vmatprep.subr.bf16.mxu0 0
  %1150 = vmatpush1.bf16.msra.mxu0 %v892
  %1151 = vmatprep.subr.bf16.mxu0 0
  %1152 = vmatpush1.bf16.msra.mxu0 %v893
  %1153 = vmatprep.subr.bf16.mxu0 0
  %1154 = vmatpush1.bf16.msra.mxu0 %v894
  %1155 = vmatprep.subr.bf16.mxu0 0
  %1156 = vmatpush1.bf16.msra.mxu0 %v895
  %1157 = vmatprep.subr.bf16.mxu0 0
  %1158 = vmatpush1.bf16.msra.mxu0 %v896
  %1159 = vmatprep.subr.bf16.mxu0 0
  %1160 = vmatpush1.bf16.msra.mxu0 %v897
  %1161 = vmatprep.subr.bf16.mxu0 0
  %1162 = vmatpush1.bf16.msra.mxu0 %v898
  %1163 = vmatprep.subr.bf16.mxu0 0
  %1164 = vmatpush1.bf16.msra.mxu0 %v899
  %1165 = vmatprep.subr.bf16.mxu0 0
  %1166 = vmatpush1.bf16.msra.mxu0 %v900
  %1167 = vmatprep.subr.bf16.mxu0 0
  %1168 = vmatpush1.bf16.msra.mxu0 %v901
  %1169 = vmatprep.subr.bf16.mxu0 0
  %1170 = vmatpush1.bf16.msra.mxu0 %v902
  %1171 = vmatprep.subr.bf16.mxu0 0
  %1172 = vmatpush1.bf16.msra.mxu0 %v903
  %1173 = vmatprep.subr.bf16.mxu0 0
  %1174 = vmatpush1.bf16.msra.mxu0 %v904
  %1175 = vmatprep.subr.bf16.mxu0 0
  %1176 = vmatpush1.bf16.msra.mxu0 %v905
  %1177 = vmatprep.subr.bf16.mxu0 0
  %1178 = vmatpush1.bf16.msra.mxu0 %v906
  %1179 = vmatprep.mubr.bf16.mxu0 %v348
  %1180 = vmatmul.mubr.bf16.gmra.mrb[0].mxu0 %v347
  %v1181 = vpop.f32.mrb[0].mxu0
  %v1182 = vadd.f32 %v292, %v1181
  %v1183 = vpop.f32.mrb[0].mxu0
  %v1184 = vpop.f32.mrb[0].mxu0
  %v1185 = vadd.f32 %v297, %v1184
  %v1186 = vpop.f32.mrb[0].mxu0
  %1187 = vdwg.mxu0
  %1188 = vmatprep.subr.bf16.mxu0 0
  %1189 = vmatpush1.bf16.msra.mxu0 %v907
  %1190 = vmatprep.subr.bf16.mxu0 0
  %1191 = vmatpush1.bf16.msra.mxu0 %v908
  %1192 = vmatprep.subr.bf16.mxu0 0
  %1193 = vmatpush1.bf16.msra.mxu0 %v909
  %1194 = vmatprep.subr.bf16.mxu0 0
  %1195 = vmatpush1.bf16.msra.mxu0 %v910
  %1196 = vmatprep.subr.bf16.mxu0 0
  %1197 = vmatpush1.bf16.msra.mxu0 %v911
  %1198 = vmatprep.subr.bf16.mxu0 0
  %1199 = vmatpush1.bf16.msra.mxu0 %v912
  %1200 = vmatprep.subr.bf16.mxu0 0
  %1201 = vmatpush1.bf16.msra.mxu0 %v913
  %1202 = vmatprep.subr.bf16.mxu0 0
  %1203 = vmatpush1.bf16.msra.mxu0 %v914
  %1204 = vmatprep.subr.bf16.mxu0 0
  %1205 = vmatpush1.bf16.msra.mxu0 %v915
  %1206 = vmatprep.subr.bf16.mxu0 0
  %1207 = vmatpush1.bf16.msra.mxu0 %v916
  %1208 = vmatprep.subr.bf16.mxu0 0
  %1209 = vmatpush1.bf16.msra.mxu0 %v917
  %1210 = vmatprep.subr.bf16.mxu0 0
  %1211 = vmatpush1.bf16.msra.mxu0 %v918
  %1212 = vmatprep.subr.bf16.mxu0 0
  %1213 = vmatpush1.bf16.msra.mxu0 %v919
  %1214 = vmatprep.subr.bf16.mxu0 0
  %1215 = vmatpush1.bf16.msra.mxu0 %v920
  %1216 = vmatprep.subr.bf16.mxu0 0
  %1217 = vmatpush1.bf16.msra.mxu0 %v921
  %1218 = vmatprep.subr.bf16.mxu0 0
  %1219 = vmatpush1.bf16.msra.mxu0 %v922
  %1220 = vmatprep.mubr.bf16.mxu0 %v350
  %1221 = vmatmul.mubr.bf16.gmra.mrb[0].mxu0 %v349
  %v1222 = vpop.f32.mrb[0].mxu0
  %v1223 = vadd.f32 %v1182, %v1222
  %v1224 = vpop.f32.mrb[0].mxu0
  %v1225 = vpop.f32.mrb[0].mxu0
  %v1226 = vadd.f32 %v1185, %v1225
  %v1227 = vpop.f32.mrb[0].mxu0
  %1228 = vdwg.mxu0
  %1229 = vmatprep.subr.bf16.mxu0 0
  %1230 = vmatpush1.bf16.msra.mxu0 %v923
  %1231 = vmatprep.subr.bf16.mxu0 0
  %1232 = vmatpush1.bf16.msra.mxu0 %v924
  %1233 = vmatprep.subr.bf16.mxu0 0
  %1234 = vmatpush1.bf16.msra.mxu0 %v925
  %1235 = vmatprep.subr.bf16.mxu0 0
  %1236 = vmatpush1.bf16.msra.mxu0 %v926
  %1237 = vmatprep.subr.bf16.mxu0 0
  %1238 = vmatpush1.bf16.msra.mxu0 %v927
  %1239 = vmatprep.subr.bf16.mxu0 0
  %1240 = vmatpush1.bf16.msra.mxu0 %v928
  %1241 = vmatprep.subr.bf16.mxu0 0
  %1242 = vmatpush1.bf16.msra.mxu0 %v929
  %1243 = vmatprep.subr.bf16.mxu0 0
  %1244 = vmatpush1.bf16.msra.mxu0 %v930
  %1245 = vmatprep.subr.bf16.mxu0 0
  %1246 = vmatpush1.bf16.msra.mxu0 %v931
  %1247 = vmatprep.subr.bf16.mxu0 0
  %1248 = vmatpush1.bf16.msra.mxu0 %v932
  %1249 = vmatprep.subr.bf16.mxu0 0
  %1250 = vmatpush1.bf16.msra.mxu0 %v933
  %1251 = vmatprep.subr.bf16.mxu0 0
  %1252 = vmatpush1.bf16.msra.mxu0 %v934
  %1253 = vmatprep.subr.bf16.mxu0 0
  %1254 = vmatpush1.bf16.msra.mxu0 %v935
  %1255 = vmatprep.subr.bf16.mxu0 0
  %1256 = vmatpush1.bf16.msra.mxu0 %v936
  %1257 = vmatprep.subr.bf16.mxu0 0
  %1258 = vmatpush1.bf16.msra.mxu0 %v937
  %1259 = vmatprep.subr.bf16.mxu0 0
  %1260 = vmatpush1.bf16.msra.mxu0 %v938
  %1261 = vmatprep.mubr.bf16.mxu0 %v352
  %1262 = vmatmul.mubr.bf16.gmra.mrb[0].mxu0 %v351
  %v1263 = vpop.f32.mrb[0].mxu0
  %v1264 = vadd.f32 %v1223, %v1263
  %v1265 = vpop.f32.mrb[0].mxu0
  %v1266 = vpop.f32.mrb[0].mxu0
  %v1267 = vadd.f32 %v1226, %v1266
  %v1268 = vpop.f32.mrb[0].mxu0
  %1269 = vdwg.mxu0
  %1270 = vmatprep.subr.bf16.mxu0 0
  %1271 = vmatpush1.bf16.msra.mxu0 %v939
  %1272 = vmatprep.subr.bf16.mxu0 0
  %1273 = vmatpush1.bf16.msra.mxu0 %v940
  %1274 = vmatprep.subr.bf16.mxu0 0
  %1275 = vmatpush1.bf16.msra.mxu0 %v941
  %1276 = vmatprep.subr.bf16.mxu0 0
  %1277 = vmatpush1.bf16.msra.mxu0 %v942
  %1278 = vmatprep.subr.bf16.mxu0 0
  %1279 = vmatpush1.bf16.msra.mxu0 %v943
  %1280 = vmatprep.subr.bf16.mxu0 0
  %1281 = vmatpush1.bf16.msra.mxu0 %v944
  %1282 = vmatprep.subr.bf16.mxu0 0
  %1283 = vmatpush1.bf16.msra.mxu0 %v945
  %1284 = vmatprep.subr.bf16.mxu0 0
  %1285 = vmatpush1.bf16.msra.mxu0 %v946
  %1286 = vmatprep.subr.bf16.mxu0 0
  %1287 = vmatpush1.bf16.msra.mxu0 %v947
  %1288 = vmatprep.subr.bf16.mxu0 0
  %1289 = vmatpush1.bf16.msra.mxu0 %v948
  %1290 = vmatprep.subr.bf16.mxu0 0
  %1291 = vmatpush1.bf16.msra.mxu0 %v949
  %1292 = vmatprep.subr.bf16.mxu0 0
  %1293 = vmatpush1.bf16.msra.mxu0 %v950
  %1294 = vmatprep.subr.bf16.mxu0 0
  %1295 = vmatpush1.bf16.msra.mxu0 %v951
  %1296 = vmatprep.subr.bf16.mxu0 0
  %1297 = vmatpush1.bf16.msra.mxu0 %v952
  %1298 = vmatprep.subr.bf16.mxu0 0
  %1299 = vmatpush1.bf16.msra.mxu0 %v953
  %1300 = vmatprep.subr.bf16.mxu0 0
  %1301 = vmatpush1.bf16.msra.mxu0 %v954
  %1302 = vmatprep.mubr.bf16.mxu0 %v354
  %1303 = vmatmul.mubr.bf16.gmra.mrb[0].mxu0 %v353
  %v1304 = vpop.f32.mrb[0].mxu0
  %v1305 = vadd.f32 %v1264, %v1304
  %v1306 = vpop.f32.mrb[0].mxu0
  %v1307 = vpop.f32.mrb[0].mxu0
  %v1308 = vadd.f32 %v1267, %v1307
  %v1309 = vpop.f32.mrb[0].mxu0
  %1310 = vdwg.mxu0
  %1311 = vmatprep.subr.bf16.mxu0 0
  %1312 = vmatpush1.bf16.msra.mxu0 %v955
  %1313 = vmatprep.subr.bf16.mxu0 0
  %1314 = vmatpush1.bf16.msra.mxu0 %v956
  %1315 = vmatprep.subr.bf16.mxu0 0
  %1316 = vmatpush1.bf16.msra.mxu0 %v957
  %1317 = vmatprep.subr.bf16.mxu0 0
  %1318 = vmatpush1.bf16.msra.mxu0 %v958
  %1319 = vmatprep.subr.bf16.mxu0 0
  %1320 = vmatpush1.bf16.msra.mxu0 %v959
  %1321 = vmatprep.subr.bf16.mxu0 0
  %1322 = vmatpush1.bf16.msra.mxu0 %v960
  %1323 = vmatprep.subr.bf16.mxu0 0
  %1324 = vmatpush1.bf16.msra.mxu0 %v961
  %1325 = vmatprep.subr.bf16.mxu0 0
  %1326 = vmatpush1.bf16.msra.mxu0 %v962
  %1327 = vmatprep.subr.bf16.mxu0 0
  %1328 = vmatpush1.bf16.msra.mxu0 %v963
  %1329 = vmatprep.subr.bf16.mxu0 0
  %1330 = vmatpush1.bf16.msra.mxu0 %v964
  %1331 = vmatprep.subr.bf16.mxu0 0
  %1332 = vmatpush1.bf16.msra.mxu0 %v965
  %1333 = vmatprep.subr.bf16.mxu0 0
  %1334 = vmatpush1.bf16.msra.mxu0 %v966
  %1335 = vmatprep.subr.bf16.mxu0 0
  %1336 = vmatpush1.bf16.msra.mxu0 %v967
  %1337 = vmatprep.subr.bf16.mxu0 0
  %1338 = vmatpush1.bf16.msra.mxu0 %v968
  %1339 = vmatprep.subr.bf16.mxu0 0
  %1340 = vmatpush1.bf16.msra.mxu0 %v969
  %1341 = vmatprep.subr.bf16.mxu0 0
  %1342 = vmatpush1.bf16.msra.mxu0 %v970
  %1343 = vmatprep.mubr.bf16.mxu0 %v356
  %1344 = vmatmul.mubr.bf16.gmra.mrb[0].mxu0 %v355
  %v1345 = vpop.f32.mrb[0].mxu0
  %v1346 = vadd.f32 %v1305, %v1345
  %v1347 = vpop.f32.mrb[0].mxu0
  %v1348 = vpop.f32.mrb[0].mxu0
  %v1349 = vadd.f32 %v1308, %v1348
  %v1350 = vpop.f32.mrb[0].mxu0
  %1351 = vdwg.mxu0
  %1352 = vmatprep.subr.bf16.mxu0 0
  %1353 = vmatpush1.bf16.msra.mxu0 %v971
  %1354 = vmatprep.subr.bf16.mxu0 0
  %1355 = vmatpush1.bf16.msra.mxu0 %v972
  %1356 = vmatprep.subr.bf16.mxu0 0
  %1357 = vmatpush1.bf16.msra.mxu0 %v973
  %1358 = vmatprep.subr.bf16.mxu0 0
  %1359 = vmatpush1.bf16.msra.mxu0 %v974
  %1360 = vmatprep.subr.bf16.mxu0 0
  %1361 = vmatpush1.bf16.msra.mxu0 %v975
  %1362 = vmatprep.subr.bf16.mxu0 0
  %1363 = vmatpush1.bf16.msra.mxu0 %v976
  %1364 = vmatprep.subr.bf16.mxu0 0
  %1365 = vmatpush1.bf16.msra.mxu0 %v977
  %1366 = vmatprep.subr.bf16.mxu0 0
  %1367 = vmatpush1.bf16.msra.mxu0 %v978
  %1368 = vmatprep.subr.bf16.mxu0 0
  %1369 = vmatpush1.bf16.msra.mxu0 %v979
  %1370 = vmatprep.subr.bf16.mxu0 0
  %1371 = vmatpush1.bf16.msra.mxu0 %v980
  %1372 = vmatprep.subr.bf16.mxu0 0
  %1373 = vmatpush1.bf16.msra.mxu0 %v981
  %1374 = vmatprep.subr.bf16.mxu0 0
  %1375 = vmatpush1.bf16.msra.mxu0 %v982
  %1376 = vmatprep.subr.bf16.mxu0 0
  %1377 = vmatpush1.bf16.msra.mxu0 %v983
  %1378 = vmatprep.subr.bf16.mxu0 0
  %1379 = vmatpush1.bf16.msra.mxu0 %v984
  %1380 = vmatprep.subr.bf16.mxu0 0
  %1381 = vmatpush1.bf16.msra.mxu0 %v985
  %1382 = vmatprep.subr.bf16.mxu0 0
  %1383 = vmatpush1.bf16.msra.mxu0 %v986
  %1384 = vmatprep.mubr.bf16.mxu0 %v358
  %1385 = vmatmul.mubr.bf16.gmra.mrb[0].mxu0 %v357
  %v1386 = vpop.f32.mrb[0].mxu0
  %v1387 = vadd.f32 %v1346, %v1386
  %v1388 = vpop.f32.mrb[0].mxu0
  %v1389 = vpop.f32.mrb[0].mxu0
  %v1390 = vadd.f32 %v1349, %v1389
  %v1391 = vpop.f32.mrb[0].mxu0
  %1392 = vdwg.mxu0
  %1393 = vmatprep.subr.bf16.mxu0 0
  %1394 = vmatpush1.bf16.msra.mxu0 %v987
  %1395 = vmatprep.subr.bf16.mxu0 0
  %1396 = vmatpush1.bf16.msra.mxu0 %v988
  %1397 = vmatprep.subr.bf16.mxu0 0
  %1398 = vmatpush1.bf16.msra.mxu0 %v989
  %1399 = vmatprep.subr.bf16.mxu0 0
  %1400 = vmatpush1.bf16.msra.mxu0 %v990
  %1401 = vmatprep.subr.bf16.mxu0 0
  %1402 = vmatpush1.bf16.msra.mxu0 %v991
  %1403 = vmatprep.subr.bf16.mxu0 0
  %1404 = vmatpush1.bf16.msra.mxu0 %v992
  %1405 = vmatprep.subr.bf16.mxu0 0
  %1406 = vmatpush1.bf16.msra.mxu0 %v993
  %1407 = vmatprep.subr.bf16.mxu0 0
  %1408 = vmatpush1.bf16.msra.mxu0 %v994
  %1409 = vmatprep.subr.bf16.mxu0 0
  %1410 = vmatpush1.bf16.msra.mxu0 %v995
  %1411 = vmatprep.subr.bf16.mxu0 0
  %1412 = vmatpush1.bf16.msra.mxu0 %v996
  %1413 = vmatprep.subr.bf16.mxu0 0
  %1414 = vmatpush1.bf16.msra.mxu0 %v997
  %1415 = vmatprep.subr.bf16.mxu0 0
  %1416 = vmatpush1.bf16.msra.mxu0 %v998
  %1417 = vmatprep.subr.bf16.mxu0 0
  %1418 = vmatpush1.bf16.msra.mxu0 %v999
  %1419 = vmatprep.subr.bf16.mxu0 0
  %1420 = vmatpush1.bf16.msra.mxu0 %v1000
  %1421 = vmatprep.subr.bf16.mxu0 0
  %1422 = vmatpush1.bf16.msra.mxu0 %v1001
  %1423 = vmatprep.subr.bf16.mxu0 0
  %1424 = vmatpush1.bf16.msra.mxu0 %v1002
  %1425 = vmatprep.mubr.bf16.mxu0 %v360
  %1426 = vmatmul.mubr.bf16.gmra.mrb[0].mxu0 %v359
  %v1427 = vpop.f32.mrb[0].mxu0
  %v1428 = vadd.f32 %v1387, %v1427
  %v1429 = vpop.f32.mrb[0].mxu0
  %v1430 = vpop.f32.mrb[0].mxu0
  %v1431 = vadd.f32 %v1390, %v1430
  %v1432 = vpop.f32.mrb[0].mxu0
  %1433 = vdwg.mxu0
  %1434 = vmatprep.subr.bf16.mxu0 0
  %1435 = vmatpush1.bf16.msra.mxu0 %v1003
  %1436 = vmatprep.subr.bf16.mxu0 0
  %1437 = vmatpush1.bf16.msra.mxu0 %v1004
  %1438 = vmatprep.subr.bf16.mxu0 0
  %1439 = vmatpush1.bf16.msra.mxu0 %v1005
  %1440 = vmatprep.subr.bf16.mxu0 0
  %1441 = vmatpush1.bf16.msra.mxu0 %v1006
  %1442 = vmatprep.subr.bf16.mxu0 0
  %1443 = vmatpush1.bf16.msra.mxu0 %v1007
  %1444 = vmatprep.subr.bf16.mxu0 0
  %1445 = vmatpush1.bf16.msra.mxu0 %v1008
  %1446 = vmatprep.subr.bf16.mxu0 0
  %1447 = vmatpush1.bf16.msra.mxu0 %v1009
  %1448 = vmatprep.subr.bf16.mxu0 0
  %1449 = vmatpush1.bf16.msra.mxu0 %v1010
  %1450 = vmatprep.subr.bf16.mxu0 0
  %1451 = vmatpush1.bf16.msra.mxu0 %v1011
  %1452 = vmatprep.subr.bf16.mxu0 0
  %1453 = vmatpush1.bf16.msra.mxu0 %v1012
  %1454 = vmatprep.subr.bf16.mxu0 0
  %1455 = vmatpush1.bf16.msra.mxu0 %v1013
  %1456 = vmatprep.subr.bf16.mxu0 0
  %1457 = vmatpush1.bf16.msra.mxu0 %v1014
  %1458 = vmatprep.subr.bf16.mxu0 0
  %1459 = vmatpush1.bf16.msra.mxu0 %v1015
  %1460 = vmatprep.subr.bf16.mxu0 0
  %1461 = vmatpush1.bf16.msra.mxu0 %v1016
  %1462 = vmatprep.subr.bf16.mxu0 0
  %1463 = vmatpush1.bf16.msra.mxu0 %v1017
  %1464 = vmatprep.subr.bf16.mxu0 0
  %1465 = vmatpush1.bf16.msra.mxu0 %v1018
  %1466 = vmatprep.mubr.bf16.mxu0 %v362
  %1467 = vmatmul.mubr.bf16.gmra.mrb[0].mxu0 %v361
  %v1468 = vpop.f32.mrb[0].mxu0
  %v1469 = vadd.f32 %v1428, %v1468
  %v1470 = vpop.f32.mrb[0].mxu0
  %v1471 = vpop.f32.mrb[0].mxu0
  %v1472 = vadd.f32 %v1431, %v1471
  %v1473 = vpop.f32.mrb[0].mxu0
  %1474 = vdwg.mxu0
  %v1475 = vmax.f32 %v1469, 0.0
  %v1476 = vmax.f32 %v1472, 0.0
  %v1477 = vpack.c.bf16 %v1476, %v1475
  %v1479 = vunpack.c.l.b16 %v1477
  %v1480 = vunpack.c.h.b16 %v1477
  %v1481 = vpack.c.b16 %v1479, %v1479
  %v1482 = vpack.c.b16 %v1480, %v1480
  %vm1485 = vcmask 142336
  %1486 = vst.msk [vmem:[%s3] sm:$0xf] %vm1485, %v1481
  %1487 = vst.msk [vmem:[%s3 + $0x4] sm:$0xf] %vm1485, %v1482
  // Predicated region
  $region14: #{forward.9} parent=0 // pred_check
    _
  $region15: #{forward.9} parent=0 // pred_check_branch
    %1489 = sbr.rel (0) target = $region17
  $region16: #{forward.9} parent=0 // pred_region
    _
  $region17: #{forward.9} parent=0 // pred_fallthru
    _
  // Predicated region
  $region18: #{forward.9} parent=0 // pred_check
    _
  $region19: #{forward.9} parent=0 // pred_check_branch
    %1491 = sbr.rel (0) target = $region21
  $region20: #{forward.9} parent=0 // pred_region
    _
  $region21: #{forward.9} parent=0 // pred_fallthru
    _

// kernel: forward.10
$region0: #{forward.10}
  #allocation0 [shape = 'u32[]', space=smem, size = 0x4, offset = 0x4, fixed_abs, tag = 'smem constant byte address 0x4 - core index']
  #allocation1 [shape = 'u32[144,128]{1,0:T(1,128)}', space=vmem, size = 0x12000, scoped, tag = 'internal scratch']
  %s0 = inlined_call_operand.vmem [shape: bf16[4,64,2], index: 0, kind: input, shape index: {}]
  %s1 = inlined_call_operand.vmem [shape: f32[4,2], index: 1, kind: input, shape index: {}]
  %s2 = inlined_call_operand.vmem [shape: bf16[8,64], index: 2, kind: input, shape index: {}]
  %s3 = inlined_call_operand.vmem [shape: f32[8,1], index: 3, kind: input, shape index: {}]
  %s4 = inlined_call_operand.vmem [shape: f32[4,4,8], index: 4, kind: input, shape index: {}]
  %s5 = inlined_call_operand.vmem [shape: f32[4,1], index: 5, kind: input, shape index: {}]
  %s6 = inlined_call_operand.vmem [shape: f32[4,4,8], index: 6, kind: input, shape index: {}]
  %s7 = inlined_call_operand.vmem [shape: f32[4,1], index: 7, kind: input, shape index: {}]
  %s8 = inlined_call_operand.vmem [shape: f32[32,4], index: 8, kind: input, shape index: {}]
  %s9 = inlined_call_operand.vmem [shape: f32[32,1], index: 9, kind: input, shape index: {}]
  %s10 = inlined_call_operand.vmem [shape: f32[4,16,8], index: 10, kind: input, shape index: {}]
  %s11 = inlined_call_operand.vmem [shape: f32[16,1], index: 11, kind: input, shape index: {}]
  %s12 = inlined_call_operand.vmem [shape: f32[4,2], index: 12, kind: output, shape index: {0}]
  %s13 = inlined_call_operand.vmem [shape: f32[4,2], index: 13, kind: output, shape index: {1}]
  %s14 = inlined_call_operand.vmem [shape: bf16[4,16,2], index: 14, kind: output, shape index: {2}]
  %15 = xla_tuple %s12, %s13, %s14
  %s16 = sld [smem:[#allocation0]]
  $region74: #{forward.10} parent=0
    _
  %s18 = ssub.s32 1, %s16
  %s19 = scalar_select 0, %s18, %s16
  // Predicated region
  $region2: #{forward.10} parent=0 // pred_check
    _
  $region3: #{forward.10} parent=0 // pred_check_branch
    %21 = sbr.rel (0) target = $region5
  $region4: #{forward.10} parent=0 // pred_region
    _
  $region5: #{forward.10} parent=0 // pred_fallthru
    _
  // Predicated region
  $region6: #{forward.10} parent=0 // pred_check
    _
  $region7: #{forward.10} parent=0 // pred_check_branch
    %23 = sbr.rel (0) target = $region9
  $region8: #{forward.10} parent=0 // pred_region
    _
  $region9: #{forward.10} parent=0 // pred_fallthru
    _
  // Predicated region
  $region10: #{forward.10} parent=0 // pred_check
    _
  $region11: #{forward.10} parent=0 // pred_check_branch
    %25 = sbr.rel (0) target = $region13
  $region12: #{forward.10} parent=0 // pred_region
    _
  $region13: #{forward.10} parent=0 // pred_fallthru
    _
  // Predicated region
  $region14: #{forward.10} parent=0 // pred_check
    _
  $region15: #{forward.10} parent=0 // pred_check_branch
    %27 = sbr.rel (0) target = $region17
  $region16: #{forward.10} parent=0 // pred_region
    _
  $region17: #{forward.10} parent=0 // pred_fallthru
    _
  // Predicated region
  $region18: #{forward.10} parent=0 // pred_check
    _
  $region19: #{forward.10} parent=0 // pred_check_branch
    %29 = sbr.rel (0) target = $region21
  $region20: #{forward.10} parent=0 // pred_region
    _
  $region21: #{forward.10} parent=0 // pred_fallthru
    _
  // Predicated region
  $region22: #{forward.10} parent=0 // pred_check
    _
  $region23: #{forward.10} parent=0 // pred_check_branch
    %31 = sbr.rel (0) target = $region25
  $region24: #{forward.10} parent=0 // pred_region
    _
  $region25: #{forward.10} parent=0 // pred_fallthru
    _
  // Predicated region
  $region26: #{forward.10} parent=0 // pred_check
    _
  $region27: #{forward.10} parent=0 // pred_check_branch
    %33 = sbr.rel (0) target = $region29
  $region28: #{forward.10} parent=0 // pred_region
    _
  $region29: #{forward.10} parent=0 // pred_fallthru
    _
  // Predicated region
  $region30: #{forward.10} parent=0 // pred_check
    _
  $region31: #{forward.10} parent=0 // pred_check_branch
    %35 = sbr.rel (0) target = $region33
  $region32: #{forward.10} parent=0 // pred_region
    _
  $region33: #{forward.10} parent=0 // pred_fallthru
    _
  // Predicated region
  $region34: #{forward.10} parent=0 // pred_check
    _
  $region35: #{forward.10} parent=0 // pred_check_branch
    %37 = sbr.rel (0) target = $region37
  $region36: #{forward.10} parent=0 // pred_region
    _
  $region37: #{forward.10} parent=0 // pred_fallthru
    _
  // Predicated region
  $region38: #{forward.10} parent=0 // pred_check
    _
  $region39: #{forward.10} parent=0 // pred_check_branch
    %39 = sbr.rel (0) target = $region41
  $region40: #{forward.10} parent=0 // pred_region
    _
  $region41: #{forward.10} parent=0 // pred_fallthru
    _
  // Predicated region
  $region42: #{forward.10} parent=0 // pred_check
    _
  $region43: #{forward.10} parent=0 // pred_check_branch
    %41 = sbr.rel (0) target = $region45
  $region44: #{forward.10} parent=0 // pred_region
    _
  $region45: #{forward.10} parent=0 // pred_fallthru
    _
  // Predicated region
  $region46: #{forward.10} parent=0 // pred_check
    _
  $region47: #{forward.10} parent=0 // pred_check_branch
    %43 = sbr.rel (0) target = $region49
  $region48: #{forward.10} parent=0 // pred_region
    _
  $region49: #{forward.10} parent=0 // pred_fallthru
    _
  %v45 = vld [vmem:[%s2] sm:$0xf]
  %v46 = vld [vmem:[%s0] sm:$0xf]
  %v47 = vld [vmem:[%s0 + $0x4] sm:$0xf]
  %v48 = vld [vmem:[%s0 + $0x8] sm:$0xf]
  %v49 = vld [vmem:[%s0 + $0xc] sm:$0xf]
  %v50 = vld [vmem:[%s0 + $0x10] sm:$0xf]
  %v51 = vld [vmem:[%s0 + $0x14] sm:$0xf]
  %v52 = vld [vmem:[%s0 + $0x18] sm:$0xf]
  %v53 = vld [vmem:[%s0 + $0x1c] sm:$0xf]
  %v54 = vld [vmem:[%s3] sm:$0xff]
  %56 = vset.pattern.permute.xlu0 0
  %57 = vperm.xlu0 %56, %v54
  %v58 = vpop.permute.xlu0 %57
  %v68 = vunpack.c.l.b16 %v46
  %v69 = vunpack.c.l.b16 %v47
  %v70 = vunpack.c.l.b16 %v48
  %v71 = vunpack.c.l.b16 %v49
  %v72 = vunpack.c.l.b16 %v50
  %v73 = vunpack.c.l.b16 %v51
  %v74 = vunpack.c.l.b16 %v52
  %v75 = vunpack.c.l.b16 %v53
  %v76 = vpack.c.b16 %v69, %v68
  %v77 = vpack.c.b16 %v71, %v70
  %v78 = vpack.c.b16 %v73, %v72
  %v79 = vpack.c.b16 %v75, %v74
  %vm84 = vcmask 523264
  %v86 = vsel %vm84, %v45, 0
  %88 = vmatprep.subr.bf16.mxu0 0
  %89 = vmatpush1.bf16.msra.mxu0 %v76
  %90 = vmatprep.subr.bf16.mxu0 0
  %91 = vmatpush1.bf16.msra.mxu0 %v77
  %92 = vmatprep.subr.bf16.mxu0 0
  %93 = vmatpush1.bf16.msra.mxu0 %v78
  %94 = vmatprep.subr.bf16.mxu0 0
  %95 = vmatpush1.bf16.msra.mxu0 %v79
  %96 = vmatprep.subr.bf16.mxu0 0
  %97 = vmatpush1.bf16.msra.mxu0 0
  %98 = vmatprep.subr.bf16.mxu0 0
  %99 = vmatpush1.bf16.msra.mxu0 0
  %100 = vmatprep.subr.bf16.mxu0 0
  %101 = vmatpush1.bf16.msra.mxu0 0
  %102 = vmatprep.subr.bf16.mxu0 0
  %103 = vmatpush1.bf16.msra.mxu0 0
  %104 = vmatprep.subr.bf16.mxu0 0
  %105 = vmatpush1.bf16.msra.mxu0 0
  %106 = vmatprep.subr.bf16.mxu0 0
  %107 = vmatpush1.bf16.msra.mxu0 0
  %108 = vmatprep.subr.bf16.mxu0 0
  %109 = vmatpush1.bf16.msra.mxu0 0
  %110 = vmatprep.subr.bf16.mxu0 0
  %111 = vmatpush1.bf16.msra.mxu0 0
  %112 = vmatprep.subr.bf16.mxu0 0
  %113 = vmatpush1.bf16.msra.mxu0 0
  %114 = vmatprep.subr.bf16.mxu0 0
  %115 = vmatpush1.bf16.msra.mxu0 0
  %116 = vmatprep.subr.bf16.mxu0 0
  %117 = vmatpush1.bf16.msra.mxu0 0
  %118 = vmatprep.subr.bf16.mxu0 0
  %119 = vmatpush1.bf16.msra.mxu0 0
  %120 = vmatprep.mubr.bf16.mxu0 0
  %121 = vmatmul.mubr.bf16.gmra.mrb[0].mxu0 %v86
  %v122 = vpop.f32.mrb[0].mxu0
  %v123 = vadd.f32 %v58, %v122
  %v124 = vpop.f32.mrb[0].mxu0
  %v125 = vpop.f32.mrb[0].mxu0
  %v126 = vpop.f32.mrb[0].mxu0
  %127 = vdwg.mxu0
  %v128 = vld [vmem:[%s4] sm:$0xf]
  %v129 = vld [vmem:[%s6] sm:$0xf]
  %s130 = scalar_lea.vmem %s0, 32
  %v131 = vld [vmem:[%s130] sm:$0xf]
  %v132 = vld [vmem:[%s130 + $0x4] sm:$0xf]
  %v133 = vld [vmem:[%s130 + $0x8] sm:$0xf]
  %v134 = vld [vmem:[%s130 + $0xc] sm:$0xf]
  %v135 = vld [vmem:[%s130 + $0x10] sm:$0xf]
  %v136 = vld [vmem:[%s130 + $0x14] sm:$0xf]
  %v137 = vld [vmem:[%s130 + $0x18] sm:$0xf]
  %v138 = vld [vmem:[%s130 + $0x1c] sm:$0xf]
  %v147 = vunpack.c.l.b16 %v131
  %v148 = vunpack.c.l.b16 %v132
  %v149 = vunpack.c.l.b16 %v133
  %v150 = vunpack.c.l.b16 %v134
  %v151 = vunpack.c.l.b16 %v135
  %v152 = vunpack.c.l.b16 %v136
  %v153 = vunpack.c.l.b16 %v137
  %v154 = vunpack.c.l.b16 %v138
  %v155 = vpack.c.b16 %v148, %v147
  %v156 = vpack.c.b16 %v150, %v149
  %v157 = vpack.c.b16 %v152, %v151
  %v158 = vpack.c.b16 %v154, %v153
  %163 = vmatprep.subr.bf16.mxu0 0
  %164 = vmatpush1.bf16.msra.mxu0 %v155
  %165 = vmatprep.subr.bf16.mxu0 0
  %166 = vmatpush1.bf16.msra.mxu0 %v156
  %167 = vmatprep.subr.bf16.mxu0 0
  %168 = vmatpush1.bf16.msra.mxu0 %v157
  %169 = vmatprep.subr.bf16.mxu0 0
  %170 = vmatpush1.bf16.msra.mxu0 %v158
  %171 = vmatprep.subr.bf16.mxu0 0
  %172 = vmatpush1.bf16.msra.mxu0 0
  %173 = vmatprep.subr.bf16.mxu0 0
  %174 = vmatpush1.bf16.msra.mxu0 0
  %175 = vmatprep.subr.bf16.mxu0 0
  %176 = vmatpush1.bf16.msra.mxu0 0
  %177 = vmatprep.subr.bf16.mxu0 0
  %178 = vmatpush1.bf16.msra.mxu0 0
  %179 = vmatprep.subr.bf16.mxu0 0
  %180 = vmatpush1.bf16.msra.mxu0 0
  %181 = vmatprep.subr.bf16.mxu0 0
  %182 = vmatpush1.bf16.msra.mxu0 0
  %183 = vmatprep.subr.bf16.mxu0 0
  %184 = vmatpush1.bf16.msra.mxu0 0
  %185 = vmatprep.subr.bf16.mxu0 0
  %186 = vmatpush1.bf16.msra.mxu0 0
  %187 = vmatprep.subr.bf16.mxu0 0
  %188 = vmatpush1.bf16.msra.mxu0 0
  %189 = vmatprep.subr.bf16.mxu0 0
  %190 = vmatpush1.bf16.msra.mxu0 0
  %191 = vmatprep.subr.bf16.mxu0 0
  %192 = vmatpush1.bf16.msra.mxu0 0
  %193 = vmatprep.subr.bf16.mxu0 0
  %194 = vmatpush1.bf16.msra.mxu0 0
  %195 = vmatprep.mubr.bf16.mxu0 0
  %196 = vmatmul.mubr.bf16.gmra.mrb[0].mxu0 %v86
  %v197 = vpop.f32.mrb[0].mxu0
  %v198 = vadd.f32 %v58, %v197
  %v199 = vpop.f32.mrb[0].mxu0
  %v200 = vpop.f32.mrb[0].mxu0
  %v201 = vpop.f32.mrb[0].mxu0
  %202 = vdwg.mxu0
  %s203 = scalar_lea.vmem %s4, 4
  %v204 = vld [vmem:[%s203] sm:$0xf]
  %vm205 = vcmask 64512
  %v207 = vsel %vm205, %v204, 0
  %209 = vmatprep.subr.mxu0 0.0
  %210 = vmatpush1.msra.mxu0 %v198
  %211 = vmatprep.subr.mxu0 0.0
  %212 = vmatpush1.msra.mxu0 0.0
  %213 = vmatprep.subr.mxu0 0.0
  %214 = vmatpush1.msra.mxu0 0.0
  %215 = vmatprep.subr.mxu0 0.0
  %216 = vmatpush1.msra.mxu0 0.0
  %217 = vmatprep.subr.mxu0 0.0
  %218 = vmatpush1.msra.mxu0 0.0
  %219 = vmatprep.subr.mxu0 0.0
  %220 = vmatpush1.msra.mxu0 0.0
  %221 = vmatprep.subr.mxu0 0.0
  %222 = vmatpush1.msra.mxu0 0.0
  %223 = vmatprep.subr.mxu0 0.0
  %224 = vmatpush1.msra.mxu0 0.0
  %225 = vmatprep.subr.mxu0 0.0
  %226 = vmatpush1.msra.mxu0 0.0
  %227 = vmatprep.subr.mxu0 0.0
  %228 = vmatpush1.msra.mxu0 0.0
  %229 = vmatprep.subr.mxu0 0.0
  %230 = vmatpush1.msra.mxu0 0.0
  %231 = vmatprep.subr.mxu0 0.0
  %232 = vmatpush1.msra.mxu0 0.0
  %233 = vmatprep.subr.mxu0 0.0
  %234 = vmatpush1.msra.mxu0 0.0
  %235 = vmatprep.subr.mxu0 0.0
  %236 = vmatpush1.msra.mxu0 0.0
  %237 = vmatprep.subr.mxu0 0.0
  %238 = vmatpush1.msra.mxu0 0.0
  %239 = vmatprep.subr.mxu0 0.0
  %240 = vmatpush1.msra.mxu0 0.0
  %241 = vmatprep.subr.mxu0 0.0
  %242 = vmatpush1.msra.mxu0 0.0
  %243 = vmatprep.subr.mxu0 0.0
  %244 = vmatpush1.msra.mxu0 0.0
  %245 = vmatprep.subr.mxu0 0.0
  %246 = vmatpush1.msra.mxu0 0.0
  %247 = vmatprep.subr.mxu0 0.0
  %248 = vmatpush1.msra.mxu0 0.0
  %249 = vmatprep.subr.mxu0 0.0
  %250 = vmatpush1.msra.mxu0 0.0
  %251 = vmatprep.subr.mxu0 0.0
  %252 = vmatpush1.msra.mxu0 0.0
  %253 = vmatprep.subr.mxu0 0.0
  %254 = vmatpush1.msra.mxu0 0.0
  %255 = vmatprep.subr.mxu0 0.0
  %256 = vmatpush1.msra.mxu0 0.0
  %257 = vmatprep.subr.mxu0 0.0
  %258 = vmatpush1.msra.mxu0 0.0
  %259 = vmatprep.subr.mxu0 0.0
  %260 = vmatpush1.msra.mxu0 0.0
  %261 = vmatprep.subr.mxu0 0.0
  %262 = vmatpush1.msra.mxu0 0.0
  %263 = vmatprep.subr.mxu0 0.0
  %264 = vmatpush1.msra.mxu0 0.0
  %265 = vmatprep.subr.mxu0 0.0
  %266 = vmatpush1.msra.mxu0 0.0
  %267 = vmatprep.subr.mxu0 0.0
  %268 = vmatpush1.msra.mxu0 0.0
  %269 = vmatprep.subr.mxu0 0.0
  %270 = vmatpush1.msra.mxu0 0.0
  %271 = vmatprep.subr.mxu0 0.0
  %272 = vmatpush1.msra.mxu0 0.0
  %273 = vmatprep.mubr.f32.mxu0 0.0
  %274 = vmatmul.mubr.f32.gmra.mrb[0].mxu0 %v207
  %v275 = vpop.f32.mrb[0].mxu0
  %v276 = vadd.f32 0.0, %v275
  %v277 = vpop.f32.mrb[0].mxu0
  %278 = vdwg.mxu0
  %v280 = vsel %vm205, %v128, 0
  %282 = vmatprep.subr.mxu0 0.0
  %283 = vmatpush1.msra.mxu0 %v123
  %284 = vmatprep.subr.mxu0 0.0
  %285 = vmatpush1.msra.mxu0 0.0
  %286 = vmatprep.subr.mxu0 0.0
  %287 = vmatpush1.msra.mxu0 0.0
  %288 = vmatprep.subr.mxu0 0.0
  %289 = vmatpush1.msra.mxu0 0.0
  %290 = vmatprep.subr.mxu0 0.0
  %291 = vmatpush1.msra.mxu0 0.0
  %292 = vmatprep.subr.mxu0 0.0
  %293 = vmatpush1.msra.mxu0 0.0
  %294 = vmatprep.subr.mxu0 0.0
  %295 = vmatpush1.msra.mxu0 0.0
  %296 = vmatprep.subr.mxu0 0.0
  %297 = vmatpush1.msra.mxu0 0.0
  %298 = vmatprep.subr.mxu0 0.0
  %299 = vmatpush1.msra.mxu0 0.0
  %300 = vmatprep.subr.mxu0 0.0
  %301 = vmatpush1.msra.mxu0 0.0
  %302 = vmatprep.subr.mxu0 0.0
  %303 = vmatpush1.msra.mxu0 0.0
  %304 = vmatprep.subr.mxu0 0.0
  %305 = vmatpush1.msra.mxu0 0.0
  %306 = vmatprep.subr.mxu0 0.0
  %307 = vmatpush1.msra.mxu0 0.0
  %308 = vmatprep.subr.mxu0 0.0
  %309 = vmatpush1.msra.mxu0 0.0
  %310 = vmatprep.subr.mxu0 0.0
  %311 = vmatpush1.msra.mxu0 0.0
  %312 = vmatprep.subr.mxu0 0.0
  %313 = vmatpush1.msra.mxu0 0.0
  %314 = vmatprep.subr.mxu0 0.0
  %315 = vmatpush1.msra.mxu0 0.0
  %316 = vmatprep.subr.mxu0 0.0
  %317 = vmatpush1.msra.mxu0 0.0
  %318 = vmatprep.subr.mxu0 0.0
  %319 = vmatpush1.msra.mxu0 0.0
  %320 = vmatprep.subr.mxu0 0.0
  %321 = vmatpush1.msra.mxu0 0.0
  %322 = vmatprep.subr.mxu0 0.0
  %323 = vmatpush1.msra.mxu0 0.0
  %324 = vmatprep.subr.mxu0 0.0
  %325 = vmatpush1.msra.mxu0 0.0
  %326 = vmatprep.subr.mxu0 0.0
  %327 = vmatpush1.msra.mxu0 0.0
  %328 = vmatprep.subr.mxu0 0.0
  %329 = vmatpush1.msra.mxu0 0.0
  %330 = vmatprep.subr.mxu0 0.0
  %331 = vmatpush1.msra.mxu0 0.0
  %332 = vmatprep.subr.mxu0 0.0
  %333 = vmatpush1.msra.mxu0 0.0
  %334 = vmatprep.subr.mxu0 0.0
  %335 = vmatpush1.msra.mxu0 0.0
  %336 = vmatprep.subr.mxu0 0.0
  %337 = vmatpush1.msra.mxu0 0.0
  %338 = vmatprep.subr.mxu0 0.0
  %339 = vmatpush1.msra.mxu0 0.0
  %340 = vmatprep.subr.mxu0 0.0
  %341 = vmatpush1.msra.mxu0 0.0
  %342 = vmatprep.subr.mxu0 0.0
  %343 = vmatpush1.msra.mxu0 0.0
  %344 = vmatprep.subr.mxu0 0.0
  %345 = vmatpush1.msra.mxu0 0.0
  %346 = vmatprep.mubr.f32.mxu0 0.0
  %347 = vmatmul.mubr.f32.gmra.mrb[0].mxu0 %v280
  %v348 = vpop.f32.mrb[0].mxu0
  %v349 = vadd.f32 %v276, %v348
  %v350 = vpop.f32.mrb[0].mxu0
  %351 = vdwg.mxu0
  %s352 = scalar_lea.vmem %s6, 4
  %v353 = vld [vmem:[%s352] sm:$0xf]
  %v355 = vsel %vm205, %v353, 0
  %357 = vmatprep.subr.mxu0 0.0
  %358 = vmatpush1.msra.mxu0 %v198
  %359 = vmatprep.subr.mxu0 0.0
  %360 = vmatpush1.msra.mxu0 0.0
  %361 = vmatprep.subr.mxu0 0.0
  %362 = vmatpush1.msra.mxu0 0.0
  %363 = vmatprep.subr.mxu0 0.0
  %364 = vmatpush1.msra.mxu0 0.0
  %365 = vmatprep.subr.mxu0 0.0
  %366 = vmatpush1.msra.mxu0 0.0
  %367 = vmatprep.subr.mxu0 0.0
  %368 = vmatpush1.msra.mxu0 0.0
  %369 = vmatprep.subr.mxu0 0.0
  %370 = vmatpush1.msra.mxu0 0.0
  %371 = vmatprep.subr.mxu0 0.0
  %372 = vmatpush1.msra.mxu0 0.0
  %373 = vmatprep.subr.mxu0 0.0
  %374 = vmatpush1.msra.mxu0 0.0
  %375 = vmatprep.subr.mxu0 0.0
  %376 = vmatpush1.msra.mxu0 0.0
  %377 = vmatprep.subr.mxu0 0.0
  %378 = vmatpush1.msra.mxu0 0.0
  %379 = vmatprep.subr.mxu0 0.0
  %380 = vmatpush1.msra.mxu0 0.0
  %381 = vmatprep.subr.mxu0 0.0
  %382 = vmatpush1.msra.mxu0 0.0
  %383 = vmatprep.subr.mxu0 0.0
  %384 = vmatpush1.msra.mxu0 0.0
  %385 = vmatprep.subr.mxu0 0.0
  %386 = vmatpush1.msra.mxu0 0.0
  %387 = vmatprep.subr.mxu0 0.0
  %388 = vmatpush1.msra.mxu0 0.0
  %389 = vmatprep.subr.mxu0 0.0
  %390 = vmatpush1.msra.mxu0 0.0
  %391 = vmatprep.subr.mxu0 0.0
  %392 = vmatpush1.msra.mxu0 0.0
  %393 = vmatprep.subr.mxu0 0.0
  %394 = vmatpush1.msra.mxu0 0.0
  %395 = vmatprep.subr.mxu0 0.0
  %396 = vmatpush1.msra.mxu0 0.0
  %397 = vmatprep.subr.mxu0 0.0
  %398 = vmatpush1.msra.mxu0 0.0
  %399 = vmatprep.subr.mxu0 0.0
  %400 = vmatpush1.msra.mxu0 0.0
  %401 = vmatprep.subr.mxu0 0.0
  %402 = vmatpush1.msra.mxu0 0.0
  %403 = vmatprep.subr.mxu0 0.0
  %404 = vmatpush1.msra.mxu0 0.0
  %405 = vmatprep.subr.mxu0 0.0
  %406 = vmatpush1.msra.mxu0 0.0
  %407 = vmatprep.subr.mxu0 0.0
  %408 = vmatpush1.msra.mxu0 0.0
  %409 = vmatprep.subr.mxu0 0.0
  %410 = vmatpush1.msra.mxu0 0.0
  %411 = vmatprep.subr.mxu0 0.0
  %412 = vmatpush1.msra.mxu0 0.0
  %413 = vmatprep.subr.mxu0 0.0
  %414 = vmatpush1.msra.mxu0 0.0
  %415 = vmatprep.subr.mxu0 0.0
  %416 = vmatpush1.msra.mxu0 0.0
  %417 = vmatprep.subr.mxu0 0.0
  %418 = vmatpush1.msra.mxu0 0.0
  %419 = vmatprep.subr.mxu0 0.0
  %420 = vmatpush1.msra.mxu0 0.0
  %421 = vmatprep.mubr.f32.mxu0 0.0
  %422 = vmatmul.mubr.f32.gmra.mrb[0].mxu0 %v355
  %v423 = vpop.f32.mrb[0].mxu0
  %v424 = vadd.f32 0.0, %v423
  %v425 = vpop.f32.mrb[0].mxu0
  %426 = vdwg.mxu0
  %v428 = vsel %vm205, %v129, 0
  %430 = vmatprep.subr.mxu0 0.0
  %431 = vmatpush1.msra.mxu0 %v123
  %432 = vmatprep.subr.mxu0 0.0
  %433 = vmatpush1.msra.mxu0 0.0
  %434 = vmatprep.subr.mxu0 0.0
  %435 = vmatpush1.msra.mxu0 0.0
  %436 = vmatprep.subr.mxu0 0.0
  %437 = vmatpush1.msra.mxu0 0.0
  %438 = vmatprep.subr.mxu0 0.0
  %439 = vmatpush1.msra.mxu0 0.0
  %440 = vmatprep.subr.mxu0 0.0
  %441 = vmatpush1.msra.mxu0 0.0
  %442 = vmatprep.subr.mxu0 0.0
  %443 = vmatpush1.msra.mxu0 0.0
  %444 = vmatprep.subr.mxu0 0.0
  %445 = vmatpush1.msra.mxu0 0.0
  %446 = vmatprep.subr.mxu0 0.0
  %447 = vmatpush1.msra.mxu0 0.0
  %448 = vmatprep.subr.mxu0 0.0
  %449 = vmatpush1.msra.mxu0 0.0
  %450 = vmatprep.subr.mxu0 0.0
  %451 = vmatpush1.msra.mxu0 0.0
  %452 = vmatprep.subr.mxu0 0.0
  %453 = vmatpush1.msra.mxu0 0.0
  %454 = vmatprep.subr.mxu0 0.0
  %455 = vmatpush1.msra.mxu0 0.0
  %456 = vmatprep.subr.mxu0 0.0
  %457 = vmatpush1.msra.mxu0 0.0
  %458 = vmatprep.subr.mxu0 0.0
  %459 = vmatpush1.msra.mxu0 0.0
  %460 = vmatprep.subr.mxu0 0.0
  %461 = vmatpush1.msra.mxu0 0.0
  %462 = vmatprep.subr.mxu0 0.0
  %463 = vmatpush1.msra.mxu0 0.0
  %464 = vmatprep.subr.mxu0 0.0
  %465 = vmatpush1.msra.mxu0 0.0
  %466 = vmatprep.subr.mxu0 0.0
  %467 = vmatpush1.msra.mxu0 0.0
  %468 = vmatprep.subr.mxu0 0.0
  %469 = vmatpush1.msra.mxu0 0.0
  %470 = vmatprep.subr.mxu0 0.0
  %471 = vmatpush1.msra.mxu0 0.0
  %472 = vmatprep.subr.mxu0 0.0
  %473 = vmatpush1.msra.mxu0 0.0
  %474 = vmatprep.subr.mxu0 0.0
  %475 = vmatpush1.msra.mxu0 0.0
  %476 = vmatprep.subr.mxu0 0.0
  %477 = vmatpush1.msra.mxu0 0.0
  %478 = vmatprep.subr.mxu0 0.0
  %479 = vmatpush1.msra.mxu0 0.0
  %480 = vmatprep.subr.mxu0 0.0
  %481 = vmatpush1.msra.mxu0 0.0
  %482 = vmatprep.subr.mxu0 0.0
  %483 = vmatpush1.msra.mxu0 0.0
  %484 = vmatprep.subr.mxu0 0.0
  %485 = vmatpush1.msra.mxu0 0.0
  %486 = vmatprep.subr.mxu0 0.0
  %487 = vmatpush1.msra.mxu0 0.0
  %488 = vmatprep.subr.mxu0 0.0
  %489 = vmatpush1.msra.mxu0 0.0
  %490 = vmatprep.subr.mxu0 0.0
  %491 = vmatpush1.msra.mxu0 0.0
  %492 = vmatprep.subr.mxu0 0.0
  %493 = vmatpush1.msra.mxu0 0.0
  %494 = vmatprep.mubr.f32.mxu0 0.0
  %495 = vmatmul.mubr.f32.gmra.mrb[0].mxu0 %v428
  %v496 = vpop.f32.mrb[0].mxu0
  %v497 = vadd.f32 %v424, %v496
  %v498 = vpop.f32.mrb[0].mxu0
  %499 = vdwg.mxu0
  %s500 = scalar_lea.vmem %s0, 64
  %v501 = vld [vmem:[%s500] sm:$0xf]
  %v502 = vld [vmem:[%s500 + $0x4] sm:$0xf]
  %v503 = vld [vmem:[%s500 + $0x8] sm:$0xf]
  %v504 = vld [vmem:[%s500 + $0xc] sm:$0xf]
  %v505 = vld [vmem:[%s500 + $0x10] sm:$0xf]
  %v506 = vld [vmem:[%s500 + $0x14] sm:$0xf]
  %v507 = vld [vmem:[%s500 + $0x18] sm:$0xf]
  %v508 = vld [vmem:[%s500 + $0x1c] sm:$0xf]
  %v517 = vunpack.c.l.b16 %v501
  %v518 = vunpack.c.l.b16 %v502
  %v519 = vunpack.c.l.b16 %v503
  %v520 = vunpack.c.l.b16 %v504
  %v521 = vunpack.c.l.b16 %v505
  %v522 = vunpack.c.l.b16 %v506
  %v523 = vunpack.c.l.b16 %v507
  %v524 = vunpack.c.l.b16 %v508
  %v525 = vpack.c.b16 %v518, %v517
  %v526 = vpack.c.b16 %v520, %v519
  %v527 = vpack.c.b16 %v522, %v521
  %v528 = vpack.c.b16 %v524, %v523
  %533 = vmatprep.subr.bf16.mxu0 0
  %534 = vmatpush1.bf16.msra.mxu0 %v525
  %535 = vmatprep.subr.bf16.mxu0 0
  %536 = vmatpush1.bf16.msra.mxu0 %v526
  %537 = vmatprep.subr.bf16.mxu0 0
  %538 = vmatpush1.bf16.msra.mxu0 %v527
  %539 = vmatprep.subr.bf16.mxu0 0
  %540 = vmatpush1.bf16.msra.mxu0 %v528
  %541 = vmatprep.subr.bf16.mxu0 0
  %542 = vmatpush1.bf16.msra.mxu0 0
  %543 = vmatprep.subr.bf16.mxu0 0
  %544 = vmatpush1.bf16.msra.mxu0 0
  %545 = vmatprep.subr.bf16.mxu0 0
  %546 = vmatpush1.bf16.msra.mxu0 0
  %547 = vmatprep.subr.bf16.mxu0 0
  %548 = vmatpush1.bf16.msra.mxu0 0
  %549 = vmatprep.subr.bf16.mxu0 0
  %550 = vmatpush1.bf16.msra.mxu0 0
  %551 = vmatprep.subr.bf16.mxu0 0
  %552 = vmatpush1.bf16.msra.mxu0 0
  %553 = vmatprep.subr.bf16.mxu0 0
  %554 = vmatpush1.bf16.msra.mxu0 0
  %555 = vmatprep.subr.bf16.mxu0 0
  %556 = vmatpush1.bf16.msra.mxu0 0
  %557 = vmatprep.subr.bf16.mxu0 0
  %558 = vmatpush1.bf16.msra.mxu0 0
  %559 = vmatprep.subr.bf16.mxu0 0
  %560 = vmatpush1.bf16.msra.mxu0 0
  %561 = vmatprep.subr.bf16.mxu0 0
  %562 = vmatpush1.bf16.msra.mxu0 0
  %563 = vmatprep.subr.bf16.mxu0 0
  %564 = vmatpush1.bf16.msra.mxu0 0
  %565 = vmatprep.mubr.bf16.mxu0 0
  %566 = vmatmul.mubr.bf16.gmra.mrb[0].mxu0 %v86
  %v567 = vpop.f32.mrb[0].mxu0
  %v568 = vadd.f32 %v58, %v567
  %v569 = vpop.f32.mrb[0].mxu0
  %v570 = vpop.f32.mrb[0].mxu0
  %v571 = vpop.f32.mrb[0].mxu0
  %572 = vdwg.mxu0
  %s573 = scalar_lea.vmem %s4, 8
  %v574 = vld [vmem:[%s573] sm:$0xf]
  %v576 = vsel %vm205, %v574, 0
  %578 = vmatprep.subr.mxu0 0.0
  %579 = vmatpush1.msra.mxu0 %v568
  %580 = vmatprep.subr.mxu0 0.0
  %581 = vmatpush1.msra.mxu0 0.0
  %582 = vmatprep.subr.mxu0 0.0
  %583 = vmatpush1.msra.mxu0 0.0
  %584 = vmatprep.subr.mxu0 0.0
  %585 = vmatpush1.msra.mxu0 0.0
  %586 = vmatprep.subr.mxu0 0.0
  %587 = vmatpush1.msra.mxu0 0.0
  %588 = vmatprep.subr.mxu0 0.0
  %589 = vmatpush1.msra.mxu0 0.0
  %590 = vmatprep.subr.mxu0 0.0
  %591 = vmatpush1.msra.mxu0 0.0
  %592 = vmatprep.subr.mxu0 0.0
  %593 = vmatpush1.msra.mxu0 0.0
  %594 = vmatprep.subr.mxu0 0.0
  %595 = vmatpush1.msra.mxu0 0.0
  %596 = vmatprep.subr.mxu0 0.0
  %597 = vmatpush1.msra.mxu0 0.0
  %598 = vmatprep.subr.mxu0 0.0
  %599 = vmatpush1.msra.mxu0 0.0
  %600 = vmatprep.subr.mxu0 0.0
  %601 = vmatpush1.msra.mxu0 0.0
  %602 = vmatprep.subr.mxu0 0.0
  %603 = vmatpush1.msra.mxu0 0.0
  %604 = vmatprep.subr.mxu0 0.0
  %605 = vmatpush1.msra.mxu0 0.0
  %606 = vmatprep.subr.mxu0 0.0
  %607 = vmatpush1.msra.mxu0 0.0
  %608 = vmatprep.subr.mxu0 0.0
  %609 = vmatpush1.msra.mxu0 0.0
  %610 = vmatprep.subr.mxu0 0.0
  %611 = vmatpush1.msra.mxu0 0.0
  %612 = vmatprep.subr.mxu0 0.0
  %613 = vmatpush1.msra.mxu0 0.0
  %614 = vmatprep.subr.mxu0 0.0
  %615 = vmatpush1.msra.mxu0 0.0
  %616 = vmatprep.subr.mxu0 0.0
  %617 = vmatpush1.msra.mxu0 0.0
  %618 = vmatprep.subr.mxu0 0.0
  %619 = vmatpush1.msra.mxu0 0.0
  %620 = vmatprep.subr.mxu0 0.0
  %621 = vmatpush1.msra.mxu0 0.0
  %622 = vmatprep.subr.mxu0 0.0
  %623 = vmatpush1.msra.mxu0 0.0
  %624 = vmatprep.subr.mxu0 0.0
  %625 = vmatpush1.msra.mxu0 0.0
  %626 = vmatprep.subr.mxu0 0.0
  %627 = vmatpush1.msra.mxu0 0.0
  %628 = vmatprep.subr.mxu0 0.0
  %629 = vmatpush1.msra.mxu0 0.0
  %630 = vmatprep.subr.mxu0 0.0
  %631 = vmatpush1.msra.mxu0 0.0
  %632 = vmatprep.subr.mxu0 0.0
  %633 = vmatpush1.msra.mxu0 0.0
  %634 = vmatprep.subr.mxu0 0.0
  %635 = vmatpush1.msra.mxu0 0.0
  %636 = vmatprep.subr.mxu0 0.0
  %637 = vmatpush1.msra.mxu0 0.0
  %638 = vmatprep.subr.mxu0 0.0
  %639 = vmatpush1.msra.mxu0 0.0
  %640 = vmatprep.subr.mxu0 0.0
  %641 = vmatpush1.msra.mxu0 0.0
  %642 = vmatprep.mubr.f32.mxu0 0.0
  %643 = vmatmul.mubr.f32.gmra.mrb[0].mxu0 %v576
  %v644 = vpop.f32.mrb[0].mxu0
  %v645 = vadd.f32 0.0, %v644
  %v646 = vpop.f32.mrb[0].mxu0
  %647 = vdwg.mxu0
  %v648 = vadd.f32 %v349, %v645
  %s649 = scalar_lea.vmem %s6, 8
  %v650 = vld [vmem:[%s649] sm:$0xf]
  %v652 = vsel %vm205, %v650, 0
  %654 = vmatprep.subr.mxu0 0.0
  %655 = vmatpush1.msra.mxu0 %v568
  %656 = vmatprep.subr.mxu0 0.0
  %657 = vmatpush1.msra.mxu0 0.0
  %658 = vmatprep.subr.mxu0 0.0
  %659 = vmatpush1.msra.mxu0 0.0
  %660 = vmatprep.subr.mxu0 0.0
  %661 = vmatpush1.msra.mxu0 0.0
  %662 = vmatprep.subr.mxu0 0.0
  %663 = vmatpush1.msra.mxu0 0.0
  %664 = vmatprep.subr.mxu0 0.0
  %665 = vmatpush1.msra.mxu0 0.0
  %666 = vmatprep.subr.mxu0 0.0
  %667 = vmatpush1.msra.mxu0 0.0
  %668 = vmatprep.subr.mxu0 0.0
  %669 = vmatpush1.msra.mxu0 0.0
  %670 = vmatprep.subr.mxu0 0.0
  %671 = vmatpush1.msra.mxu0 0.0
  %672 = vmatprep.subr.mxu0 0.0
  %673 = vmatpush1.msra.mxu0 0.0
  %674 = vmatprep.subr.mxu0 0.0
  %675 = vmatpush1.msra.mxu0 0.0
  %676 = vmatprep.subr.mxu0 0.0
  %677 = vmatpush1.msra.mxu0 0.0
  %678 = vmatprep.subr.mxu0 0.0
  %679 = vmatpush1.msra.mxu0 0.0
  %680 = vmatprep.subr.mxu0 0.0
  %681 = vmatpush1.msra.mxu0 0.0
  %682 = vmatprep.subr.mxu0 0.0
  %683 = vmatpush1.msra.mxu0 0.0
  %684 = vmatprep.subr.mxu0 0.0
  %685 = vmatpush1.msra.mxu0 0.0
  %686 = vmatprep.subr.mxu0 0.0
  %687 = vmatpush1.msra.mxu0 0.0
  %688 = vmatprep.subr.mxu0 0.0
  %689 = vmatpush1.msra.mxu0 0.0
  %690 = vmatprep.subr.mxu0 0.0
  %691 = vmatpush1.msra.mxu0 0.0
  %692 = vmatprep.subr.mxu0 0.0
  %693 = vmatpush1.msra.mxu0 0.0
  %694 = vmatprep.subr.mxu0 0.0
  %695 = vmatpush1.msra.mxu0 0.0
  %696 = vmatprep.subr.mxu0 0.0
  %697 = vmatpush1.msra.mxu0 0.0
  %698 = vmatprep.subr.mxu0 0.0
  %699 = vmatpush1.msra.mxu0 0.0
  %700 = vmatprep.subr.mxu0 0.0
  %701 = vmatpush1.msra.mxu0 0.0
  %702 = vmatprep.subr.mxu0 0.0
  %703 = vmatpush1.msra.mxu0 0.0
  %704 = vmatprep.subr.mxu0 0.0
  %705 = vmatpush1.msra.mxu0 0.0
  %706 = vmatprep.subr.mxu0 0.0
  %707 = vmatpush1.msra.mxu0 0.0
  %708 = vmatprep.subr.mxu0 0.0
  %709 = vmatpush1.msra.mxu0 0.0
  %710 = vmatprep.subr.mxu0 0.0
  %711 = vmatpush1.msra.mxu0 0.0
  %712 = vmatprep.subr.mxu0 0.0
  %713 = vmatpush1.msra.mxu0 0.0
  %714 = vmatprep.subr.mxu0 0.0
  %715 = vmatpush1.msra.mxu0 0.0
  %716 = vmatprep.subr.mxu0 0.0
  %717 = vmatpush1.msra.mxu0 0.0
  %718 = vmatprep.mubr.f32.mxu0 0.0
  %719 = vmatmul.mubr.f32.gmra.mrb[0].mxu0 %v652
  %v720 = vpop.f32.mrb[0].mxu0
  %v721 = vadd.f32 0.0, %v720
  %v722 = vpop.f32.mrb[0].mxu0
  %723 = vdwg.mxu0
  %v724 = vadd.f32 %v497, %v721
  %s725 = scalar_lea.vmem %s0, 96
  %v726 = vld [vmem:[%s725] sm:$0xf]
  %v727 = vld [vmem:[%s725 + $0x4] sm:$0xf]
  %v728 = vld [vmem:[%s725 + $0x8] sm:$0xf]
  %v729 = vld [vmem:[%s725 + $0xc] sm:$0xf]
  %v730 = vld [vmem:[%s725 + $0x10] sm:$0xf]
  %v731 = vld [vmem:[%s725 + $0x14] sm:$0xf]
  %v732 = vld [vmem:[%s725 + $0x18] sm:$0xf]
  %v733 = vld [vmem:[%s725 + $0x1c] sm:$0xf]
  %v742 = vunpack.c.l.b16 %v726
  %v743 = vunpack.c.l.b16 %v727
  %v744 = vunpack.c.l.b16 %v728
  %v745 = vunpack.c.l.b16 %v729
  %v746 = vunpack.c.l.b16 %v730
  %v747 = vunpack.c.l.b16 %v731
  %v748 = vunpack.c.l.b16 %v732
  %v749 = vunpack.c.l.b16 %v733
  %v750 = vpack.c.b16 %v743, %v742
  %v751 = vpack.c.b16 %v745, %v744
  %v752 = vpack.c.b16 %v747, %v746
  %v753 = vpack.c.b16 %v749, %v748
  %758 = vmatprep.subr.bf16.mxu0 0
  %759 = vmatpush1.bf16.msra.mxu0 %v750
  %760 = vmatprep.subr.bf16.mxu0 0
  %761 = vmatpush1.bf16.msra.mxu0 %v751
  %762 = vmatprep.subr.bf16.mxu0 0
  %763 = vmatpush1.bf16.msra.mxu0 %v752
  %764 = vmatprep.subr.bf16.mxu0 0
  %765 = vmatpush1.bf16.msra.mxu0 %v753
  %766 = vmatprep.subr.bf16.mxu0 0
  %767 = vmatpush1.bf16.msra.mxu0 0
  %768 = vmatprep.subr.bf16.mxu0 0
  %769 = vmatpush1.bf16.msra.mxu0 0
  %770 = vmatprep.subr.bf16.mxu0 0
  %771 = vmatpush1.bf16.msra.mxu0 0
  %772 = vmatprep.subr.bf16.mxu0 0
  %773 = vmatpush1.bf16.msra.mxu0 0
  %774 = vmatprep.subr.bf16.mxu0 0
  %775 = vmatpush1.bf16.msra.mxu0 0
  %776 = vmatprep.subr.bf16.mxu0 0
  %777 = vmatpush1.bf16.msra.mxu0 0
  %778 = vmatprep.subr.bf16.mxu0 0
  %779 = vmatpush1.bf16.msra.mxu0 0
  %780 = vmatprep.subr.bf16.mxu0 0
  %781 = vmatpush1.bf16.msra.mxu0 0
  %782 = vmatprep.subr.bf16.mxu0 0
  %783 = vmatpush1.bf16.msra.mxu0 0
  %784 = vmatprep.subr.bf16.mxu0 0
  %785 = vmatpush1.bf16.msra.mxu0 0
  %786 = vmatprep.subr.bf16.mxu0 0
  %787 = vmatpush1.bf16.msra.mxu0 0
  %788 = vmatprep.subr.bf16.mxu0 0
  %789 = vmatpush1.bf16.msra.mxu0 0
  %790 = vmatprep.mubr.bf16.mxu0 0
  %791 = vmatmul.mubr.bf16.gmra.mrb[0].mxu0 %v86
  %v792 = vpop.f32.mrb[0].mxu0
  %v793 = vadd.f32 %v58, %v792
  %v794 = vpop.f32.mrb[0].mxu0
  %v795 = vpop.f32.mrb[0].mxu0
  %v796 = vpop.f32.mrb[0].mxu0
  %797 = vdwg.mxu0
  %s798 = scalar_lea.vmem %s4, 12
  %v799 = vld [vmem:[%s798] sm:$0xf]
  %v801 = vsel %vm205, %v799, 0
  %803 = vmatprep.subr.mxu0 0.0
  %804 = vmatpush1.msra.mxu0 %v793
  %805 = vmatprep.subr.mxu0 0.0
  %806 = vmatpush1.msra.mxu0 0.0
  %807 = vmatprep.subr.mxu0 0.0
  %808 = vmatpush1.msra.mxu0 0.0
  %809 = vmatprep.subr.mxu0 0.0
  %810 = vmatpush1.msra.mxu0 0.0
  %811 = vmatprep.subr.mxu0 0.0
  %812 = vmatpush1.msra.mxu0 0.0
  %813 = vmatprep.subr.mxu0 0.0
  %814 = vmatpush1.msra.mxu0 0.0
  %815 = vmatprep.subr.mxu0 0.0
  %816 = vmatpush1.msra.mxu0 0.0
  %817 = vmatprep.subr.mxu0 0.0
  %818 = vmatpush1.msra.mxu0 0.0
  %819 = vmatprep.subr.mxu0 0.0
  %820 = vmatpush1.msra.mxu0 0.0
  %821 = vmatprep.subr.mxu0 0.0
  %822 = vmatpush1.msra.mxu0 0.0
  %823 = vmatprep.subr.mxu0 0.0
  %824 = vmatpush1.msra.mxu0 0.0
  %825 = vmatprep.subr.mxu0 0.0
  %826 = vmatpush1.msra.mxu0 0.0
  %827 = vmatprep.subr.mxu0 0.0
  %828 = vmatpush1.msra.mxu0 0.0
  %829 = vmatprep.subr.mxu0 0.0
  %830 = vmatpush1.msra.mxu0 0.0
  %831 = vmatprep.subr.mxu0 0.0
  %832 = vmatpush1.msra.mxu0 0.0
  %833 = vmatprep.subr.mxu0 0.0
  %834 = vmatpush1.msra.mxu0 0.0
  %835 = vmatprep.subr.mxu0 0.0
  %836 = vmatpush1.msra.mxu0 0.0
  %837 = vmatprep.subr.mxu0 0.0
  %838 = vmatpush1.msra.mxu0 0.0
  %839 = vmatprep.subr.mxu0 0.0
  %840 = vmatpush1.msra.mxu0 0.0
  %841 = vmatprep.subr.mxu0 0.0
  %842 = vmatpush1.msra.mxu0 0.0
  %843 = vmatprep.subr.mxu0 0.0
  %844 = vmatpush1.msra.mxu0 0.0
  %845 = vmatprep.subr.mxu0 0.0
  %846 = vmatpush1.msra.mxu0 0.0
  %847 = vmatprep.subr.mxu0 0.0
  %848 = vmatpush1.msra.mxu0 0.0
  %849 = vmatprep.subr.mxu0 0.0
  %850 = vmatpush1.msra.mxu0 0.0
  %851 = vmatprep.subr.mxu0 0.0
  %852 = vmatpush1.msra.mxu0 0.0
  %853 = vmatprep.subr.mxu0 0.0
  %854 = vmatpush1.msra.mxu0 0.0
  %855 = vmatprep.subr.mxu0 0.0
  %856 = vmatpush1.msra.mxu0 0.0
  %857 = vmatprep.subr.mxu0 0.0
  %858 = vmatpush1.msra.mxu0 0.0
  %859 = vmatprep.subr.mxu0 0.0
  %860 = vmatpush1.msra.mxu0 0.0
  %861 = vmatprep.subr.mxu0 0.0
  %862 = vmatpush1.msra.mxu0 0.0
  %863 = vmatprep.subr.mxu0 0.0
  %864 = vmatpush1.msra.mxu0 0.0
  %865 = vmatprep.subr.mxu0 0.0
  %866 = vmatpush1.msra.mxu0 0.0
  %867 = vmatprep.mubr.f32.mxu0 0.0
  %868 = vmatmul.mubr.f32.gmra.mrb[0].mxu0 %v801
  %v869 = vpop.f32.mrb[0].mxu0
  %v870 = vadd.f32 0.0, %v869
  %v871 = vpop.f32.mrb[0].mxu0
  %872 = vdwg.mxu0
  %v873 = vadd.f32 %v648, %v870
  %s874 = scalar_lea.vmem %s6, 12
  %v875 = vld [vmem:[%s874] sm:$0xf]
  %v877 = vsel %vm205, %v875, 0
  %879 = vmatprep.subr.mxu0 0.0
  %880 = vmatpush1.msra.mxu0 %v793
  %881 = vmatprep.subr.mxu0 0.0
  %882 = vmatpush1.msra.mxu0 0.0
  %883 = vmatprep.subr.mxu0 0.0
  %884 = vmatpush1.msra.mxu0 0.0
  %885 = vmatprep.subr.mxu0 0.0
  %886 = vmatpush1.msra.mxu0 0.0
  %887 = vmatprep.subr.mxu0 0.0
  %888 = vmatpush1.msra.mxu0 0.0
  %889 = vmatprep.subr.mxu0 0.0
  %890 = vmatpush1.msra.mxu0 0.0
  %891 = vmatprep.subr.mxu0 0.0
  %892 = vmatpush1.msra.mxu0 0.0
  %893 = vmatprep.subr.mxu0 0.0
  %894 = vmatpush1.msra.mxu0 0.0
  %895 = vmatprep.subr.mxu0 0.0
  %896 = vmatpush1.msra.mxu0 0.0
  %897 = vmatprep.subr.mxu0 0.0
  %898 = vmatpush1.msra.mxu0 0.0
  %899 = vmatprep.subr.mxu0 0.0
  %900 = vmatpush1.msra.mxu0 0.0
  %901 = vmatprep.subr.mxu0 0.0
  %902 = vmatpush1.msra.mxu0 0.0
  %903 = vmatprep.subr.mxu0 0.0
  %904 = vmatpush1.msra.mxu0 0.0
  %905 = vmatprep.subr.mxu0 0.0
  %906 = vmatpush1.msra.mxu0 0.0
  %907 = vmatprep.subr.mxu0 0.0
  %908 = vmatpush1.msra.mxu0 0.0
  %909 = vmatprep.subr.mxu0 0.0
  %910 = vmatpush1.msra.mxu0 0.0
  %911 = vmatprep.subr.mxu0 0.0
  %912 = vmatpush1.msra.mxu0 0.0
  %913 = vmatprep.subr.mxu0 0.0
  %914 = vmatpush1.msra.mxu0 0.0
  %915 = vmatprep.subr.mxu0 0.0
  %916 = vmatpush1.msra.mxu0 0.0
  %917 = vmatprep.subr.mxu0 0.0
  %918 = vmatpush1.msra.mxu0 0.0
  %919 = vmatprep.subr.mxu0 0.0
  %920 = vmatpush1.msra.mxu0 0.0
  %921 = vmatprep.subr.mxu0 0.0
  %922 = vmatpush1.msra.mxu0 0.0
  %923 = vmatprep.subr.mxu0 0.0
  %924 = vmatpush1.msra.mxu0 0.0
  %925 = vmatprep.subr.mxu0 0.0
  %926 = vmatpush1.msra.mxu0 0.0
  %927 = vmatprep.subr.mxu0 0.0
  %928 = vmatpush1.msra.mxu0 0.0
  %929 = vmatprep.subr.mxu0 0.0
  %930 = vmatpush1.msra.mxu0 0.0
  %931 = vmatprep.subr.mxu0 0.0
  %932 = vmatpush1.msra.mxu0 0.0
  %933 = vmatprep.subr.mxu0 0.0
  %934 = vmatpush1.msra.mxu0 0.0
  %935 = vmatprep.subr.mxu0 0.0
  %936 = vmatpush1.msra.mxu0 0.0
  %937 = vmatprep.subr.mxu0 0.0
  %938 = vmatpush1.msra.mxu0 0.0
  %939 = vmatprep.subr.mxu0 0.0
  %940 = vmatpush1.msra.mxu0 0.0
  %941 = vmatprep.subr.mxu0 0.0
  %942 = vmatpush1.msra.mxu0 0.0
  %943 = vmatprep.mubr.f32.mxu0 0.0
  %944 = vmatmul.mubr.f32.gmra.mrb[0].mxu0 %v877
  %v945 = vpop.f32.mrb[0].mxu0
  %v946 = vadd.f32 0.0, %v945
  %v947 = vpop.f32.mrb[0].mxu0
  %948 = vdwg.mxu0
  %v949 = vadd.f32 %v724, %v946
  %v950 = vld [vmem:[%s5] sm:$0xf]
  %952 = vset.pattern.permute.xlu0 0
  %953 = vperm.xlu0 %952, %v950
  %v954 = vpop.permute.xlu0 %953
  %v956 = vadd.f32 %v873, %v954
  %v957 = vld [vmem:[%s7] sm:$0xf]
  %959 = vset.pattern.permute.xlu0 0
  %960 = vperm.xlu0 %959, %v957
  %v961 = vpop.permute.xlu0 %960
  %v963 = vadd.f32 %v949, %v961
  %v964 = vmul.f32 %v963, 0.5
  %v965 = vmul.f32 %v964, 1.442695
  %v966 = vpow.pop %v965
  %v967 = vld [vmem:[%s1] sm:$0xf]
  %v968 = vmul.f32 %v966, %v967
  %v969 = vadd.f32 %v956, %v968
  %v970 = vld [vmem:[%s8] sm:$0xff]
  %v971 = vld [vmem:[%s8 + $0x8] sm:$0xff]
  %v972 = vld [vmem:[%s8 + $0x10] sm:$0xff]
  %v973 = vld [vmem:[%s8 + $0x18] sm:$0xff]
  %v974 = vld [vmem:[%s9] sm:$0xff]
  %v975 = vld [vmem:[%s9 + $0x8] sm:$0xff]
  %v976 = vld [vmem:[%s9 + $0x10] sm:$0xff]
  %v977 = vld [vmem:[%s9 + $0x18] sm:$0xff]
  %979 = vset.pattern.permute.xlu0 0
  %980 = vperm.xlu0 %979, %v974
  %v981 = vpop.permute.xlu0 %980
  %984 = vset.pattern.permute.xlu0 0
  %985 = vperm.xlu0 %984, %v975
  %v986 = vpop.permute.xlu0 %985
  %989 = vset.pattern.permute.xlu0 0
  %990 = vperm.xlu0 %989, %v976
  %v991 = vpop.permute.xlu0 %990
  %994 = vset.pattern.permute.xlu0 0
  %995 = vperm.xlu0 %994, %v977
  %v996 = vpop.permute.xlu0 %995
  %vm998 = vcmask 31744
  %v1000 = vsel %vm998, %v970, 0
  %v1003 = vsel %vm998, %v971, 0
  %v1006 = vsel %vm998, %v972, 0
  %v1009 = vsel %vm998, %v973, 0
  %vm1011 = vcmask 1043456
  %v1013 = vsel %vm1011, %v969, 0
  %1015 = vmatprep.subr.mxu0 0.0
  %1016 = vmatpush1.msra.mxu0 %v1013
  %1017 = vmatprep.subr.mxu0 0.0
  %1018 = vmatpush1.msra.mxu0 0.0
  %1019 = vmatprep.subr.mxu0 0.0
  %1020 = vmatpush1.msra.mxu0 0.0
  %1021 = vmatprep.subr.mxu0 0.0
  %1022 = vmatpush1.msra.mxu0 0.0
  %1023 = vmatprep.subr.mxu0 0.0
  %1024 = vmatpush1.msra.mxu0 0.0
  %1025 = vmatprep.subr.mxu0 0.0
  %1026 = vmatpush1.msra.mxu0 0.0
  %1027 = vmatprep.subr.mxu0 0.0
  %1028 = vmatpush1.msra.mxu0 0.0
  %1029 = vmatprep.subr.mxu0 0.0
  %1030 = vmatpush1.msra.mxu0 0.0
  %1031 = vmatprep.subr.mxu0 0.0
  %1032 = vmatpush1.msra.mxu0 0.0
  %1033 = vmatprep.subr.mxu0 0.0
  %1034 = vmatpush1.msra.mxu0 0.0
  %1035 = vmatprep.subr.mxu0 0.0
  %1036 = vmatpush1.msra.mxu0 0.0
  %1037 = vmatprep.subr.mxu0 0.0
  %1038 = vmatpush1.msra.mxu0 0.0
  %1039 = vmatprep.subr.mxu0 0.0
  %1040 = vmatpush1.msra.mxu0 0.0
  %1041 = vmatprep.subr.mxu0 0.0
  %1042 = vmatpush1.msra.mxu0 0.0
  %1043 = vmatprep.subr.mxu0 0.0
  %1044 = vmatpush1.msra.mxu0 0.0
  %1045 = vmatprep.subr.mxu0 0.0
  %1046 = vmatpush1.msra.mxu0 0.0
  %1047 = vmatprep.subr.mxu0 0.0
  %1048 = vmatpush1.msra.mxu0 0.0
  %1049 = vmatprep.subr.mxu0 0.0
  %1050 = vmatpush1.msra.mxu0 0.0
  %1051 = vmatprep.subr.mxu0 0.0
  %1052 = vmatpush1.msra.mxu0 0.0
  %1053 = vmatprep.subr.mxu0 0.0
  %1054 = vmatpush1.msra.mxu0 0.0
  %1055 = vmatprep.subr.mxu0 0.0
  %1056 = vmatpush1.msra.mxu0 0.0
  %1057 = vmatprep.subr.mxu0 0.0
  %1058 = vmatpush1.msra.mxu0 0.0
  %1059 = vmatprep.subr.mxu0 0.0
  %1060 = vmatpush1.msra.mxu0 0.0
  %1061 = vmatprep.subr.mxu0 0.0
  %1062 = vmatpush1.msra.mxu0 0.0
  %1063 = vmatprep.subr.mxu0 0.0
  %1064 = vmatpush1.msra.mxu0 0.0
  %1065 = vmatprep.subr.mxu0 0.0
  %1066 = vmatpush1.msra.mxu0 0.0
  %1067 = vmatprep.subr.mxu0 0.0
  %1068 = vmatpush1.msra.mxu0 0.0
  %1069 = vmatprep.subr.mxu0 0.0
  %1070 = vmatpush1.msra.mxu0 0.0
  %1071 = vmatprep.subr.mxu0 0.0
  %1072 = vmatpush1.msra.mxu0 0.0
  %1073 = vmatprep.subr.mxu0 0.0
  %1074 = vmatpush1.msra.mxu0 0.0
  %1075 = vmatprep.subr.mxu0 0.0
  %1076 = vmatpush1.msra.mxu0 0.0
  %1077 = vmatprep.subr.mxu0 0.0
  %1078 = vmatpush1.msra.mxu0 0.0
  %1079 = vmatprep.mubr.f32.mxu0 0.0
  %1080 = vmatmul.mubr.f32.gmra.mrb[0].mxu0 %v1000
  %v1081 = vpop.f32.mrb[0].mxu0
  %v1082 = vadd.f32 %v981, %v1081
  %v1083 = vpop.f32.mrb[0].mxu0
  %1084 = vmatprep.mubr.f32.mxu0 0.0
  %1085 = vmatmul.mubr.f32.gmra.mrb[0].mxu0 %v1003
  %v1086 = vpop.f32.mrb[0].mxu0
  %v1087 = vadd.f32 %v986, %v1086
  %v1088 = vpop.f32.mrb[0].mxu0
  %1089 = vmatprep.mubr.f32.mxu0 0.0
  %1090 = vmatmul.mubr.f32.gmra.mrb[0].mxu0 %v1006
  %v1091 = vpop.f32.mrb[0].mxu0
  %v1092 = vadd.f32 %v991, %v1091
  %v1093 = vpop.f32.mrb[0].mxu0
  %1094 = vmatprep.mubr.f32.mxu0 0.0
  %1095 = vmatmul.mubr.f32.gmra.mrb[0].mxu0 %v1009
  %v1096 = vpop.f32.mrb[0].mxu0
  %v1097 = vadd.f32 %v996, %v1096
  %v1098 = vpop.f32.mrb[0].mxu0
  %1099 = vdwg.mxu0
  %v1100 = vld [vmem:[%s10] sm:$0xff]
  %v1101 = vld [vmem:[%s10 + $0x8] sm:$0xff]
  %v1102 = vld [vmem:[%s11] sm:$0xff]
  %v1103 = vld [vmem:[%s11 + $0x8] sm:$0xff]
  %1105 = vset.pattern.permute.xlu0 0
  %1106 = vperm.xlu0 %1105, %v1102
  %v1107 = vpop.permute.xlu0 %1106
  %1110 = vset.pattern.permute.xlu0 0
  %1111 = vperm.xlu0 %1110, %v1103
  %v1112 = vpop.permute.xlu0 %1111
  %v1115 = vsel %vm205, %v1100, 0
  %v1118 = vsel %vm205, %v1101, 0
  %1120 = vmatprep.subr.mxu0 0.0
  %1121 = vmatpush1.msra.mxu0 %v1082
  %1122 = vmatprep.subr.mxu0 0.0
  %1123 = vmatpush1.msra.mxu0 0.0
  %1124 = vmatprep.subr.mxu0 0.0
  %1125 = vmatpush1.msra.mxu0 0.0
  %1126 = vmatprep.subr.mxu0 0.0
  %1127 = vmatpush1.msra.mxu0 0.0
  %1128 = vmatprep.subr.mxu0 0.0
  %1129 = vmatpush1.msra.mxu0 0.0
  %1130 = vmatprep.subr.mxu0 0.0
  %1131 = vmatpush1.msra.mxu0 0.0
  %1132 = vmatprep.subr.mxu0 0.0
  %1133 = vmatpush1.msra.mxu0 0.0
  %1134 = vmatprep.subr.mxu0 0.0
  %1135 = vmatpush1.msra.mxu0 0.0
  %1136 = vmatprep.subr.mxu0 0.0
  %1137 = vmatpush1.msra.mxu0 0.0
  %1138 = vmatprep.subr.mxu0 0.0
  %1139 = vmatpush1.msra.mxu0 0.0
  %1140 = vmatprep.subr.mxu0 0.0
  %1141 = vmatpush1.msra.mxu0 0.0
  %1142 = vmatprep.subr.mxu0 0.0
  %1143 = vmatpush1.msra.mxu0 0.0
  %1144 = vmatprep.subr.mxu0 0.0
  %1145 = vmatpush1.msra.mxu0 0.0
  %1146 = vmatprep.subr.mxu0 0.0
  %1147 = vmatpush1.msra.mxu0 0.0
  %1148 = vmatprep.subr.mxu0 0.0
  %1149 = vmatpush1.msra.mxu0 0.0
  %1150 = vmatprep.subr.mxu0 0.0
  %1151 = vmatpush1.msra.mxu0 0.0
  %1152 = vmatprep.subr.mxu0 0.0
  %1153 = vmatpush1.msra.mxu0 0.0
  %1154 = vmatprep.subr.mxu0 0.0
  %1155 = vmatpush1.msra.mxu0 0.0
  %1156 = vmatprep.subr.mxu0 0.0
  %1157 = vmatpush1.msra.mxu0 0.0
  %1158 = vmatprep.subr.mxu0 0.0
  %1159 = vmatpush1.msra.mxu0 0.0
  %1160 = vmatprep.subr.mxu0 0.0
  %1161 = vmatpush1.msra.mxu0 0.0
  %1162 = vmatprep.subr.mxu0 0.0
  %1163 = vmatpush1.msra.mxu0 0.0
  %1164 = vmatprep.subr.mxu0 0.0
  %1165 = vmatpush1.msra.mxu0 0.0
  %1166 = vmatprep.subr.mxu0 0.0
  %1167 = vmatpush1.msra.mxu0 0.0
  %1168 = vmatprep.subr.mxu0 0.0
  %1169 = vmatpush1.msra.mxu0 0.0
  %1170 = vmatprep.subr.mxu0 0.0
  %1171 = vmatpush1.msra.mxu0 0.0
  %1172 = vmatprep.subr.mxu0 0.0
  %1173 = vmatpush1.msra.mxu0 0.0
  %1174 = vmatprep.subr.mxu0 0.0
  %1175 = vmatpush1.msra.mxu0 0.0
  %1176 = vmatprep.subr.mxu0 0.0
  %1177 = vmatpush1.msra.mxu0 0.0
  %1178 = vmatprep.subr.mxu0 0.0
  %1179 = vmatpush1.msra.mxu0 0.0
  %1180 = vmatprep.subr.mxu0 0.0
  %1181 = vmatpush1.msra.mxu0 0.0
  %1182 = vmatprep.subr.mxu0 0.0
  %1183 = vmatpush1.msra.mxu0 0.0
  %1184 = vmatprep.mubr.f32.mxu0 0.0
  %1185 = vmatmul.mubr.f32.gmra.mrb[0].mxu0 %v1115
  %v1186 = vpop.f32.mrb[0].mxu0
  %v1187 = vadd.f32 %v1107, %v1186
  %v1188 = vpop.f32.mrb[0].mxu0
  %1189 = vmatprep.mubr.f32.mxu0 0.0
  %1190 = vmatmul.mubr.f32.gmra.mrb[0].mxu0 %v1118
  %v1191 = vpop.f32.mrb[0].mxu0
  %v1192 = vadd.f32 %v1112, %v1191
  %v1193 = vpop.f32.mrb[0].mxu0
  %1194 = vdwg.mxu0
  %v1195 = vmax.f32 %v1187, 0.0
  %v1196 = vmax.f32 %v1192, 0.0
  %v1197 = vpack.c.bf16 %v1196, %v1195
  %v1199 = vunpack.c.l.b16 %v1197
  %v1200 = vunpack.c.h.b16 %v1197
  %v1201 = vpack.c.b16 %v1199, %v1199
  %v1202 = vpack.c.b16 %v1200, %v1200
  %vm1205 = vcmask 11264
  %1206 = vst.msk [vmem:[%s14] sm:$0xf] %vm1205, %v1201
  %1207 = vst.msk [vmem:[%s14 + $0x4] sm:$0xf] %vm1205, %v1202
  %s1208 = scalar_lea.vmem %s10, 16
  %v1209 = vld [vmem:[%s1208] sm:$0xff]
  %v1210 = vld [vmem:[%s1208 + $0x8] sm:$0xff]
  %v1211 = vld [vmem:[%s11] sm:$0xff]
  %v1212 = vld [vmem:[%s11 + $0x8] sm:$0xff]
  %1214 = vset.pattern.permute.xlu0 0
  %1215 = vperm.xlu0 %1214, %v1211
  %v1216 = vpop.permute.xlu0 %1215
  %1219 = vset.pattern.permute.xlu0 0
  %1220 = vperm.xlu0 %1219, %v1212
  %v1221 = vpop.permute.xlu0 %1220
  %v1224 = vsel %vm205, %v1209, 0
  %v1227 = vsel %vm205, %v1210, 0
  %1229 = vmatprep.subr.mxu0 0.0
  %1230 = vmatpush1.msra.mxu0 %v1087
  %1231 = vmatprep.subr.mxu0 0.0
  %1232 = vmatpush1.msra.mxu0 0.0
  %1233 = vmatprep.subr.mxu0 0.0
  %1234 = vmatpush1.msra.mxu0 0.0
  %1235 = vmatprep.subr.mxu0 0.0
  %1236 = vmatpush1.msra.mxu0 0.0
  %1237 = vmatprep.subr.mxu0 0.0
  %1238 = vmatpush1.msra.mxu0 0.0
  %1239 = vmatprep.subr.mxu0 0.0
  %1240 = vmatpush1.msra.mxu0 0.0
  %1241 = vmatprep.subr.mxu0 0.0
  %1242 = vmatpush1.msra.mxu0 0.0
  %1243 = vmatprep.subr.mxu0 0.0
  %1244 = vmatpush1.msra.mxu0 0.0
  %1245 = vmatprep.subr.mxu0 0.0
  %1246 = vmatpush1.msra.mxu0 0.0
  %1247 = vmatprep.subr.mxu0 0.0
  %1248 = vmatpush1.msra.mxu0 0.0
  %1249 = vmatprep.subr.mxu0 0.0
  %1250 = vmatpush1.msra.mxu0 0.0
  %1251 = vmatprep.subr.mxu0 0.0
  %1252 = vmatpush1.msra.mxu0 0.0
  %1253 = vmatprep.subr.mxu0 0.0
  %1254 = vmatpush1.msra.mxu0 0.0
  %1255 = vmatprep.subr.mxu0 0.0
  %1256 = vmatpush1.msra.mxu0 0.0
  %1257 = vmatprep.subr.mxu0 0.0
  %1258 = vmatpush1.msra.mxu0 0.0
  %1259 = vmatprep.subr.mxu0 0.0
  %1260 = vmatpush1.msra.mxu0 0.0
  %1261 = vmatprep.subr.mxu0 0.0
  %1262 = vmatpush1.msra.mxu0 0.0
  %1263 = vmatprep.subr.mxu0 0.0
  %1264 = vmatpush1.msra.mxu0 0.0
  %1265 = vmatprep.subr.mxu0 0.0
  %1266 = vmatpush1.msra.mxu0 0.0
  %1267 = vmatprep.subr.mxu0 0.0
  %1268 = vmatpush1.msra.mxu0 0.0
  %1269 = vmatprep.subr.mxu0 0.0
  %1270 = vmatpush1.msra.mxu0 0.0
  %1271 = vmatprep.subr.mxu0 0.0
  %1272 = vmatpush1.msra.mxu0 0.0
  %1273 = vmatprep.subr.mxu0 0.0
  %1274 = vmatpush1.msra.mxu0 0.0
  %1275 = vmatprep.subr.mxu0 0.0
  %1276 = vmatpush1.msra.mxu0 0.0
  %1277 = vmatprep.subr.mxu0 0.0
  %1278 = vmatpush1.msra.mxu0 0.0
  %1279 = vmatprep.subr.mxu0 0.0
  %1280 = vmatpush1.msra.mxu0 0.0
  %1281 = vmatprep.subr.mxu0 0.0
  %1282 = vmatpush1.msra.mxu0 0.0
  %1283 = vmatprep.subr.mxu0 0.0
  %1284 = vmatpush1.msra.mxu0 0.0
  %1285 = vmatprep.subr.mxu0 0.0
  %1286 = vmatpush1.msra.mxu0 0.0
  %1287 = vmatprep.subr.mxu0 0.0
  %1288 = vmatpush1.msra.mxu0 0.0
  %1289 = vmatprep.subr.mxu0 0.0
  %1290 = vmatpush1.msra.mxu0 0.0
  %1291 = vmatprep.subr.mxu0 0.0
  %1292 = vmatpush1.msra.mxu0 0.0
  %1293 = vmatprep.mubr.f32.mxu0 0.0
  %1294 = vmatmul.mubr.f32.gmra.mrb[0].mxu0 %v1224
  %v1295 = vpop.f32.mrb[0].mxu0
  %v1296 = vadd.f32 %v1216, %v1295
  %v1297 = vpop.f32.mrb[0].mxu0
  %1298 = vmatprep.mubr.f32.mxu0 0.0
  %1299 = vmatmul.mubr.f32.gmra.mrb[0].mxu0 %v1227
  %v1300 = vpop.f32.mrb[0].mxu0
  %v1301 = vadd.f32 %v1221, %v1300
  %v1302 = vpop.f32.mrb[0].mxu0
  %1303 = vdwg.mxu0
  %v1304 = vmax.f32 %v1296, 0.0
  %v1305 = vmax.f32 %v1301, 0.0
  %v1306 = vpack.c.bf16 %v1305, %v1304
  %v1308 = vunpack.c.l.b16 %v1306
  %v1309 = vunpack.c.h.b16 %v1306
  %v1310 = vpack.c.b16 %v1308, %v1308
  %v1311 = vpack.c.b16 %v1309, %v1309
  %s1314 = scalar_lea.vmem %s14, 8
  %1315 = vst.msk [vmem:[%s1314] sm:$0xf] %vm1205, %v1310
  %1316 = vst.msk [vmem:[%s1314 + $0x4] sm:$0xf] %vm1205, %v1311
  %s1317 = scalar_lea.vmem %s10, 32
  %v1318 = vld [vmem:[%s1317] sm:$0xff]
  %v1319 = vld [vmem:[%s1317 + $0x8] sm:$0xff]
  %v1320 = vld [vmem:[%s11] sm:$0xff]
  %v1321 = vld [vmem:[%s11 + $0x8] sm:$0xff]
  %1323 = vset.pattern.permute.xlu0 0
  %1324 = vperm.xlu0 %1323, %v1320
  %v1325 = vpop.permute.xlu0 %1324
  %1328 = vset.pattern.permute.xlu0 0
  %1329 = vperm.xlu0 %1328, %v1321
  %v1330 = vpop.permute.xlu0 %1329
  %v1333 = vsel %vm205, %v1318, 0
  %v1336 = vsel %vm205, %v1319, 0
  %1338 = vmatprep.subr.mxu0 0.0
  %1339 = vmatpush1.msra.mxu0 %v1092
  %1340 = vmatprep.subr.mxu0 0.0
  %1341 = vmatpush1.msra.mxu0 0.0
  %1342 = vmatprep.subr.mxu0 0.0
  %1343 = vmatpush1.msra.mxu0 0.0
  %1344 = vmatprep.subr.mxu0 0.0
  %1345 = vmatpush1.msra.mxu0 0.0
  %1346 = vmatprep.subr.mxu0 0.0
  %1347 = vmatpush1.msra.mxu0 0.0
  %1348 = vmatprep.subr.mxu0 0.0
  %1349 = vmatpush1.msra.mxu0 0.0
  %1350 = vmatprep.subr.mxu0 0.0
  %1351 = vmatpush1.msra.mxu0 0.0
  %1352 = vmatprep.subr.mxu0 0.0
  %1353 = vmatpush1.msra.mxu0 0.0
  %1354 = vmatprep.subr.mxu0 0.0
  %1355 = vmatpush1.msra.mxu0 0.0
  %1356 = vmatprep.subr.mxu0 0.0
  %1357 = vmatpush1.msra.mxu0 0.0
  %1358 = vmatprep.subr.mxu0 0.0
  %1359 = vmatpush1.msra.mxu0 0.0
  %1360 = vmatprep.subr.mxu0 0.0
  %1361 = vmatpush1.msra.mxu0 0.0
  %1362 = vmatprep.subr.mxu0 0.0
  %1363 = vmatpush1.msra.mxu0 0.0
  %1364 = vmatprep.subr.mxu0 0.0
  %1365 = vmatpush1.msra.mxu0 0.0
  %1366 = vmatprep.subr.mxu0 0.0
  %1367 = vmatpush1.msra.mxu0 0.0
  %1368 = vmatprep.subr.mxu0 0.0
  %1369 = vmatpush1.msra.mxu0 0.0
  %1370 = vmatprep.subr.mxu0 0.0
  %1371 = vmatpush1.msra.mxu0 0.0
  %1372 = vmatprep.subr.mxu0 0.0
  %1373 = vmatpush1.msra.mxu0 0.0
  %1374 = vmatprep.subr.mxu0 0.0
  %1375 = vmatpush1.msra.mxu0 0.0
  %1376 = vmatprep.subr.mxu0 0.0
  %1377 = vmatpush1.msra.mxu0 0.0
  %1378 = vmatprep.subr.mxu0 0.0
  %1379 = vmatpush1.msra.mxu0 0.0
  %1380 = vmatprep.subr.mxu0 0.0
  %1381 = vmatpush1.msra.mxu0 0.0
  %1382 = vmatprep.subr.mxu0 0.0
  %1383 = vmatpush1.msra.mxu0 0.0
  %1384 = vmatprep.subr.mxu0 0.0
  %1385 = vmatpush1.msra.mxu0 0.0
  %1386 = vmatprep.subr.mxu0 0.0
  %1387 = vmatpush1.msra.mxu0 0.0
  %1388 = vmatprep.subr.mxu0 0.0
  %1389 = vmatpush1.msra.mxu0 0.0
  %1390 = vmatprep.subr.mxu0 0.0
  %1391 = vmatpush1.msra.mxu0 0.0
  %1392 = vmatprep.subr.mxu0 0.0
  %1393 = vmatpush1.msra.mxu0 0.0
  %1394 = vmatprep.subr.mxu0 0.0
  %1395 = vmatpush1.msra.mxu0 0.0
  %1396 = vmatprep.subr.mxu0 0.0
  %1397 = vmatpush1.msra.mxu0 0.0
  %1398 = vmatprep.subr.mxu0 0.0
  %1399 = vmatpush1.msra.mxu0 0.0
  %1400 = vmatprep.subr.mxu0 0.0
  %1401 = vmatpush1.msra.mxu0 0.0
  %1402 = vmatprep.mubr.f32.mxu0 0.0
  %1403 = vmatmul.mubr.f32.gmra.mrb[0].mxu0 %v1333
  %v1404 = vpop.f32.mrb[0].mxu0
  %v1405 = vadd.f32 %v1325, %v1404
  %v1406 = vpop.f32.mrb[0].mxu0
  %1407 = vmatprep.mubr.f32.mxu0 0.0
  %1408 = vmatmul.mubr.f32.gmra.mrb[0].mxu0 %v1336
  %v1409 = vpop.f32.mrb[0].mxu0
  %v1410 = vadd.f32 %v1330, %v1409
  %v1411 = vpop.f32.mrb[0].mxu0
  %1412 = vdwg.mxu0
  %v1413 = vmax.f32 %v1405, 0.0
  %v1414 = vmax.f32 %v1410, 0.0
  %v1415 = vpack.c.bf16 %v1414, %v1413
  %v1417 = vunpack.c.l.b16 %v1415
  %v1418 = vunpack.c.h.b16 %v1415
  %v1419 = vpack.c.b16 %v1417, %v1417
  %v1420 = vpack.c.b16 %v1418, %v1418
  %s1423 = scalar_lea.vmem %s14, 16
  %1424 = vst.msk [vmem:[%s1423] sm:$0xf] %vm1205, %v1419
  %1425 = vst.msk [vmem:[%s1423 + $0x4] sm:$0xf] %vm1205, %v1420
  %s1426 = scalar_lea.vmem %s10, 48
  %v1427 = vld [vmem:[%s1426] sm:$0xff]
  %v1428 = vld [vmem:[%s1426 + $0x8] sm:$0xff]
  %v1429 = vld [vmem:[%s11] sm:$0xff]
  %v1430 = vld [vmem:[%s11 + $0x8] sm:$0xff]
  %1432 = vset.pattern.permute.xlu0 0
  %1433 = vperm.xlu0 %1432, %v1429
  %v1434 = vpop.permute.xlu0 %1433
  %1437 = vset.pattern.permute.xlu0 0
  %1438 = vperm.xlu0 %1437, %v1430
  %v1439 = vpop.permute.xlu0 %1438
  %v1442 = vsel %vm205, %v1427, 0
  %v1445 = vsel %vm205, %v1428, 0
  %1447 = vmatprep.subr.mxu0 0.0
  %1448 = vmatpush1.msra.mxu0 %v1097
  %1449 = vmatprep.subr.mxu0 0.0
  %1450 = vmatpush1.msra.mxu0 0.0
  %1451 = vmatprep.subr.mxu0 0.0
  %1452 = vmatpush1.msra.mxu0 0.0
  %1453 = vmatprep.subr.mxu0 0.0
  %1454 = vmatpush1.msra.mxu0 0.0
  %1455 = vmatprep.subr.mxu0 0.0
  %1456 = vmatpush1.msra.mxu0 0.0
  %1457 = vmatprep.subr.mxu0 0.0
  %1458 = vmatpush1.msra.mxu0 0.0
  %1459 = vmatprep.subr.mxu0 0.0
  %1460 = vmatpush1.msra.mxu0 0.0
  %1461 = vmatprep.subr.mxu0 0.0
  %1462 = vmatpush1.msra.mxu0 0.0
  %1463 = vmatprep.subr.mxu0 0.0
  %1464 = vmatpush1.msra.mxu0 0.0
  %1465 = vmatprep.subr.mxu0 0.0
  %1466 = vmatpush1.msra.mxu0 0.0
  %1467 = vmatprep.subr.mxu0 0.0
  %1468 = vmatpush1.msra.mxu0 0.0
  %1469 = vmatprep.subr.mxu0 0.0
  %1470 = vmatpush1.msra.mxu0 0.0
  %1471 = vmatprep.subr.mxu0 0.0
  %1472 = vmatpush1.msra.mxu0 0.0
  %1473 = vmatprep.subr.mxu0 0.0
  %1474 = vmatpush1.msra.mxu0 0.0
  %1475 = vmatprep.subr.mxu0 0.0
  %1476 = vmatpush1.msra.mxu0 0.0
  %1477 = vmatprep.subr.mxu0 0.0
  %1478 = vmatpush1.msra.mxu0 0.0
  %1479 = vmatprep.subr.mxu0 0.0
  %1480 = vmatpush1.msra.mxu0 0.0
  %1481 = vmatprep.subr.mxu0 0.0
  %1482 = vmatpush1.msra.mxu0 0.0
  %1483 = vmatprep.subr.mxu0 0.0
  %1484 = vmatpush1.msra.mxu0 0.0
  %1485 = vmatprep.subr.mxu0 0.0
  %1486 = vmatpush1.msra.mxu0 0.0
  %1487 = vmatprep.subr.mxu0 0.0
  %1488 = vmatpush1.msra.mxu0 0.0
  %1489 = vmatprep.subr.mxu0 0.0
  %1490 = vmatpush1.msra.mxu0 0.0
  %1491 = vmatprep.subr.mxu0 0.0
  %1492 = vmatpush1.msra.mxu0 0.0
  %1493 = vmatprep.subr.mxu0 0.0
  %1494 = vmatpush1.msra.mxu0 0.0
  %1495 = vmatprep.subr.mxu0 0.0
  %1496 = vmatpush1.msra.mxu0 0.0
  %1497 = vmatprep.subr.mxu0 0.0
  %1498 = vmatpush1.msra.mxu0 0.0
  %1499 = vmatprep.subr.mxu0 0.0
  %1500 = vmatpush1.msra.mxu0 0.0
  %1501 = vmatprep.subr.mxu0 0.0
  %1502 = vmatpush1.msra.mxu0 0.0
  %1503 = vmatprep.subr.mxu0 0.0
  %1504 = vmatpush1.msra.mxu0 0.0
  %1505 = vmatprep.subr.mxu0 0.0
  %1506 = vmatpush1.msra.mxu0 0.0
  %1507 = vmatprep.subr.mxu0 0.0
  %1508 = vmatpush1.msra.mxu0 0.0
  %1509 = vmatprep.subr.mxu0 0.0
  %1510 = vmatpush1.msra.mxu0 0.0
  %1511 = vmatprep.mubr.f32.mxu0 0.0
  %1512 = vmatmul.mubr.f32.gmra.mrb[0].mxu0 %v1442
  %v1513 = vpop.f32.mrb[0].mxu0
  %v1514 = vadd.f32 %v1434, %v1513
  %v1515 = vpop.f32.mrb[0].mxu0
  %1516 = vmatprep.mubr.f32.mxu0 0.0
  %1517 = vmatmul.mubr.f32.gmra.mrb[0].mxu0 %v1445
  %v1518 = vpop.f32.mrb[0].mxu0
  %v1519 = vadd.f32 %v1439, %v1518
  %v1520 = vpop.f32.mrb[0].mxu0
  %1521 = vdwg.mxu0
  %v1522 = vmax.f32 %v1514, 0.0
  %v1523 = vmax.f32 %v1519, 0.0
  %v1524 = vpack.c.bf16 %v1523, %v1522
  %v1526 = vunpack.c.l.b16 %v1524
  %v1527 = vunpack.c.h.b16 %v1524
  %v1528 = vpack.c.b16 %v1526, %v1526
  %v1529 = vpack.c.b16 %v1527, %v1527
  %s1532 = scalar_lea.vmem %s14, 24
  %1533 = vst.msk [vmem:[%s1532] sm:$0xf] %vm1205, %v1528
  %1534 = vst.msk [vmem:[%s1532 + $0x4] sm:$0xf] %vm1205, %v1529
  %1535 = vst.msk [vmem:[%s12] sm:$0xf] %vm1205, %v956
  %1536 = vst.msk [vmem:[%s13] sm:$0xf] %vm1205, %v963
  // Predicated region
  $region50: #{forward.10} parent=0 // pred_check
    _
  $region51: #{forward.10} parent=0 // pred_check_branch
    %1538 = sbr.rel (0) target = $region53
  $region52: #{forward.10} parent=0 // pred_region
    _
  $region53: #{forward.10} parent=0 // pred_fallthru
    _
  // Predicated region
  $region54: #{forward.10} parent=0 // pred_check
    _
  $region55: #{forward.10} parent=0 // pred_check_branch
    %1540 = sbr.rel (0) target = $region57
  $region56: #{forward.10} parent=0 // pred_region
    _
  $region57: #{forward.10} parent=0 // pred_fallthru
    _
  // Predicated region
  $region58: #{forward.10} parent=0 // pred_check
    _
  $region59: #{forward.10} parent=0 // pred_check_branch
    %1542 = sbr.rel (0) target = $region61
  $region60: #{forward.10} parent=0 // pred_region
    _
  $region61: #{forward.10} parent=0 // pred_fallthru
    _
  // Predicated region
  $region62: #{forward.10} parent=0 // pred_check
    _
  $region63: #{forward.10} parent=0 // pred_check_branch
    %1544 = sbr.rel (0) target = $region65
  $region64: #{forward.10} parent=0 // pred_region
    _
  $region65: #{forward.10} parent=0 // pred_fallthru
    _
  // Predicated region
  $region66: #{forward.10} parent=0 // pred_check
    _
  $region67: #{forward.10} parent=0 // pred_check_branch
    %1546 = sbr.rel (0) target = $region69
  $region68: #{forward.10} parent=0 // pred_region
    _
  $region69: #{forward.10} parent=0 // pred_fallthru
    _
  // Predicated region
  $region70: #{forward.10} parent=0 // pred_check
    _
  $region71: #{forward.10} parent=0 // pred_check_branch
    %1548 = sbr.rel (0) target = $region73
  $region72: #{forward.10} parent=0 // pred_region
    _
  $region73: #{forward.10} parent=0 // pred_fallthru
    _

// kernel: forward.11
$region0: #{forward.11}
  #allocation0 [shape = 'u32[]', space=smem, size = 0x4, offset = 0x4, fixed_abs, tag = 'smem constant byte address 0x4 - core index']
  #allocation1 [shape = 'u32[144,128]{1,0:T(1,128)}', space=vmem, size = 0x12000, scoped, tag = 'internal scratch']
  %s0 = inlined_call_operand.vmem [shape: bf16[32,1024], index: 0, kind: input, shape index: {}]
  %s1 = inlined_call_operand.vmem [shape: f32[32,1], index: 1, kind: input, shape index: {}]
  %s2 = inlined_call_operand.vmem [shape: bf16[1024,128], index: 2, kind: input, shape index: {}]
  %s3 = inlined_call_operand.vmem [shape: bf16[32,128], index: 3, kind: output, shape index: {}]
  %s4 = sld [smem:[#allocation0]]
  $region22: #{forward.11} parent=0
    _
  %s6 = ssub.s32 1, %s4
  %s7 = scalar_select 0, %s6, %s4
  // Predicated region
  $region2: #{forward.11} parent=0 // pred_check
    _
  $region3: #{forward.11} parent=0 // pred_check_branch
    %9 = sbr.rel (0) target = $region5
  $region4: #{forward.11} parent=0 // pred_region
    _
  $region5: #{forward.11} parent=0 // pred_fallthru
    _
  // Predicated region
  $region6: #{forward.11} parent=0 // pred_check
    _
  $region7: #{forward.11} parent=0 // pred_check_branch
    %11 = sbr.rel (0) target = $region9
  $region8: #{forward.11} parent=0 // pred_region
    _
  $region9: #{forward.11} parent=0 // pred_fallthru
    _
  // Predicated region
  $region10: #{forward.11} parent=0 // pred_check
    _
  $region11: #{forward.11} parent=0 // pred_check_branch
    %13 = sbr.rel (0) target = $region13
  $region12: #{forward.11} parent=0 // pred_region
    _
  $region13: #{forward.11} parent=0 // pred_fallthru
    _
  %v15 = vld [vmem:[%s0] sm:$0xff]
  %v16 = vld [vmem:[%s0 + $0x8] sm:$0xff]
  %v17 = vld [vmem:[%s0 + $0x10] sm:$0xff]
  %v18 = vld [vmem:[%s0 + $0x18] sm:$0xff]
  %v19 = vld [vmem:[%s0 + $0x20] sm:$0xff]
  %v20 = vld [vmem:[%s0 + $0x28] sm:$0xff]
  %v21 = vld [vmem:[%s0 + $0x30] sm:$0xff]
  %v22 = vld [vmem:[%s0 + $0x38] sm:$0xff]
  %v23 = vld [vmem:[%s0 + $0x40] sm:$0xff]
  %v24 = vld [vmem:[%s0 + $0x48] sm:$0xff]
  %v25 = vld [vmem:[%s0 + $0x50] sm:$0xff]
  %v26 = vld [vmem:[%s0 + $0x58] sm:$0xff]
  %v27 = vld [vmem:[%s0 + $0x60] sm:$0xff]
  %v28 = vld [vmem:[%s0 + $0x68] sm:$0xff]
  %v29 = vld [vmem:[%s0 + $0x70] sm:$0xff]
  %v30 = vld [vmem:[%s0 + $0x78] sm:$0xff]
  %v31 = vld [vmem:[%s2] sm:$0xf]
  %v32 = vld [vmem:[%s2 + $0x4] sm:$0xf]
  %v33 = vld [vmem:[%s2 + $0x8] sm:$0xf]
  %v34 = vld [vmem:[%s2 + $0xc] sm:$0xf]
  %v35 = vld [vmem:[%s2 + $0x10] sm:$0xf]
  %v36 = vld [vmem:[%s2 + $0x14] sm:$0xf]
  %v37 = vld [vmem:[%s2 + $0x18] sm:$0xf]
  %v38 = vld [vmem:[%s2 + $0x1c] sm:$0xf]
  %v39 = vld [vmem:[%s2 + $0x20] sm:$0xf]
  %v40 = vld [vmem:[%s2 + $0x24] sm:$0xf]
  %v41 = vld [vmem:[%s2 + $0x28] sm:$0xf]
  %v42 = vld [vmem:[%s2 + $0x2c] sm:$0xf]
  %v43 = vld [vmem:[%s2 + $0x30] sm:$0xf]
  %v44 = vld [vmem:[%s2 + $0x34] sm:$0xf]
  %v45 = vld [vmem:[%s2 + $0x38] sm:$0xf]
  %v46 = vld [vmem:[%s2 + $0x3c] sm:$0xf]
  %v47 = vld [vmem:[%s2 + $0x40] sm:$0xf]
  %v48 = vld [vmem:[%s2 + $0x44] sm:$0xf]
  %v49 = vld [vmem:[%s2 + $0x48] sm:$0xf]
  %v50 = vld [vmem:[%s2 + $0x4c] sm:$0xf]
  %v51 = vld [vmem:[%s2 + $0x50] sm:$0xf]
  %v52 = vld [vmem:[%s2 + $0x54] sm:$0xf]
  %v53 = vld [vmem:[%s2 + $0x58] sm:$0xf]
  %v54 = vld [vmem:[%s2 + $0x5c] sm:$0xf]
  %v55 = vld [vmem:[%s2 + $0x60] sm:$0xf]
  %v56 = vld [vmem:[%s2 + $0x64] sm:$0xf]
  %v57 = vld [vmem:[%s2 + $0x68] sm:$0xf]
  %v58 = vld [vmem:[%s2 + $0x6c] sm:$0xf]
  %v59 = vld [vmem:[%s2 + $0x70] sm:$0xf]
  %v60 = vld [vmem:[%s2 + $0x74] sm:$0xf]
  %v61 = vld [vmem:[%s2 + $0x78] sm:$0xf]
  %v62 = vld [vmem:[%s2 + $0x7c] sm:$0xf]
  %v63 = vld [vmem:[%s2 + $0x80] sm:$0xf]
  %v64 = vld [vmem:[%s2 + $0x84] sm:$0xf]
  %v65 = vld [vmem:[%s2 + $0x88] sm:$0xf]
  %v66 = vld [vmem:[%s2 + $0x8c] sm:$0xf]
  %v67 = vld [vmem:[%s2 + $0x90] sm:$0xf]
  %v68 = vld [vmem:[%s2 + $0x94] sm:$0xf]
  %v69 = vld [vmem:[%s2 + $0x98] sm:$0xf]
  %v70 = vld [vmem:[%s2 + $0x9c] sm:$0xf]
  %v71 = vld [vmem:[%s2 + $0xa0] sm:$0xf]
  %v72 = vld [vmem:[%s2 + $0xa4] sm:$0xf]
  %v73 = vld [vmem:[%s2 + $0xa8] sm:$0xf]
  %v74 = vld [vmem:[%s2 + $0xac] sm:$0xf]
  %v75 = vld [vmem:[%s2 + $0xb0] sm:$0xf]
  %v76 = vld [vmem:[%s2 + $0xb4] sm:$0xf]
  %v77 = vld [vmem:[%s2 + $0xb8] sm:$0xf]
  %v78 = vld [vmem:[%s2 + $0xbc] sm:$0xf]
  %v79 = vld [vmem:[%s2 + $0xc0] sm:$0xf]
  %v80 = vld [vmem:[%s2 + $0xc4] sm:$0xf]
  %v81 = vld [vmem:[%s2 + $0xc8] sm:$0xf]
  %v82 = vld [vmem:[%s2 + $0xcc] sm:$0xf]
  %v83 = vld [vmem:[%s2 + $0xd0] sm:$0xf]
  %v84 = vld [vmem:[%s2 + $0xd4] sm:$0xf]
  %v85 = vld [vmem:[%s2 + $0xd8] sm:$0xf]
  %v86 = vld [vmem:[%s2 + $0xdc] sm:$0xf]
  %v87 = vld [vmem:[%s2 + $0xe0] sm:$0xf]
  %v88 = vld [vmem:[%s2 + $0xe4] sm:$0xf]
  %v89 = vld [vmem:[%s2 + $0xe8] sm:$0xf]
  %v90 = vld [vmem:[%s2 + $0xec] sm:$0xf]
  %v91 = vld [vmem:[%s2 + $0xf0] sm:$0xf]
  %v92 = vld [vmem:[%s2 + $0xf4] sm:$0xf]
  %v93 = vld [vmem:[%s2 + $0xf8] sm:$0xf]
  %v94 = vld [vmem:[%s2 + $0xfc] sm:$0xf]
  %v95 = vld [vmem:[%s2 + $0x100] sm:$0xf]
  %v96 = vld [vmem:[%s2 + $0x104] sm:$0xf]
  %v97 = vld [vmem:[%s2 + $0x108] sm:$0xf]
  %v98 = vld [vmem:[%s2 + $0x10c] sm:$0xf]
  %v99 = vld [vmem:[%s2 + $0x110] sm:$0xf]
  %v100 = vld [vmem:[%s2 + $0x114] sm:$0xf]
  %v101 = vld [vmem:[%s2 + $0x118] sm:$0xf]
  %v102 = vld [vmem:[%s2 + $0x11c] sm:$0xf]
  %v103 = vld [vmem:[%s2 + $0x120] sm:$0xf]
  %v104 = vld [vmem:[%s2 + $0x124] sm:$0xf]
  %v105 = vld [vmem:[%s2 + $0x128] sm:$0xf]
  %v106 = vld [vmem:[%s2 + $0x12c] sm:$0xf]
  %v107 = vld [vmem:[%s2 + $0x130] sm:$0xf]
  %v108 = vld [vmem:[%s2 + $0x134] sm:$0xf]
  %v109 = vld [vmem:[%s2 + $0x138] sm:$0xf]
  %v110 = vld [vmem:[%s2 + $0x13c] sm:$0xf]
  %v111 = vld [vmem:[%s2 + $0x140] sm:$0xf]
  %v112 = vld [vmem:[%s2 + $0x144] sm:$0xf]
  %v113 = vld [vmem:[%s2 + $0x148] sm:$0xf]
  %v114 = vld [vmem:[%s2 + $0x14c] sm:$0xf]
  %v115 = vld [vmem:[%s2 + $0x150] sm:$0xf]
  %v116 = vld [vmem:[%s2 + $0x154] sm:$0xf]
  %v117 = vld [vmem:[%s2 + $0x158] sm:$0xf]
  %v118 = vld [vmem:[%s2 + $0x15c] sm:$0xf]
  %v119 = vld [vmem:[%s2 + $0x160] sm:$0xf]
  %v120 = vld [vmem:[%s2 + $0x164] sm:$0xf]
  %v121 = vld [vmem:[%s2 + $0x168] sm:$0xf]
  %v122 = vld [vmem:[%s2 + $0x16c] sm:$0xf]
  %v123 = vld [vmem:[%s2 + $0x170] sm:$0xf]
  %v124 = vld [vmem:[%s2 + $0x174] sm:$0xf]
  %v125 = vld [vmem:[%s2 + $0x178] sm:$0xf]
  %v126 = vld [vmem:[%s2 + $0x17c] sm:$0xf]
  %v127 = vld [vmem:[%s2 + $0x180] sm:$0xf]
  %v128 = vld [vmem:[%s2 + $0x184] sm:$0xf]
  %v129 = vld [vmem:[%s2 + $0x188] sm:$0xf]
  %v130 = vld [vmem:[%s2 + $0x18c] sm:$0xf]
  %v131 = vld [vmem:[%s2 + $0x190] sm:$0xf]
  %v132 = vld [vmem:[%s2 + $0x194] sm:$0xf]
  %v133 = vld [vmem:[%s2 + $0x198] sm:$0xf]
  %v134 = vld [vmem:[%s2 + $0x19c] sm:$0xf]
  %v135 = vld [vmem:[%s2 + $0x1a0] sm:$0xf]
  %v136 = vld [vmem:[%s2 + $0x1a4] sm:$0xf]
  %v137 = vld [vmem:[%s2 + $0x1a8] sm:$0xf]
  %v138 = vld [vmem:[%s2 + $0x1ac] sm:$0xf]
  %v139 = vld [vmem:[%s2 + $0x1b0] sm:$0xf]
  %v140 = vld [vmem:[%s2 + $0x1b4] sm:$0xf]
  %v141 = vld [vmem:[%s2 + $0x1b8] sm:$0xf]
  %v142 = vld [vmem:[%s2 + $0x1bc] sm:$0xf]
  %v143 = vld [vmem:[%s2 + $0x1c0] sm:$0xf]
  %v144 = vld [vmem:[%s2 + $0x1c4] sm:$0xf]
  %v145 = vld [vmem:[%s2 + $0x1c8] sm:$0xf]
  %v146 = vld [vmem:[%s2 + $0x1cc] sm:$0xf]
  %v147 = vld [vmem:[%s2 + $0x1d0] sm:$0xf]
  %v148 = vld [vmem:[%s2 + $0x1d4] sm:$0xf]
  %v149 = vld [vmem:[%s2 + $0x1d8] sm:$0xf]
  %v150 = vld [vmem:[%s2 + $0x1dc] sm:$0xf]
  %v151 = vld [vmem:[%s2 + $0x1e0] sm:$0xf]
  %v152 = vld [vmem:[%s2 + $0x1e4] sm:$0xf]
  %v153 = vld [vmem:[%s2 + $0x1e8] sm:$0xf]
  %v154 = vld [vmem:[%s2 + $0x1ec] sm:$0xf]
  %v155 = vld [vmem:[%s2 + $0x1f0] sm:$0xf]
  %v156 = vld [vmem:[%s2 + $0x1f4] sm:$0xf]
  %v157 = vld [vmem:[%s2 + $0x1f8] sm:$0xf]
  %v158 = vld [vmem:[%s2 + $0x1fc] sm:$0xf]
  %v159 = vld [vmem:[%s1] sm:$0xff]
  %v160 = vld [vmem:[%s1 + $0x8] sm:$0xff]
  %v161 = vld [vmem:[%s1 + $0x10] sm:$0xff]
  %v162 = vld [vmem:[%s1 + $0x18] sm:$0xff]
  %164 = vset.pattern.permute.xlu0 0
  %165 = vperm.xlu0 %164, %v159
  %v166 = vpop.permute.xlu0 %165
  %169 = vset.pattern.permute.xlu0 0
  %170 = vperm.xlu0 %169, %v160
  %v171 = vpop.permute.xlu0 %170
  %174 = vset.pattern.permute.xlu0 0
  %175 = vperm.xlu0 %174, %v161
  %v176 = vpop.permute.xlu0 %175
  %179 = vset.pattern.permute.xlu0 0
  %180 = vperm.xlu0 %179, %v162
  %v181 = vpop.permute.xlu0 %180
  %v199 = vunpack.c.l.b16 %v15
  %v200 = vunpack.c.h.b16 %v15
  %v201 = vunpack.c.l.b16 %v16
  %v202 = vunpack.c.h.b16 %v16
  %v203 = vunpack.c.l.b16 %v17
  %v204 = vunpack.c.h.b16 %v17
  %v205 = vunpack.c.l.b16 %v18
  %v206 = vunpack.c.h.b16 %v18
  %v207 = vunpack.c.l.b16 %v19
  %v208 = vunpack.c.h.b16 %v19
  %v209 = vunpack.c.l.b16 %v20
  %v210 = vunpack.c.h.b16 %v20
  %v211 = vunpack.c.l.b16 %v21
  %v212 = vunpack.c.h.b16 %v21
  %v213 = vunpack.c.l.b16 %v22
  %v214 = vunpack.c.h.b16 %v22
  %v215 = vunpack.c.l.b16 %v23
  %v216 = vunpack.c.h.b16 %v23
  %v217 = vunpack.c.l.b16 %v24
  %v218 = vunpack.c.h.b16 %v24
  %v219 = vunpack.c.l.b16 %v25
  %v220 = vunpack.c.h.b16 %v25
  %v221 = vunpack.c.l.b16 %v26
  %v222 = vunpack.c.h.b16 %v26
  %v223 = vunpack.c.l.b16 %v27
  %v224 = vunpack.c.h.b16 %v27
  %v225 = vunpack.c.l.b16 %v28
  %v226 = vunpack.c.h.b16 %v28
  %v227 = vunpack.c.l.b16 %v29
  %v228 = vunpack.c.h.b16 %v29
  %v229 = vunpack.c.l.b16 %v30
  %v230 = vunpack.c.h.b16 %v30
  %v231 = vpack.c.b16 %v207, %v199
  %v232 = vpack.c.b16 %v208, %v200
  %v233 = vpack.c.b16 %v209, %v201
  %v234 = vpack.c.b16 %v210, %v202
  %v235 = vpack.c.b16 %v211, %v203
  %v236 = vpack.c.b16 %v212, %v204
  %v237 = vpack.c.b16 %v213, %v205
  %v238 = vpack.c.b16 %v214, %v206
  %v239 = vpack.c.b16 %v223, %v215
  %v240 = vpack.c.b16 %v224, %v216
  %v241 = vpack.c.b16 %v225, %v217
  %v242 = vpack.c.b16 %v226, %v218
  %v243 = vpack.c.b16 %v227, %v219
  %v244 = vpack.c.b16 %v228, %v220
  %v245 = vpack.c.b16 %v229, %v221
  %v246 = vpack.c.b16 %v230, %v222
  %v391 = vunpack.c.l.b16 %v31
  %v392 = vunpack.c.l.b16 %v32
  %v393 = vunpack.c.l.b16 %v33
  %v394 = vunpack.c.l.b16 %v34
  %v395 = vunpack.c.l.b16 %v35
  %v396 = vunpack.c.l.b16 %v36
  %v397 = vunpack.c.l.b16 %v37
  %v398 = vunpack.c.l.b16 %v38
  %v399 = vunpack.c.l.b16 %v39
  %v400 = vunpack.c.l.b16 %v40
  %v401 = vunpack.c.l.b16 %v41
  %v402 = vunpack.c.l.b16 %v42
  %v403 = vunpack.c.l.b16 %v43
  %v404 = vunpack.c.l.b16 %v44
  %v405 = vunpack.c.l.b16 %v45
  %v406 = vunpack.c.l.b16 %v46
  %v407 = vunpack.c.l.b16 %v47
  %v408 = vunpack.c.l.b16 %v48
  %v409 = vunpack.c.l.b16 %v49
  %v410 = vunpack.c.l.b16 %v50
  %v411 = vunpack.c.l.b16 %v51
  %v412 = vunpack.c.l.b16 %v52
  %v413 = vunpack.c.l.b16 %v53
  %v414 = vunpack.c.l.b16 %v54
  %v415 = vunpack.c.l.b16 %v55
  %v416 = vunpack.c.l.b16 %v56
  %v417 = vunpack.c.l.b16 %v57
  %v418 = vunpack.c.l.b16 %v58
  %v419 = vunpack.c.l.b16 %v59
  %v420 = vunpack.c.l.b16 %v60
  %v421 = vunpack.c.l.b16 %v61
  %v422 = vunpack.c.l.b16 %v62
  %v423 = vunpack.c.l.b16 %v63
  %v424 = vunpack.c.l.b16 %v64
  %v425 = vunpack.c.l.b16 %v65
  %v426 = vunpack.c.l.b16 %v66
  %v427 = vunpack.c.l.b16 %v67
  %v428 = vunpack.c.l.b16 %v68
  %v429 = vunpack.c.l.b16 %v69
  %v430 = vunpack.c.l.b16 %v70
  %v431 = vunpack.c.l.b16 %v71
  %v432 = vunpack.c.l.b16 %v72
  %v433 = vunpack.c.l.b16 %v73
  %v434 = vunpack.c.l.b16 %v74
  %v435 = vunpack.c.l.b16 %v75
  %v436 = vunpack.c.l.b16 %v76
  %v437 = vunpack.c.l.b16 %v77
  %v438 = vunpack.c.l.b16 %v78
  %v439 = vunpack.c.l.b16 %v79
  %v440 = vunpack.c.l.b16 %v80
  %v441 = vunpack.c.l.b16 %v81
  %v442 = vunpack.c.l.b16 %v82
  %v443 = vunpack.c.l.b16 %v83
  %v444 = vunpack.c.l.b16 %v84
  %v445 = vunpack.c.l.b16 %v85
  %v446 = vunpack.c.l.b16 %v86
  %v447 = vunpack.c.l.b16 %v87
  %v448 = vunpack.c.l.b16 %v88
  %v449 = vunpack.c.l.b16 %v89
  %v450 = vunpack.c.l.b16 %v90
  %v451 = vunpack.c.l.b16 %v91
  %v452 = vunpack.c.l.b16 %v92
  %v453 = vunpack.c.l.b16 %v93
  %v454 = vunpack.c.l.b16 %v94
  %v455 = vunpack.c.l.b16 %v95
  %v456 = vunpack.c.l.b16 %v96
  %v457 = vunpack.c.l.b16 %v97
  %v458 = vunpack.c.l.b16 %v98
  %v459 = vunpack.c.l.b16 %v99
  %v460 = vunpack.c.l.b16 %v100
  %v461 = vunpack.c.l.b16 %v101
  %v462 = vunpack.c.l.b16 %v102
  %v463 = vunpack.c.l.b16 %v103
  %v464 = vunpack.c.l.b16 %v104
  %v465 = vunpack.c.l.b16 %v105
  %v466 = vunpack.c.l.b16 %v106
  %v467 = vunpack.c.l.b16 %v107
  %v468 = vunpack.c.l.b16 %v108
  %v469 = vunpack.c.l.b16 %v109
  %v470 = vunpack.c.l.b16 %v110
  %v471 = vunpack.c.l.b16 %v111
  %v472 = vunpack.c.l.b16 %v112
  %v473 = vunpack.c.l.b16 %v113
  %v474 = vunpack.c.l.b16 %v114
  %v475 = vunpack.c.l.b16 %v115
  %v476 = vunpack.c.l.b16 %v116
  %v477 = vunpack.c.l.b16 %v117
  %v478 = vunpack.c.l.b16 %v118
  %v479 = vunpack.c.l.b16 %v119
  %v480 = vunpack.c.l.b16 %v120
  %v481 = vunpack.c.l.b16 %v121
  %v482 = vunpack.c.l.b16 %v122
  %v483 = vunpack.c.l.b16 %v123
  %v484 = vunpack.c.l.b16 %v124
  %v485 = vunpack.c.l.b16 %v125
  %v486 = vunpack.c.l.b16 %v126
  %v487 = vunpack.c.l.b16 %v127
  %v488 = vunpack.c.l.b16 %v128
  %v489 = vunpack.c.l.b16 %v129
  %v490 = vunpack.c.l.b16 %v130
  %v491 = vunpack.c.l.b16 %v131
  %v492 = vunpack.c.l.b16 %v132
  %v493 = vunpack.c.l.b16 %v133
  %v494 = vunpack.c.l.b16 %v134
  %v495 = vunpack.c.l.b16 %v135
  %v496 = vunpack.c.l.b16 %v136
  %v497 = vunpack.c.l.b16 %v137
  %v498 = vunpack.c.l.b16 %v138
  %v499 = vunpack.c.l.b16 %v139
  %v500 = vunpack.c.l.b16 %v140
  %v501 = vunpack.c.l.b16 %v141
  %v502 = vunpack.c.l.b16 %v142
  %v503 = vunpack.c.l.b16 %v143
  %v504 = vunpack.c.l.b16 %v144
  %v505 = vunpack.c.l.b16 %v145
  %v506 = vunpack.c.l.b16 %v146
  %v507 = vunpack.c.l.b16 %v147
  %v508 = vunpack.c.l.b16 %v148
  %v509 = vunpack.c.l.b16 %v149
  %v510 = vunpack.c.l.b16 %v150
  %v511 = vunpack.c.l.b16 %v151
  %v512 = vunpack.c.l.b16 %v152
  %v513 = vunpack.c.l.b16 %v153
  %v514 = vunpack.c.l.b16 %v154
  %v515 = vunpack.c.l.b16 %v155
  %v516 = vunpack.c.l.b16 %v156
  %v517 = vunpack.c.l.b16 %v157
  %v518 = vunpack.c.l.b16 %v158
  %v519 = vpack.c.b16 %v392, %v391
  %v520 = vpack.c.b16 %v394, %v393
  %v521 = vpack.c.b16 %v396, %v395
  %v522 = vpack.c.b16 %v398, %v397
  %v523 = vpack.c.b16 %v400, %v399
  %v524 = vpack.c.b16 %v402, %v401
  %v525 = vpack.c.b16 %v404, %v403
  %v526 = vpack.c.b16 %v406, %v405
  %v527 = vpack.c.b16 %v408, %v407
  %v528 = vpack.c.b16 %v410, %v409
  %v529 = vpack.c.b16 %v412, %v411
  %v530 = vpack.c.b16 %v414, %v413
  %v531 = vpack.c.b16 %v416, %v415
  %v532 = vpack.c.b16 %v418, %v417
  %v533 = vpack.c.b16 %v420, %v419
  %v534 = vpack.c.b16 %v422, %v421
  %v535 = vpack.c.b16 %v424, %v423
  %v536 = vpack.c.b16 %v426, %v425
  %v537 = vpack.c.b16 %v428, %v427
  %v538 = vpack.c.b16 %v430, %v429
  %v539 = vpack.c.b16 %v432, %v431
  %v540 = vpack.c.b16 %v434, %v433
  %v541 = vpack.c.b16 %v436, %v435
  %v542 = vpack.c.b16 %v438, %v437
  %v543 = vpack.c.b16 %v440, %v439
  %v544 = vpack.c.b16 %v442, %v441
  %v545 = vpack.c.b16 %v444, %v443
  %v546 = vpack.c.b16 %v446, %v445
  %v547 = vpack.c.b16 %v448, %v447
  %v548 = vpack.c.b16 %v450, %v449
  %v549 = vpack.c.b16 %v452, %v451
  %v550 = vpack.c.b16 %v454, %v453
  %v551 = vpack.c.b16 %v456, %v455
  %v552 = vpack.c.b16 %v458, %v457
  %v553 = vpack.c.b16 %v460, %v459
  %v554 = vpack.c.b16 %v462, %v461
  %v555 = vpack.c.b16 %v464, %v463
  %v556 = vpack.c.b16 %v466, %v465
  %v557 = vpack.c.b16 %v468, %v467
  %v558 = vpack.c.b16 %v470, %v469
  %v559 = vpack.c.b16 %v472, %v471
  %v560 = vpack.c.b16 %v474, %v473
  %v561 = vpack.c.b16 %v476, %v475
  %v562 = vpack.c.b16 %v478, %v477
  %v563 = vpack.c.b16 %v480, %v479
  %v564 = vpack.c.b16 %v482, %v481
  %v565 = vpack.c.b16 %v484, %v483
  %v566 = vpack.c.b16 %v486, %v485
  %v567 = vpack.c.b16 %v488, %v487
  %v568 = vpack.c.b16 %v490, %v489
  %v569 = vpack.c.b16 %v492, %v491
  %v570 = vpack.c.b16 %v494, %v493
  %v571 = vpack.c.b16 %v496, %v495
  %v572 = vpack.c.b16 %v498, %v497
  %v573 = vpack.c.b16 %v500, %v499
  %v574 = vpack.c.b16 %v502, %v501
  %v575 = vpack.c.b16 %v504, %v503
  %v576 = vpack.c.b16 %v506, %v505
  %v577 = vpack.c.b16 %v508, %v507
  %v578 = vpack.c.b16 %v510, %v509
  %v579 = vpack.c.b16 %v512, %v511
  %v580 = vpack.c.b16 %v514, %v513
  %v581 = vpack.c.b16 %v516, %v515
  %v582 = vpack.c.b16 %v518, %v517
  %647 = vmatprep.subr.bf16.mxu0 0
  %648 = vmatpush1.bf16.msra.mxu0 %v519
  %649 = vmatprep.subr.bf16.mxu0 0
  %650 = vmatpush1.bf16.msra.mxu0 %v520
  %651 = vmatprep.subr.bf16.mxu0 0
  %652 = vmatpush1.bf16.msra.mxu0 %v521
  %653 = vmatprep.subr.bf16.mxu0 0
  %654 = vmatpush1.bf16.msra.mxu0 %v522
  %655 = vmatprep.subr.bf16.mxu0 0
  %656 = vmatpush1.bf16.msra.mxu0 %v523
  %657 = vmatprep.subr.bf16.mxu0 0
  %658 = vmatpush1.bf16.msra.mxu0 %v524
  %659 = vmatprep.subr.bf16.mxu0 0
  %660 = vmatpush1.bf16.msra.mxu0 %v525
  %661 = vmatprep.subr.bf16.mxu0 0
  %662 = vmatpush1.bf16.msra.mxu0 %v526
  %663 = vmatprep.subr.bf16.mxu0 0
  %664 = vmatpush1.bf16.msra.mxu0 %v527
  %665 = vmatprep.subr.bf16.mxu0 0
  %666 = vmatpush1.bf16.msra.mxu0 %v528
  %667 = vmatprep.subr.bf16.mxu0 0
  %668 = vmatpush1.bf16.msra.mxu0 %v529
  %669 = vmatprep.subr.bf16.mxu0 0
  %670 = vmatpush1.bf16.msra.mxu0 %v530
  %671 = vmatprep.subr.bf16.mxu0 0
  %672 = vmatpush1.bf16.msra.mxu0 %v531
  %673 = vmatprep.subr.bf16.mxu0 0
  %674 = vmatpush1.bf16.msra.mxu0 %v532
  %675 = vmatprep.subr.bf16.mxu0 0
  %676 = vmatpush1.bf16.msra.mxu0 %v533
  %677 = vmatprep.subr.bf16.mxu0 0
  %678 = vmatpush1.bf16.msra.mxu0 %v534
  %679 = vmatprep.mubr.bf16.mxu0 %v232
  %680 = vmatmul.mubr.bf16.gmra.mrb[0].mxu0 %v231
  %v681 = vpop.f32.mrb[0].mxu0
  %v682 = vadd.f32 %v166, %v681
  %v683 = vpop.f32.mrb[0].mxu0
  %v684 = vpop.f32.mrb[0].mxu0
  %v685 = vadd.f32 %v171, %v684
  %v686 = vpop.f32.mrb[0].mxu0
  %687 = vmatprep.mubr.bf16.mxu0 %v240
  %688 = vmatmul.mubr.bf16.gmra.mrb[0].mxu0 %v239
  %v689 = vpop.f32.mrb[0].mxu0
  %v690 = vadd.f32 %v176, %v689
  %v691 = vpop.f32.mrb[0].mxu0
  %v692 = vpop.f32.mrb[0].mxu0
  %v693 = vadd.f32 %v181, %v692
  %v694 = vpop.f32.mrb[0].mxu0
  %695 = vdwg.mxu0
  %696 = vmatprep.subr.bf16.mxu0 0
  %697 = vmatpush1.bf16.msra.mxu0 %v535
  %698 = vmatprep.subr.bf16.mxu0 0
  %699 = vmatpush1.bf16.msra.mxu0 %v536
  %700 = vmatprep.subr.bf16.mxu0 0
  %701 = vmatpush1.bf16.msra.mxu0 %v537
  %702 = vmatprep.subr.bf16.mxu0 0
  %703 = vmatpush1.bf16.msra.mxu0 %v538
  %704 = vmatprep.subr.bf16.mxu0 0
  %705 = vmatpush1.bf16.msra.mxu0 %v539
  %706 = vmatprep.subr.bf16.mxu0 0
  %707 = vmatpush1.bf16.msra.mxu0 %v540
  %708 = vmatprep.subr.bf16.mxu0 0
  %709 = vmatpush1.bf16.msra.mxu0 %v541
  %710 = vmatprep.subr.bf16.mxu0 0
  %711 = vmatpush1.bf16.msra.mxu0 %v542
  %712 = vmatprep.subr.bf16.mxu0 0
  %713 = vmatpush1.bf16.msra.mxu0 %v543
  %714 = vmatprep.subr.bf16.mxu0 0
  %715 = vmatpush1.bf16.msra.mxu0 %v544
  %716 = vmatprep.subr.bf16.mxu0 0
  %717 = vmatpush1.bf16.msra.mxu0 %v545
  %718 = vmatprep.subr.bf16.mxu0 0
  %719 = vmatpush1.bf16.msra.mxu0 %v546
  %720 = vmatprep.subr.bf16.mxu0 0
  %721 = vmatpush1.bf16.msra.mxu0 %v547
  %722 = vmatprep.subr.bf16.mxu0 0
  %723 = vmatpush1.bf16.msra.mxu0 %v548
  %724 = vmatprep.subr.bf16.mxu0 0
  %725 = vmatpush1.bf16.msra.mxu0 %v549
  %726 = vmatprep.subr.bf16.mxu0 0
  %727 = vmatpush1.bf16.msra.mxu0 %v550
  %728 = vmatprep.mubr.bf16.mxu0 %v234
  %729 = vmatmul.mubr.bf16.gmra.mrb[0].mxu0 %v233
  %v730 = vpop.f32.mrb[0].mxu0
  %v731 = vadd.f32 %v682, %v730
  %v732 = vpop.f32.mrb[0].mxu0
  %v733 = vpop.f32.mrb[0].mxu0
  %v734 = vadd.f32 %v685, %v733
  %v735 = vpop.f32.mrb[0].mxu0
  %736 = vmatprep.mubr.bf16.mxu0 %v242
  %737 = vmatmul.mubr.bf16.gmra.mrb[0].mxu0 %v241
  %v738 = vpop.f32.mrb[0].mxu0
  %v739 = vadd.f32 %v690, %v738
  %v740 = vpop.f32.mrb[0].mxu0
  %v741 = vpop.f32.mrb[0].mxu0
  %v742 = vadd.f32 %v693, %v741
  %v743 = vpop.f32.mrb[0].mxu0
  %744 = vdwg.mxu0
  %745 = vmatprep.subr.bf16.mxu0 0
  %746 = vmatpush1.bf16.msra.mxu0 %v551
  %747 = vmatprep.subr.bf16.mxu0 0
  %748 = vmatpush1.bf16.msra.mxu0 %v552
  %749 = vmatprep.subr.bf16.mxu0 0
  %750 = vmatpush1.bf16.msra.mxu0 %v553
  %751 = vmatprep.subr.bf16.mxu0 0
  %752 = vmatpush1.bf16.msra.mxu0 %v554
  %753 = vmatprep.subr.bf16.mxu0 0
  %754 = vmatpush1.bf16.msra.mxu0 %v555
  %755 = vmatprep.subr.bf16.mxu0 0
  %756 = vmatpush1.bf16.msra.mxu0 %v556
  %757 = vmatprep.subr.bf16.mxu0 0
  %758 = vmatpush1.bf16.msra.mxu0 %v557
  %759 = vmatprep.subr.bf16.mxu0 0
  %760 = vmatpush1.bf16.msra.mxu0 %v558
  %761 = vmatprep.subr.bf16.mxu0 0
  %762 = vmatpush1.bf16.msra.mxu0 %v559
  %763 = vmatprep.subr.bf16.mxu0 0
  %764 = vmatpush1.bf16.msra.mxu0 %v560
  %765 = vmatprep.subr.bf16.mxu0 0
  %766 = vmatpush1.bf16.msra.mxu0 %v561
  %767 = vmatprep.subr.bf16.mxu0 0
  %768 = vmatpush1.bf16.msra.mxu0 %v562
  %769 = vmatprep.subr.bf16.mxu0 0
  %770 = vmatpush1.bf16.msra.mxu0 %v563
  %771 = vmatprep.subr.bf16.mxu0 0
  %772 = vmatpush1.bf16.msra.mxu0 %v564
  %773 = vmatprep.subr.bf16.mxu0 0
  %774 = vmatpush1.bf16.msra.mxu0 %v565
  %775 = vmatprep.subr.bf16.mxu0 0
  %776 = vmatpush1.bf16.msra.mxu0 %v566
  %777 = vmatprep.mubr.bf16.mxu0 %v236
  %778 = vmatmul.mubr.bf16.gmra.mrb[0].mxu0 %v235
  %v779 = vpop.f32.mrb[0].mxu0
  %v780 = vadd.f32 %v731, %v779
  %v781 = vpop.f32.mrb[0].mxu0
  %v782 = vpop.f32.mrb[0].mxu0
  %v783 = vadd.f32 %v734, %v782
  %v784 = vpop.f32.mrb[0].mxu0
  %785 = vmatprep.mubr.bf16.mxu0 %v244
  %786 = vmatmul.mubr.bf16.gmra.mrb[0].mxu0 %v243
  %v787 = vpop.f32.mrb[0].mxu0
  %v788 = vadd.f32 %v739, %v787
  %v789 = vpop.f32.mrb[0].mxu0
  %v790 = vpop.f32.mrb[0].mxu0
  %v791 = vadd.f32 %v742, %v790
  %v792 = vpop.f32.mrb[0].mxu0
  %793 = vdwg.mxu0
  %794 = vmatprep.subr.bf16.mxu0 0
  %795 = vmatpush1.bf16.msra.mxu0 %v567
  %796 = vmatprep.subr.bf16.mxu0 0
  %797 = vmatpush1.bf16.msra.mxu0 %v568
  %798 = vmatprep.subr.bf16.mxu0 0
  %799 = vmatpush1.bf16.msra.mxu0 %v569
  %800 = vmatprep.subr.bf16.mxu0 0
  %801 = vmatpush1.bf16.msra.mxu0 %v570
  %802 = vmatprep.subr.bf16.mxu0 0
  %803 = vmatpush1.bf16.msra.mxu0 %v571
  %804 = vmatprep.subr.bf16.mxu0 0
  %805 = vmatpush1.bf16.msra.mxu0 %v572
  %806 = vmatprep.subr.bf16.mxu0 0
  %807 = vmatpush1.bf16.msra.mxu0 %v573
  %808 = vmatprep.subr.bf16.mxu0 0
  %809 = vmatpush1.bf16.msra.mxu0 %v574
  %810 = vmatprep.subr.bf16.mxu0 0
  %811 = vmatpush1.bf16.msra.mxu0 %v575
  %812 = vmatprep.subr.bf16.mxu0 0
  %813 = vmatpush1.bf16.msra.mxu0 %v576
  %814 = vmatprep.subr.bf16.mxu0 0
  %815 = vmatpush1.bf16.msra.mxu0 %v577
  %816 = vmatprep.subr.bf16.mxu0 0
  %817 = vmatpush1.bf16.msra.mxu0 %v578
  %818 = vmatprep.subr.bf16.mxu0 0
  %819 = vmatpush1.bf16.msra.mxu0 %v579
  %820 = vmatprep.subr.bf16.mxu0 0
  %821 = vmatpush1.bf16.msra.mxu0 %v580
  %822 = vmatprep.subr.bf16.mxu0 0
  %823 = vmatpush1.bf16.msra.mxu0 %v581
  %824 = vmatprep.subr.bf16.mxu0 0
  %825 = vmatpush1.bf16.msra.mxu0 %v582
  %826 = vmatprep.mubr.bf16.mxu0 %v238
  %827 = vmatmul.mubr.bf16.gmra.mrb[0].mxu0 %v237
  %v828 = vpop.f32.mrb[0].mxu0
  %v829 = vadd.f32 %v780, %v828
  %v830 = vpop.f32.mrb[0].mxu0
  %v831 = vpop.f32.mrb[0].mxu0
  %v832 = vadd.f32 %v783, %v831
  %v833 = vpop.f32.mrb[0].mxu0
  %834 = vmatprep.mubr.bf16.mxu0 %v246
  %835 = vmatmul.mubr.bf16.gmra.mrb[0].mxu0 %v245
  %v836 = vpop.f32.mrb[0].mxu0
  %v837 = vadd.f32 %v788, %v836
  %v838 = vpop.f32.mrb[0].mxu0
  %v839 = vpop.f32.mrb[0].mxu0
  %v840 = vadd.f32 %v791, %v839
  %v841 = vpop.f32.mrb[0].mxu0
  %842 = vdwg.mxu0
  %v843 = vmax.f32 %v829, 0.0
  %v844 = vmax.f32 %v832, 0.0
  %v845 = vmax.f32 %v837, 0.0
  %v846 = vmax.f32 %v840, 0.0
  %v847 = vpack.c.bf16 %v844, %v843
  %v848 = vpack.c.bf16 %v846, %v845
  %v851 = vunpack.c.l.b16 %v847
  %v852 = vunpack.c.h.b16 %v847
  %v853 = vunpack.c.l.b16 %v848
  %v854 = vunpack.c.h.b16 %v848
  %v855 = vpack.c.b16 %v851, %v851
  %v856 = vpack.c.b16 %v852, %v852
  %v857 = vpack.c.b16 %v853, %v853
  %v858 = vpack.c.b16 %v854, %v854
  %863 = vst [vmem:[%s3] sm:$0xf] %v855
  %864 = vst [vmem:[%s3 + $0x4] sm:$0xf] %v856
  %865 = vst [vmem:[%s3 + $0x8] sm:$0xf] %v857
  %866 = vst [vmem:[%s3 + $0xc] sm:$0xf] %v858
  // Predicated region
  $region14: #{forward.11} parent=0 // pred_check
    _
  $region15: #{forward.11} parent=0 // pred_check_branch
    %868 = sbr.rel (0) target = $region17
  $region16: #{forward.11} parent=0 // pred_region
    _
  $region17: #{forward.11} parent=0 // pred_fallthru
    _
  // Predicated region
  $region18: #{forward.11} parent=0 // pred_check
    _
  $region19: #{forward.11} parent=0 // pred_check_branch
    %870 = sbr.rel (0) target = $region21
  $region20: #{forward.11} parent=0 // pred_region
    _
  $region21: #{forward.11} parent=0 // pred_fallthru
    _

// kernel: forward.12
$region0: #{forward.12}
  #allocation0 [shape = 'u32[]', space=smem, size = 0x4, offset = 0x4, fixed_abs, tag = 'smem constant byte address 0x4 - core index']
  #allocation1 [shape = 'u32[144,128]{1,0:T(1,128)}', space=vmem, size = 0x12000, scoped, tag = 'internal scratch']
  %s0 = inlined_call_operand.vmem [shape: bf16[16,288], index: 0, kind: input, shape index: {}]
  %s1 = inlined_call_operand.vmem [shape: f32[16,1], index: 1, kind: input, shape index: {}]
  %s2 = inlined_call_operand.vmem [shape: bf16[288,512], index: 2, kind: input, shape index: {}]
  %s3 = inlined_call_operand.vmem [shape: bf16[16,512], index: 3, kind: output, shape index: {}]
  %s4 = sld [smem:[#allocation0]]
  $region22: #{forward.12} parent=0
    _
  %s6 = ssub.s32 1, %s4
  %s7 = scalar_select 0, %s6, %s4
  // Predicated region
  $region2: #{forward.12} parent=0 // pred_check
    _
  $region3: #{forward.12} parent=0 // pred_check_branch
    %9 = sbr.rel (0) target = $region5
  $region4: #{forward.12} parent=0 // pred_region
    _
  $region5: #{forward.12} parent=0 // pred_fallthru
    _
  // Predicated region
  $region6: #{forward.12} parent=0 // pred_check
    _
  $region7: #{forward.12} parent=0 // pred_check_branch
    %11 = sbr.rel (0) target = $region9
  $region8: #{forward.12} parent=0 // pred_region
    _
  $region9: #{forward.12} parent=0 // pred_fallthru
    _
  // Predicated region
  $region10: #{forward.12} parent=0 // pred_check
    _
  $region11: #{forward.12} parent=0 // pred_check_branch
    %13 = sbr.rel (0) target = $region13
  $region12: #{forward.12} parent=0 // pred_region
    _
  $region13: #{forward.12} parent=0 // pred_fallthru
    _
  %v15 = vld [vmem:[%s0] sm:$0xff]
  %v16 = vld [vmem:[%s0 + $0x8] sm:$0xf]
  %v17 = vld [vmem:[%s0 + $0xc] sm:$0xff]
  %v18 = vld [vmem:[%s0 + $0x14] sm:$0xf]
  %v19 = vld [vmem:[%s2] sm:$0xff]
  %v20 = vld [vmem:[%s2 + $0x8] sm:$0xff]
  %v21 = vld [vmem:[%s2 + $0x10] sm:$0xff]
  %v22 = vld [vmem:[%s2 + $0x18] sm:$0xff]
  %v23 = vld [vmem:[%s2 + $0x20] sm:$0xff]
  %v24 = vld [vmem:[%s2 + $0x28] sm:$0xff]
  %v25 = vld [vmem:[%s2 + $0x30] sm:$0xff]
  %v26 = vld [vmem:[%s2 + $0x38] sm:$0xff]
  %v27 = vld [vmem:[%s2 + $0x40] sm:$0xff]
  %v28 = vld [vmem:[%s2 + $0x48] sm:$0xff]
  %v29 = vld [vmem:[%s2 + $0x50] sm:$0xff]
  %v30 = vld [vmem:[%s2 + $0x58] sm:$0xff]
  %v31 = vld [vmem:[%s2 + $0x60] sm:$0xff]
  %v32 = vld [vmem:[%s2 + $0x68] sm:$0xff]
  %v33 = vld [vmem:[%s2 + $0x70] sm:$0xff]
  %v34 = vld [vmem:[%s2 + $0x78] sm:$0xff]
  %v35 = vld [vmem:[%s2 + $0x80] sm:$0xff]
  %v36 = vld [vmem:[%s2 + $0x88] sm:$0xff]
  %v37 = vld [vmem:[%s2 + $0x90] sm:$0xff]
  %v38 = vld [vmem:[%s2 + $0x98] sm:$0xff]
  %v39 = vld [vmem:[%s2 + $0xa0] sm:$0xff]
  %v40 = vld [vmem:[%s2 + $0xa8] sm:$0xff]
  %v41 = vld [vmem:[%s2 + $0xb0] sm:$0xff]
  %v42 = vld [vmem:[%s2 + $0xb8] sm:$0xff]
  %v43 = vld [vmem:[%s2 + $0xc0] sm:$0xff]
  %v44 = vld [vmem:[%s2 + $0xc8] sm:$0xff]
  %v45 = vld [vmem:[%s2 + $0xd0] sm:$0xff]
  %v46 = vld [vmem:[%s2 + $0xd8] sm:$0xff]
  %v47 = vld [vmem:[%s2 + $0xe0] sm:$0xff]
  %v48 = vld [vmem:[%s2 + $0xe8] sm:$0xff]
  %v49 = vld [vmem:[%s2 + $0xf0] sm:$0xff]
  %v50 = vld [vmem:[%s2 + $0xf8] sm:$0xff]
  %v51 = vld [vmem:[%s2 + $0x100] sm:$0xff]
  %v52 = vld [vmem:[%s2 + $0x108] sm:$0xff]
  %v53 = vld [vmem:[%s2 + $0x110] sm:$0xff]
  %v54 = vld [vmem:[%s2 + $0x118] sm:$0xff]
  %v55 = vld [vmem:[%s2 + $0x120] sm:$0xff]
  %v56 = vld [vmem:[%s2 + $0x128] sm:$0xff]
  %v57 = vld [vmem:[%s2 + $0x130] sm:$0xff]
  %v58 = vld [vmem:[%s2 + $0x138] sm:$0xff]
  %v59 = vld [vmem:[%s2 + $0x140] sm:$0xff]
  %v60 = vld [vmem:[%s2 + $0x148] sm:$0xff]
  %v61 = vld [vmem:[%s2 + $0x150] sm:$0xff]
  %v62 = vld [vmem:[%s2 + $0x158] sm:$0xff]
  %v63 = vld [vmem:[%s2 + $0x160] sm:$0xff]
  %v64 = vld [vmem:[%s2 + $0x168] sm:$0xff]
  %v65 = vld [vmem:[%s2 + $0x170] sm:$0xff]
  %v66 = vld [vmem:[%s2 + $0x178] sm:$0xff]
  %v67 = vld [vmem:[%s2 + $0x180] sm:$0xff]
  %v68 = vld [vmem:[%s2 + $0x188] sm:$0xff]
  %v69 = vld [vmem:[%s2 + $0x190] sm:$0xff]
  %v70 = vld [vmem:[%s2 + $0x198] sm:$0xff]
  %v71 = vld [vmem:[%s2 + $0x1a0] sm:$0xff]
  %v72 = vld [vmem:[%s2 + $0x1a8] sm:$0xff]
  %v73 = vld [vmem:[%s2 + $0x1b0] sm:$0xff]
  %v74 = vld [vmem:[%s2 + $0x1b8] sm:$0xff]
  %v75 = vld [vmem:[%s2 + $0x1c0] sm:$0xff]
  %v76 = vld [vmem:[%s2 + $0x1c8] sm:$0xff]
  %v77 = vld [vmem:[%s2 + $0x1d0] sm:$0xff]
  %v78 = vld [vmem:[%s2 + $0x1d8] sm:$0xff]
  %v79 = vld [vmem:[%s2 + $0x1e0] sm:$0xff]
  %v80 = vld [vmem:[%s2 + $0x1e8] sm:$0xff]
  %v81 = vld [vmem:[%s2 + $0x1f0] sm:$0xff]
  %v82 = vld [vmem:[%s2 + $0x1f8] sm:$0xff]
  %v83 = vld [vmem:[%s2 + $0x200] sm:$0xff]
  %v84 = vld [vmem:[%s2 + $0x208] sm:$0xff]
  %v85 = vld [vmem:[%s2 + $0x210] sm:$0xff]
  %v86 = vld [vmem:[%s2 + $0x218] sm:$0xff]
  %v87 = vld [vmem:[%s2 + $0x220] sm:$0xff]
  %v88 = vld [vmem:[%s2 + $0x228] sm:$0xff]
  %v89 = vld [vmem:[%s2 + $0x230] sm:$0xff]
  %v90 = vld [vmem:[%s2 + $0x238] sm:$0xff]
  %v91 = vld [vmem:[%s1] sm:$0xff]
  %v92 = vld [vmem:[%s1 + $0x8] sm:$0xff]
  %94 = vset.pattern.permute.xlu0 0
  %95 = vperm.xlu0 %94, %v91
  %v96 = vpop.permute.xlu0 %95
  %99 = vset.pattern.permute.xlu0 0
  %100 = vperm.xlu0 %99, %v92
  %v101 = vpop.permute.xlu0 %100
  %v107 = vunpack.c.l.b16 %v15
  %v108 = vunpack.c.h.b16 %v15
  %v109 = vunpack.c.l.b16 %v16
  %v110 = vunpack.c.l.b16 %v17
  %v111 = vunpack.c.h.b16 %v17
  %v112 = vunpack.c.l.b16 %v18
  %v113 = vpack.c.b16 %v110, %v107
  %v114 = vpack.c.b16 %v111, %v108
  %v115 = vpack.c.b16 %v112, %v109
  %v190 = vunpack.c.l.b16 %v19
  %v191 = vunpack.c.h.b16 %v19
  %v192 = vunpack.c.l.b16 %v20
  %v193 = vunpack.c.h.b16 %v20
  %v194 = vunpack.c.l.b16 %v21
  %v195 = vunpack.c.h.b16 %v21
  %v196 = vunpack.c.l.b16 %v22
  %v197 = vunpack.c.h.b16 %v22
  %v198 = vunpack.c.l.b16 %v23
  %v199 = vunpack.c.h.b16 %v23
  %v200 = vunpack.c.l.b16 %v24
  %v201 = vunpack.c.h.b16 %v24
  %v202 = vunpack.c.l.b16 %v25
  %v203 = vunpack.c.h.b16 %v25
  %v204 = vunpack.c.l.b16 %v26
  %v205 = vunpack.c.h.b16 %v26
  %v206 = vunpack.c.l.b16 %v27
  %v207 = vunpack.c.h.b16 %v27
  %v208 = vunpack.c.l.b16 %v28
  %v209 = vunpack.c.h.b16 %v28
  %v210 = vunpack.c.l.b16 %v29
  %v211 = vunpack.c.h.b16 %v29
  %v212 = vunpack.c.l.b16 %v30
  %v213 = vunpack.c.h.b16 %v30
  %v214 = vunpack.c.l.b16 %v31
  %v215 = vunpack.c.h.b16 %v31
  %v216 = vunpack.c.l.b16 %v32
  %v217 = vunpack.c.h.b16 %v32
  %v218 = vunpack.c.l.b16 %v33
  %v219 = vunpack.c.h.b16 %v33
  %v220 = vunpack.c.l.b16 %v34
  %v221 = vunpack.c.h.b16 %v34
  %v222 = vunpack.c.l.b16 %v35
  %v223 = vunpack.c.h.b16 %v35
  %v224 = vunpack.c.l.b16 %v36
  %v225 = vunpack.c.h.b16 %v36
  %v226 = vunpack.c.l.b16 %v37
  %v227 = vunpack.c.h.b16 %v37
  %v228 = vunpack.c.l.b16 %v38
  %v229 = vunpack.c.h.b16 %v38
  %v230 = vunpack.c.l.b16 %v39
  %v231 = vunpack.c.h.b16 %v39
  %v232 = vunpack.c.l.b16 %v40
  %v233 = vunpack.c.h.b16 %v40
  %v234 = vunpack.c.l.b16 %v41
  %v235 = vunpack.c.h.b16 %v41
  %v236 = vunpack.c.l.b16 %v42
  %v237 = vunpack.c.h.b16 %v42
  %v238 = vunpack.c.l.b16 %v43
  %v239 = vunpack.c.h.b16 %v43
  %v240 = vunpack.c.l.b16 %v44
  %v241 = vunpack.c.h.b16 %v44
  %v242 = vunpack.c.l.b16 %v45
  %v243 = vunpack.c.h.b16 %v45
  %v244 = vunpack.c.l.b16 %v46
  %v245 = vunpack.c.h.b16 %v46
  %v246 = vunpack.c.l.b16 %v47
  %v247 = vunpack.c.h.b16 %v47
  %v248 = vunpack.c.l.b16 %v48
  %v249 = vunpack.c.h.b16 %v48
  %v250 = vunpack.c.l.b16 %v49
  %v251 = vunpack.c.h.b16 %v49
  %v252 = vunpack.c.l.b16 %v50
  %v253 = vunpack.c.h.b16 %v50
  %v254 = vunpack.c.l.b16 %v51
  %v255 = vunpack.c.h.b16 %v51
  %v256 = vunpack.c.l.b16 %v52
  %v257 = vunpack.c.h.b16 %v52
  %v258 = vunpack.c.l.b16 %v53
  %v259 = vunpack.c.h.b16 %v53
  %v260 = vunpack.c.l.b16 %v54
  %v261 = vunpack.c.h.b16 %v54
  %v262 = vunpack.c.l.b16 %v55
  %v263 = vunpack.c.h.b16 %v55
  %v264 = vunpack.c.l.b16 %v56
  %v265 = vunpack.c.h.b16 %v56
  %v266 = vunpack.c.l.b16 %v57
  %v267 = vunpack.c.h.b16 %v57
  %v268 = vunpack.c.l.b16 %v58
  %v269 = vunpack.c.h.b16 %v58
  %v270 = vunpack.c.l.b16 %v59
  %v271 = vunpack.c.h.b16 %v59
  %v272 = vunpack.c.l.b16 %v60
  %v273 = vunpack.c.h.b16 %v60
  %v274 = vunpack.c.l.b16 %v61
  %v275 = vunpack.c.h.b16 %v61
  %v276 = vunpack.c.l.b16 %v62
  %v277 = vunpack.c.h.b16 %v62
  %v278 = vunpack.c.l.b16 %v63
  %v279 = vunpack.c.h.b16 %v63
  %v280 = vunpack.c.l.b16 %v64
  %v281 = vunpack.c.h.b16 %v64
  %v282 = vunpack.c.l.b16 %v65
  %v283 = vunpack.c.h.b16 %v65
  %v284 = vunpack.c.l.b16 %v66
  %v285 = vunpack.c.h.b16 %v66
  %v286 = vunpack.c.l.b16 %v67
  %v287 = vunpack.c.h.b16 %v67
  %v288 = vunpack.c.l.b16 %v68
  %v289 = vunpack.c.h.b16 %v68
  %v290 = vunpack.c.l.b16 %v69
  %v291 = vunpack.c.h.b16 %v69
  %v292 = vunpack.c.l.b16 %v70
  %v293 = vunpack.c.h.b16 %v70
  %v294 = vunpack.c.l.b16 %v71
  %v295 = vunpack.c.h.b16 %v71
  %v296 = vunpack.c.l.b16 %v72
  %v297 = vunpack.c.h.b16 %v72
  %v298 = vunpack.c.l.b16 %v73
  %v299 = vunpack.c.h.b16 %v73
  %v300 = vunpack.c.l.b16 %v74
  %v301 = vunpack.c.h.b16 %v74
  %v302 = vunpack.c.l.b16 %v75
  %v303 = vunpack.c.h.b16 %v75
  %v304 = vunpack.c.l.b16 %v76
  %v305 = vunpack.c.h.b16 %v76
  %v306 = vunpack.c.l.b16 %v77
  %v307 = vunpack.c.h.b16 %v77
  %v308 = vunpack.c.l.b16 %v78
  %v309 = vunpack.c.h.b16 %v78
  %v310 = vunpack.c.l.b16 %v79
  %v311 = vunpack.c.h.b16 %v79
  %v312 = vunpack.c.l.b16 %v80
  %v313 = vunpack.c.h.b16 %v80
  %v314 = vunpack.c.l.b16 %v81
  %v315 = vunpack.c.h.b16 %v81
  %v316 = vunpack.c.l.b16 %v82
  %v317 = vunpack.c.h.b16 %v82
  %v318 = vunpack.c.l.b16 %v83
  %v319 = vunpack.c.h.b16 %v83
  %v320 = vunpack.c.l.b16 %v84
  %v321 = vunpack.c.h.b16 %v84
  %v322 = vunpack.c.l.b16 %v85
  %v323 = vunpack.c.h.b16 %v85
  %v324 = vunpack.c.l.b16 %v86
  %v325 = vunpack.c.h.b16 %v86
  %v326 = vunpack.c.l.b16 %v87
  %v327 = vunpack.c.h.b16 %v87
  %v328 = vunpack.c.l.b16 %v88
  %v329 = vunpack.c.h.b16 %v88
  %v330 = vunpack.c.l.b16 %v89
  %v331 = vunpack.c.h.b16 %v89
  %v332 = vunpack.c.l.b16 %v90
  %v333 = vunpack.c.h.b16 %v90
  %v334 = vpack.c.b16 %v194, %v190
  %v335 = vpack.c.b16 %v195, %v191
  %v336 = vpack.c.b16 %v196, %v192
  %v337 = vpack.c.b16 %v197, %v193
  %v338 = vpack.c.b16 %v202, %v198
  %v339 = vpack.c.b16 %v203, %v199
  %v340 = vpack.c.b16 %v204, %v200
  %v341 = vpack.c.b16 %v205, %v201
  %v342 = vpack.c.b16 %v210, %v206
  %v343 = vpack.c.b16 %v211, %v207
  %v344 = vpack.c.b16 %v212, %v208
  %v345 = vpack.c.b16 %v213, %v209
  %v346 = vpack.c.b16 %v218, %v214
  %v347 = vpack.c.b16 %v219, %v215
  %v348 = vpack.c.b16 %v220, %v216
  %v349 = vpack.c.b16 %v221, %v217
  %v350 = vpack.c.b16 %v226, %v222
  %v351 = vpack.c.b16 %v227, %v223
  %v352 = vpack.c.b16 %v228, %v224
  %v353 = vpack.c.b16 %v229, %v225
  %v354 = vpack.c.b16 %v234, %v230
  %v355 = vpack.c.b16 %v235, %v231
  %v356 = vpack.c.b16 %v236, %v232
  %v357 = vpack.c.b16 %v237, %v233
  %v358 = vpack.c.b16 %v242, %v238
  %v359 = vpack.c.b16 %v243, %v239
  %v360 = vpack.c.b16 %v244, %v240
  %v361 = vpack.c.b16 %v245, %v241
  %v362 = vpack.c.b16 %v250, %v246
  %v363 = vpack.c.b16 %v251, %v247
  %v364 = vpack.c.b16 %v252, %v248
  %v365 = vpack.c.b16 %v253, %v249
  %v366 = vpack.c.b16 %v258, %v254
  %v367 = vpack.c.b16 %v259, %v255
  %v368 = vpack.c.b16 %v260, %v256
  %v369 = vpack.c.b16 %v261, %v257
  %v370 = vpack.c.b16 %v266, %v262
  %v371 = vpack.c.b16 %v267, %v263
  %v372 = vpack.c.b16 %v268, %v264
  %v373 = vpack.c.b16 %v269, %v265
  %v374 = vpack.c.b16 %v274, %v270
  %v375 = vpack.c.b16 %v275, %v271
  %v376 = vpack.c.b16 %v276, %v272
  %v377 = vpack.c.b16 %v277, %v273
  %v378 = vpack.c.b16 %v282, %v278
  %v379 = vpack.c.b16 %v283, %v279
  %v380 = vpack.c.b16 %v284, %v280
  %v381 = vpack.c.b16 %v285, %v281
  %v382 = vpack.c.b16 %v290, %v286
  %v383 = vpack.c.b16 %v291, %v287
  %v384 = vpack.c.b16 %v292, %v288
  %v385 = vpack.c.b16 %v293, %v289
  %v386 = vpack.c.b16 %v298, %v294
  %v387 = vpack.c.b16 %v299, %v295
  %v388 = vpack.c.b16 %v300, %v296
  %v389 = vpack.c.b16 %v301, %v297
  %v390 = vpack.c.b16 %v306, %v302
  %v391 = vpack.c.b16 %v307, %v303
  %v392 = vpack.c.b16 %v308, %v304
  %v393 = vpack.c.b16 %v309, %v305
  %v394 = vpack.c.b16 %v314, %v310
  %v395 = vpack.c.b16 %v315, %v311
  %v396 = vpack.c.b16 %v316, %v312
  %v397 = vpack.c.b16 %v317, %v313
  %v398 = vpack.c.b16 %v322, %v318
  %v399 = vpack.c.b16 %v323, %v319
  %v400 = vpack.c.b16 %v324, %v320
  %v401 = vpack.c.b16 %v325, %v321
  %v402 = vpack.c.b16 %v330, %v326
  %v403 = vpack.c.b16 %v331, %v327
  %v404 = vpack.c.b16 %v332, %v328
  %v405 = vpack.c.b16 %v333, %v329
  %vm478 = vcmask 261120
  %v480 = vsel %vm478, %v115, 0
  %482 = vmatprep.subr.bf16.mxu0 %v335
  %483 = vmatpush1.bf16.msra.mxu0 %v334
  %484 = vmatprep.subr.bf16.mxu0 %v339
  %485 = vmatpush1.bf16.msra.mxu0 %v338
  %486 = vmatprep.subr.bf16.mxu0 %v343
  %487 = vmatpush1.bf16.msra.mxu0 %v342
  %488 = vmatprep.subr.bf16.mxu0 %v347
  %489 = vmatpush1.bf16.msra.mxu0 %v346
  %490 = vmatprep.subr.bf16.mxu0 %v351
  %491 = vmatpush1.bf16.msra.mxu0 %v350
  %492 = vmatprep.subr.bf16.mxu0 %v355
  %493 = vmatpush1.bf16.msra.mxu0 %v354
  %494 = vmatprep.subr.bf16.mxu0 %v359
  %495 = vmatpush1.bf16.msra.mxu0 %v358
  %496 = vmatprep.subr.bf16.mxu0 %v363
  %497 = vmatpush1.bf16.msra.mxu0 %v362
  %498 = vmatprep.subr.bf16.mxu0 %v367
  %499 = vmatpush1.bf16.msra.mxu0 %v366
  %500 = vmatprep.subr.bf16.mxu0 %v371
  %501 = vmatpush1.bf16.msra.mxu0 %v370
  %502 = vmatprep.subr.bf16.mxu0 %v375
  %503 = vmatpush1.bf16.msra.mxu0 %v374
  %504 = vmatprep.subr.bf16.mxu0 %v379
  %505 = vmatpush1.bf16.msra.mxu0 %v378
  %506 = vmatprep.subr.bf16.mxu0 %v383
  %507 = vmatpush1.bf16.msra.mxu0 %v382
  %508 = vmatprep.subr.bf16.mxu0 %v387
  %509 = vmatpush1.bf16.msra.mxu0 %v386
  %510 = vmatprep.subr.bf16.mxu0 %v391
  %511 = vmatpush1.bf16.msra.mxu0 %v390
  %512 = vmatprep.subr.bf16.mxu0 %v395
  %513 = vmatpush1.bf16.msra.mxu0 %v394
  %514 = vmatprep.mubr.bf16.mxu0 %v114
  %515 = vmatmul.mubr.bf16.gmra.mrb[0].mxu0 %v113
  %v516 = vpop.f32.mrb[0].mxu0
  %v517 = vadd.f32 %v96, %v516
  %v518 = vpop.f32.mrb[0].mxu0
  %v519 = vadd.f32 %v96, %v518
  %v520 = vpop.f32.mrb[0].mxu0
  %v521 = vadd.f32 %v101, %v520
  %v522 = vpop.f32.mrb[0].mxu0
  %v523 = vadd.f32 %v101, %v522
  %524 = vdwg.mxu0
  %525 = vmatprep.subr.bf16.mxu0 %v399
  %526 = vmatpush1.bf16.msra.mxu0 %v398
  %527 = vmatprep.subr.bf16.mxu0 %v403
  %528 = vmatpush1.bf16.msra.mxu0 %v402
  %529 = vmatprep.subr.bf16.mxu0 0
  %530 = vmatpush1.bf16.msra.mxu0 0
  %531 = vmatprep.subr.bf16.mxu0 0
  %532 = vmatpush1.bf16.msra.mxu0 0
  %533 = vmatprep.subr.bf16.mxu0 0
  %534 = vmatpush1.bf16.msra.mxu0 0
  %535 = vmatprep.subr.bf16.mxu0 0
  %536 = vmatpush1.bf16.msra.mxu0 0
  %537 = vmatprep.subr.bf16.mxu0 0
  %538 = vmatpush1.bf16.msra.mxu0 0
  %539 = vmatprep.subr.bf16.mxu0 0
  %540 = vmatpush1.bf16.msra.mxu0 0
  %541 = vmatprep.subr.bf16.mxu0 0
  %542 = vmatpush1.bf16.msra.mxu0 0
  %543 = vmatprep.subr.bf16.mxu0 0
  %544 = vmatpush1.bf16.msra.mxu0 0
  %545 = vmatprep.subr.bf16.mxu0 0
  %546 = vmatpush1.bf16.msra.mxu0 0
  %547 = vmatprep.subr.bf16.mxu0 0
  %548 = vmatpush1.bf16.msra.mxu0 0
  %549 = vmatprep.subr.bf16.mxu0 0
  %550 = vmatpush1.bf16.msra.mxu0 0
  %551 = vmatprep.subr.bf16.mxu0 0
  %552 = vmatpush1.bf16.msra.mxu0 0
  %553 = vmatprep.subr.bf16.mxu0 0
  %554 = vmatpush1.bf16.msra.mxu0 0
  %555 = vmatprep.subr.bf16.mxu0 0
  %556 = vmatpush1.bf16.msra.mxu0 0
  %557 = vmatprep.mubr.bf16.mxu0 0
  %558 = vmatmul.mubr.bf16.gmra.mrb[0].mxu0 %v480
  %v559 = vpop.f32.mrb[0].mxu0
  %v560 = vadd.f32 %v517, %v559
  %v561 = vpop.f32.mrb[0].mxu0
  %v562 = vadd.f32 %v519, %v561
  %v563 = vpop.f32.mrb[0].mxu0
  %v564 = vadd.f32 %v521, %v563
  %v565 = vpop.f32.mrb[0].mxu0
  %v566 = vadd.f32 %v523, %v565
  %567 = vdwg.mxu0
  %568 = vmatprep.subr.bf16.mxu0 %v337
  %569 = vmatpush1.bf16.msra.mxu0 %v336
  %570 = vmatprep.subr.bf16.mxu0 %v341
  %571 = vmatpush1.bf16.msra.mxu0 %v340
  %572 = vmatprep.subr.bf16.mxu0 %v345
  %573 = vmatpush1.bf16.msra.mxu0 %v344
  %574 = vmatprep.subr.bf16.mxu0 %v349
  %575 = vmatpush1.bf16.msra.mxu0 %v348
  %576 = vmatprep.subr.bf16.mxu0 %v353
  %577 = vmatpush1.bf16.msra.mxu0 %v352
  %578 = vmatprep.subr.bf16.mxu0 %v357
  %579 = vmatpush1.bf16.msra.mxu0 %v356
  %580 = vmatprep.subr.bf16.mxu0 %v361
  %581 = vmatpush1.bf16.msra.mxu0 %v360
  %582 = vmatprep.subr.bf16.mxu0 %v365
  %583 = vmatpush1.bf16.msra.mxu0 %v364
  %584 = vmatprep.subr.bf16.mxu0 %v369
  %585 = vmatpush1.bf16.msra.mxu0 %v368
  %586 = vmatprep.subr.bf16.mxu0 %v373
  %587 = vmatpush1.bf16.msra.mxu0 %v372
  %588 = vmatprep.subr.bf16.mxu0 %v377
  %589 = vmatpush1.bf16.msra.mxu0 %v376
  %590 = vmatprep.subr.bf16.mxu0 %v381
  %591 = vmatpush1.bf16.msra.mxu0 %v380
  %592 = vmatprep.subr.bf16.mxu0 %v385
  %593 = vmatpush1.bf16.msra.mxu0 %v384
  %594 = vmatprep.subr.bf16.mxu0 %v389
  %595 = vmatpush1.bf16.msra.mxu0 %v388
  %596 = vmatprep.subr.bf16.mxu0 %v393
  %597 = vmatpush1.bf16.msra.mxu0 %v392
  %598 = vmatprep.subr.bf16.mxu0 %v397
  %599 = vmatpush1.bf16.msra.mxu0 %v396
  %600 = vmatprep.mubr.bf16.mxu0 %v114
  %601 = vmatmul.mubr.bf16.gmra.mrb[0].mxu0 %v113
  %v602 = vpop.f32.mrb[0].mxu0
  %v603 = vadd.f32 %v96, %v602
  %v604 = vpop.f32.mrb[0].mxu0
  %v605 = vadd.f32 %v96, %v604
  %v606 = vpop.f32.mrb[0].mxu0
  %v607 = vadd.f32 %v101, %v606
  %v608 = vpop.f32.mrb[0].mxu0
  %v609 = vadd.f32 %v101, %v608
  %610 = vdwg.mxu0
  %611 = vmatprep.subr.bf16.mxu0 %v401
  %612 = vmatpush1.bf16.msra.mxu0 %v400
  %613 = vmatprep.subr.bf16.mxu0 %v405
  %614 = vmatpush1.bf16.msra.mxu0 %v404
  %615 = vmatprep.subr.bf16.mxu0 0
  %616 = vmatpush1.bf16.msra.mxu0 0
  %617 = vmatprep.subr.bf16.mxu0 0
  %618 = vmatpush1.bf16.msra.mxu0 0
  %619 = vmatprep.subr.bf16.mxu0 0
  %620 = vmatpush1.bf16.msra.mxu0 0
  %621 = vmatprep.subr.bf16.mxu0 0
  %622 = vmatpush1.bf16.msra.mxu0 0
  %623 = vmatprep.subr.bf16.mxu0 0
  %624 = vmatpush1.bf16.msra.mxu0 0
  %625 = vmatprep.subr.bf16.mxu0 0
  %626 = vmatpush1.bf16.msra.mxu0 0
  %627 = vmatprep.subr.bf16.mxu0 0
  %628 = vmatpush1.bf16.msra.mxu0 0
  %629 = vmatprep.subr.bf16.mxu0 0
  %630 = vmatpush1.bf16.msra.mxu0 0
  %631 = vmatprep.subr.bf16.mxu0 0
  %632 = vmatpush1.bf16.msra.mxu0 0
  %633 = vmatprep.subr.bf16.mxu0 0
  %634 = vmatpush1.bf16.msra.mxu0 0
  %635 = vmatprep.subr.bf16.mxu0 0
  %636 = vmatpush1.bf16.msra.mxu0 0
  %637 = vmatprep.subr.bf16.mxu0 0
  %638 = vmatpush1.bf16.msra.mxu0 0
  %639 = vmatprep.subr.bf16.mxu0 0
  %640 = vmatpush1.bf16.msra.mxu0 0
  %641 = vmatprep.subr.bf16.mxu0 0
  %642 = vmatpush1.bf16.msra.mxu0 0
  %643 = vmatprep.mubr.bf16.mxu0 0
  %644 = vmatmul.mubr.bf16.gmra.mrb[0].mxu0 %v480
  %v645 = vpop.f32.mrb[0].mxu0
  %v646 = vadd.f32 %v603, %v645
  %v647 = vpop.f32.mrb[0].mxu0
  %v648 = vadd.f32 %v605, %v647
  %v649 = vpop.f32.mrb[0].mxu0
  %v650 = vadd.f32 %v607, %v649
  %v651 = vpop.f32.mrb[0].mxu0
  %v652 = vadd.f32 %v609, %v651
  %653 = vdwg.mxu0
  %v654 = vmax.f32 %v560, 0.0
  %v655 = vmax.f32 %v562, 0.0
  %v656 = vmax.f32 %v646, 0.0
  %v657 = vmax.f32 %v648, 0.0
  %v658 = vmax.f32 %v564, 0.0
  %v659 = vmax.f32 %v566, 0.0
  %v660 = vmax.f32 %v650, 0.0
  %v661 = vmax.f32 %v652, 0.0
  %v662 = vpack.c.bf16 %v658, %v654
  %v663 = vpack.c.bf16 %v659, %v655
  %v664 = vpack.c.bf16 %v660, %v656
  %v665 = vpack.c.bf16 %v661, %v657
  %v670 = vunpack.c.l.b16 %v662
  %v671 = vunpack.c.l.b16 %v663
  %v672 = vunpack.c.l.b16 %v664
  %v673 = vunpack.c.l.b16 %v665
  %v674 = vunpack.c.h.b16 %v662
  %v675 = vunpack.c.h.b16 %v663
  %v676 = vunpack.c.h.b16 %v664
  %v677 = vunpack.c.h.b16 %v665
  %v678 = vpack.c.b16 %v671, %v670
  %v679 = vpack.c.b16 %v673, %v672
  %v680 = vpack.c.b16 %v675, %v674
  %v681 = vpack.c.b16 %v677, %v676
  %686 = vst [vmem:[%s3] sm:$0xff] %v678
  %687 = vst [vmem:[%s3 + $0x8] sm:$0xff] %v679
  %688 = vst [vmem:[%s3 + $0x10] sm:$0xff] %v680
  %689 = vst [vmem:[%s3 + $0x18] sm:$0xff] %v681
  // Predicated region
  $region14: #{forward.12} parent=0 // pred_check
    _
  $region15: #{forward.12} parent=0 // pred_check_branch
    %691 = sbr.rel (0) target = $region17
  $region16: #{forward.12} parent=0 // pred_region
    _
  $region17: #{forward.12} parent=0 // pred_fallthru
    _
  // Predicated region
  $region18: #{forward.12} parent=0 // pred_check
    _
  $region19: #{forward.12} parent=0 // pred_check_branch
    %693 = sbr.rel (0) target = $region21
  $region20: #{forward.12} parent=0 // pred_region
    _
  $region21: #{forward.12} parent=0 // pred_fallthru
    _

// kernel: forward.13
$region0: #{forward.13}
  #allocation0 [shape = 'u32[]', space=smem, size = 0x4, offset = 0x4, fixed_abs, tag = 'smem constant byte address 0x4 - core index']
  #allocation1 [shape = 'u32[144,128]{1,0:T(1,128)}', space=vmem, size = 0x12000, scoped, tag = 'internal scratch']
  #allocation2 [shape = 'f32[1,1]{1,0:T(1,128)S(1)}', space=vmem, size = 0x200, scoped, tag = 'scoped memory for forward.13']
  %s0 = inlined_call_operand.vmem [shape: bf16[1,144], index: 0, kind: input, shape index: {}]
  %s1 = inlined_call_operand.<no memory space> [shape: f32[1,1], index: 1, kind: input, shape index: {}]
  %s2 = inlined_call_operand.vmem [shape: bf16[144,2048], index: 2, kind: input, shape index: {}]
  %s3 = inlined_call_operand.vmem [shape: f32[1,2048], index: 3, kind: output, shape index: {}]
  %s4 = sld [smem:[#allocation0]]
  $region68: #{forward.13} parent=0
    _
  %s6 = ssub.s32 1, %s4
  %s7 = scalar_select 0, %s6, %s4
  %v8 = vstv %s1
  %9 = vst [vmem:[#allocation2] sm:$0x1] %v8
  $region1: #{forward.13} parent=0
    #allocation3 [shape = 'u8[589824]{0}', space=vmem, size = 0x90000, scoped, tag = 'input window, operand 2']
    loop: start=0, step=1, limit=4
    $region2: #{forward.13} parent=1 // loop_pre_header
      _
    $region3: #{forward.13} parent=1 // loop_header
      %s11 = sphi 0, %s15
      %p12 = scmp.ge.s32.totalorder %s11, 4
      %s19 = sphi 0, %s19
      %s21 = sphi 0, %s19
      %s22 = sphi 0, %s21
      %s36 = sphi 0, %s22
      %s40 = sphi 0, %s40
      %s42 = sphi 0, %s40
      %s43 = sphi 0, %s42
      %s57 = sphi 0, %s43
      %s63 = sphi 0, %s65
      %s66 = sphi 0, %s63
      %s67 = sphi 0, %s66
      %s83 = sphi 0, %s67
      %s89 = sphi 0, %s91
      %s92 = sphi 0, %s89
      %s93 = sphi 0, %s92
      %s109 = sphi 0, %s93
    $region4: #{forward.13} parent=1 // loop_header_branch
      %14 = sbr.rel (%p12) target = $region8
    $region5: #{forward.13} parent=1 // loop_body
      %s16 = ssub.s32 %s11, 1
      %s17 = ssub.s32 %s11, 2
      %s18 = sadd.s32 %s11, 1
      %s20 = sadd.s32 %s19, 1
      %p23 = scmp.eq.s32.totalorder %s11, 1
      %p24 = scmp.ne.s32.totalorder %s19, %s21
      %p25 = scmp.eq.s32.totalorder %s11, 0
      %p26 = por %p24, %p25
      %p27 = scmp.ne.s32.totalorder %s19, %s21
      %p28 = scmp.eq.s32.totalorder %s16, 1
      %p29 = por %p27, %p28
      %p30 = scmp.ne.s32.totalorder %s21, %s22
      %p31 = scmp.eq.s32.totalorder %s16, 0
      %p32 = por %p30, %p31
      %p33 = scmp.ne.s32.totalorder %s21, %s22
      %p34 = scmp.eq.s32.totalorder %s17, 1
      %p35 = por %p33, %p34
      %p37 = scmp.ne.s32.totalorder %s22, %s36
      %p38 = scmp.eq.s32.totalorder %s17, 0
      %p39 = por %p37, %p38
      %s41 = sadd.s32 %s40, 1
      %p44 = scmp.eq.s32.totalorder %s11, 1
      %p45 = scmp.ne.s32.totalorder %s40, %s42
      %p46 = scmp.eq.s32.totalorder %s11, 0
      %p47 = por %p45, %p46
      %p48 = scmp.ne.s32.totalorder %s40, %s42
      %p49 = scmp.eq.s32.totalorder %s16, 1
      %p50 = por %p48, %p49
      %p51 = scmp.ne.s32.totalorder %s42, %s43
      %p52 = scmp.eq.s32.totalorder %s16, 0
      %p53 = por %p51, %p52
      %p54 = scmp.ne.s32.totalorder %s42, %s43
      %p55 = scmp.eq.s32.totalorder %s17, 1
      %p56 = por %p54, %p55
      %p58 = scmp.ne.s32.totalorder %s43, %s57
      %p59 = scmp.eq.s32.totalorder %s17, 0
      %p60 = por %p58, %p59
      %s61 = ssub.s32 %s11, %s18
      %p62 = scmp.eq.s32.totalorder %s61, 0
      %s64 = sadd.s32 %s63, 1
      %s65 = scalar_select %p62, %s63, %s64
      %p68 = pneg %p62
      %p69 = scmp.eq.s32.totalorder %s11, 1
      %p70 = por %p68, %p69
      %p71 = scmp.ne.s32.totalorder %s63, %s66
      %p72 = scmp.eq.s32.totalorder %s11, 0
      %p73 = por %p71, %p72
      %p74 = scmp.ne.s32.totalorder %s63, %s66
      %p75 = scmp.eq.s32.totalorder %s16, 1
      %p76 = por %p74, %p75
      %p77 = scmp.ne.s32.totalorder %s66, %s67
      %p78 = scmp.eq.s32.totalorder %s16, 0
      %p79 = por %p77, %p78
      %p80 = scmp.ne.s32.totalorder %s66, %s67
      %p81 = scmp.eq.s32.totalorder %s17, 1
      %p82 = por %p80, %p81
      %p84 = scmp.ne.s32.totalorder %s67, %s83
      %p85 = scmp.eq.s32.totalorder %s17, 0
      %p86 = por %p84, %p85
      %s87 = ssub.s32 %s11, %s18
      %p88 = scmp.eq.s32.totalorder %s87, 0
      %s90 = sadd.s32 %s89, 1
      %s91 = scalar_select %p88, %s89, %s90
      %p94 = pneg %p88
      %p95 = scmp.eq.s32.totalorder %s11, 1
      %p96 = por %p94, %p95
      %p97 = scmp.ne.s32.totalorder %s89, %s92
      %p98 = scmp.eq.s32.totalorder %s11, 0
      %p99 = por %p97, %p98
      %p100 = scmp.ne.s32.totalorder %s89, %s92
      %p101 = scmp.eq.s32.totalorder %s16, 1
      %p102 = por %p100, %p101
      %p103 = scmp.ne.s32.totalorder %s92, %s93
      %p104 = scmp.eq.s32.totalorder %s16, 0
      %p105 = por %p103, %p104
      %p106 = scmp.ne.s32.totalorder %s92, %s93
      %p107 = scmp.eq.s32.totalorder %s17, 1
      %p108 = por %p106, %p107
      %p110 = scmp.ne.s32.totalorder %s93, %s109
      %p111 = scmp.eq.s32.totalorder %s17, 0
      %p112 = por %p110, %p111
      %p113 = scmp.le.s32.totalorder 1, %s11
      %p114 = scmp.lt.s32.totalorder %s11, 3
      %p115 = pnand %p113, %p114
      %p116 = pneg %p115
      // Predicated region
      $region9: #{forward.13} parent=5 // pred_check
        _
      $region10: #{forward.13} parent=5 // pred_check_branch
        %118 = sbr.rel (%p115) target = $region12
      $region11: #{forward.13} parent=5 // pred_region
        %s119 = ssub.s32 %s11, 1
        // Predicated region
        $region13: #{forward.13} parent=11 // pred_check
          %p120 = pneg %p32
        $region14: #{forward.13} parent=11 // pred_check_branch
          %122 = sbr.rel (%p120) target = $region16
        $region15: #{forward.13} parent=11 // pred_region
          _
        $region16: #{forward.13} parent=11 // pred_fallthru
          _
        // Predicated region
        $region17: #{forward.13} parent=11 // pred_check
          %p123 = pneg %p53
        $region18: #{forward.13} parent=11 // pred_check_branch
          %125 = sbr.rel (%p123) target = $region20
        $region19: #{forward.13} parent=11 // pred_region
          _
        $region20: #{forward.13} parent=11 // pred_fallthru
          _
      $region12: #{forward.13} parent=5 // pred_fallthru
        _
      %p126 = scmp.lt.s32.totalorder %s11, 2
      // Predicated region
      $region21: #{forward.13} parent=5 // pred_check
        %p127 = pneg %p126
      $region22: #{forward.13} parent=5 // pred_check_branch
        %129 = sbr.rel (%p127) target = $region24
      $region23: #{forward.13} parent=5 // pred_region
        // Predicated region
        $region25: #{forward.13} parent=23 // pred_check
          %p130 = pneg %p73
        $region26: #{forward.13} parent=23 // pred_check_branch
          %132 = sbr.rel (%p130) target = $region28
        $region27: #{forward.13} parent=23 // pred_region
          %s133 = sand.u32 %s63, 1
          %s134 = sand.u32 %s63, 1
          %s135 = smul.addr %s134, 576
          %s136 = scalar_lea.vmem [#allocation3], %s135
          %s137 = smul.u32 8, %s11
          %s138 = smul.addr %s137, 4
          %s139 = scalar_lea.vmem %s2, %s138
          // Predicated region
          $region29: #{forward.13} parent=27 // pred_check
            _
          $region30: #{forward.13} parent=27 // pred_check_branch
            %141 = sbr.rel (0) target = $region32
          $region31: #{forward.13} parent=27 // pred_region
            // Predicated region
            $region33: #{forward.13} parent=31 // pred_check
              _
            $region34: #{forward.13} parent=31 // pred_check_branch
              %143 = sbr.rel (0) target = $region36
            $region35: #{forward.13} parent=31 // pred_region
              loop: start=0, step=1, limit=1
              $region37: #{forward.13} parent=35 // loop_pre_header
                _
              $region38: #{forward.13} parent=35 // loop_header
                %s145 = sphi 0, %s149
                %p146 = scmp.ge.s32.totalorder %s145, 1
                %s150 = sphi %s139, %s139
                %s151 = sphi %s136, %s136
              $region39: #{forward.13} parent=35 // loop_header_branch
                %148 = sbr.rel (%p146) target = $region43
              $region40: #{forward.13} parent=35 // loop_body
                %v152 = vld [vmem:[%s150] sm:$0xff]
                %153 = vst [vmem:[%s151] sm:$0xff] %v152
                %v154 = vld [vmem:[%s150 + $0x8] sm:$0xff]
                %155 = vst [vmem:[%s151 + $0x8] sm:$0xff] %v154
                %v156 = vld [vmem:[%s150 + $0x10] sm:$0xff]
                %157 = vst [vmem:[%s151 + $0x10] sm:$0xff] %v156
                %v158 = vld [vmem:[%s150 + $0x18] sm:$0xff]
                %159 = vst [vmem:[%s151 + $0x18] sm:$0xff] %v158
                %v160 = vld [vmem:[%s150 + $0x40] sm:$0xff]
                %161 = vst [vmem:[%s151 + $0x20] sm:$0xff] %v160
                %v162 = vld [vmem:[%s150 + $0x48] sm:$0xff]
                %163 = vst [vmem:[%s151 + $0x28] sm:$0xff] %v162
                %v164 = vld [vmem:[%s150 + $0x50] sm:$0xff]
                %165 = vst [vmem:[%s151 + $0x30] sm:$0xff] %v164
                %v166 = vld [vmem:[%s150 + $0x58] sm:$0xff]
                %167 = vst [vmem:[%s151 + $0x38] sm:$0xff] %v166
                %v168 = vld [vmem:[%s150 + $0x80] sm:$0xff]
                %169 = vst [vmem:[%s151 + $0x40] sm:$0xff] %v168
                %v170 = vld [vmem:[%s150 + $0x88] sm:$0xff]
                %171 = vst [vmem:[%s151 + $0x48] sm:$0xff] %v170
                %v172 = vld [vmem:[%s150 + $0x90] sm:$0xff]
                %173 = vst [vmem:[%s151 + $0x50] sm:$0xff] %v172
                %v174 = vld [vmem:[%s150 + $0x98] sm:$0xff]
                %175 = vst [vmem:[%s151 + $0x58] sm:$0xff] %v174
                %v176 = vld [vmem:[%s150 + $0xc0] sm:$0xff]
                %177 = vst [vmem:[%s151 + $0x60] sm:$0xff] %v176
                %v178 = vld [vmem:[%s150 + $0xc8] sm:$0xff]
                %179 = vst [vmem:[%s151 + $0x68] sm:$0xff] %v178
                %v180 = vld [vmem:[%s150 + $0xd0] sm:$0xff]
                %181 = vst [vmem:[%s151 + $0x70] sm:$0xff] %v180
                %v182 = vld [vmem:[%s150 + $0xd8] sm:$0xff]
                %183 = vst [vmem:[%s151 + $0x78] sm:$0xff] %v182
                %v184 = vld [vmem:[%s150 + $0x100] sm:$0xff]
                %185 = vst [vmem:[%s151 + $0x80] sm:$0xff] %v184
                %v186 = vld [vmem:[%s150 + $0x108] sm:$0xff]
                %187 = vst [vmem:[%s151 + $0x88] sm:$0xff] %v186
                %v188 = vld [vmem:[%s150 + $0x110] sm:$0xff]
                %189 = vst [vmem:[%s151 + $0x90] sm:$0xff] %v188
                %v190 = vld [vmem:[%s150 + $0x118] sm:$0xff]
                %191 = vst [vmem:[%s151 + $0x98] sm:$0xff] %v190
                %v192 = vld [vmem:[%s150 + $0x140] sm:$0xff]
                %193 = vst [vmem:[%s151 + $0xa0] sm:$0xff] %v192
                %v194 = vld [vmem:[%s150 + $0x148] sm:$0xff]
                %195 = vst [vmem:[%s151 + $0xa8] sm:$0xff] %v194
                %v196 = vld [vmem:[%s150 + $0x150] sm:$0xff]
                %197 = vst [vmem:[%s151 + $0xb0] sm:$0xff] %v196
                %v198 = vld [vmem:[%s150 + $0x158] sm:$0xff]
                %199 = vst [vmem:[%s151 + $0xb8] sm:$0xff] %v198
                %v200 = vld [vmem:[%s150 + $0x180] sm:$0xff]
                %201 = vst [vmem:[%s151 + $0xc0] sm:$0xff] %v200
                %v202 = vld [vmem:[%s150 + $0x188] sm:$0xff]
                %203 = vst [vmem:[%s151 + $0xc8] sm:$0xff] %v202
                %v204 = vld [vmem:[%s150 + $0x190] sm:$0xff]
                %205 = vst [vmem:[%s151 + $0xd0] sm:$0xff] %v204
                %v206 = vld [vmem:[%s150 + $0x198] sm:$0xff]
                %207 = vst [vmem:[%s151 + $0xd8] sm:$0xff] %v206
                %v208 = vld [vmem:[%s150 + $0x1c0] sm:$0xff]
                %209 = vst [vmem:[%s151 + $0xe0] sm:$0xff] %v208
                %v210 = vld [vmem:[%s150 + $0x1c8] sm:$0xff]
                %211 = vst [vmem:[%s151 + $0xe8] sm:$0xff] %v210
                %v212 = vld [vmem:[%s150 + $0x1d0] sm:$0xff]
                %213 = vst [vmem:[%s151 + $0xf0] sm:$0xff] %v212
                %v214 = vld [vmem:[%s150 + $0x1d8] sm:$0xff]
                %215 = vst [vmem:[%s151 + $0xf8] sm:$0xff] %v214
                %v216 = vld [vmem:[%s150 + $0x200] sm:$0xff]
                %217 = vst [vmem:[%s151 + $0x100] sm:$0xff] %v216
                %v218 = vld [vmem:[%s150 + $0x208] sm:$0xff]
                %219 = vst [vmem:[%s151 + $0x108] sm:$0xff] %v218
                %v220 = vld [vmem:[%s150 + $0x210] sm:$0xff]
                %221 = vst [vmem:[%s151 + $0x110] sm:$0xff] %v220
                %v222 = vld [vmem:[%s150 + $0x218] sm:$0xff]
                %223 = vst [vmem:[%s151 + $0x118] sm:$0xff] %v222
                %v224 = vld [vmem:[%s150 + $0x240] sm:$0xff]
                %225 = vst [vmem:[%s151 + $0x120] sm:$0xff] %v224
                %v226 = vld [vmem:[%s150 + $0x248] sm:$0xff]
                %227 = vst [vmem:[%s151 + $0x128] sm:$0xff] %v226
                %v228 = vld [vmem:[%s150 + $0x250] sm:$0xff]
                %229 = vst [vmem:[%s151 + $0x130] sm:$0xff] %v228
                %v230 = vld [vmem:[%s150 + $0x258] sm:$0xff]
                %231 = vst [vmem:[%s151 + $0x138] sm:$0xff] %v230
                %v232 = vld [vmem:[%s150 + $0x280] sm:$0xff]
                %233 = vst [vmem:[%s151 + $0x140] sm:$0xff] %v232
                %v234 = vld [vmem:[%s150 + $0x288] sm:$0xff]
                %235 = vst [vmem:[%s151 + $0x148] sm:$0xff] %v234
                %v236 = vld [vmem:[%s150 + $0x290] sm:$0xff]
                %237 = vst [vmem:[%s151 + $0x150] sm:$0xff] %v236
                %v238 = vld [vmem:[%s150 + $0x298] sm:$0xff]
                %239 = vst [vmem:[%s151 + $0x158] sm:$0xff] %v238
                %v240 = vld [vmem:[%s150 + $0x2c0] sm:$0xff]
                %241 = vst [vmem:[%s151 + $0x160] sm:$0xff] %v240
                %v242 = vld [vmem:[%s150 + $0x2c8] sm:$0xff]
                %243 = vst [vmem:[%s151 + $0x168] sm:$0xff] %v242
                %v244 = vld [vmem:[%s150 + $0x2d0] sm:$0xff]
                %245 = vst [vmem:[%s151 + $0x170] sm:$0xff] %v244
                %v246 = vld [vmem:[%s150 + $0x2d8] sm:$0xff]
                %247 = vst [vmem:[%s151 + $0x178] sm:$0xff] %v246
                %v248 = vld [vmem:[%s150 + $0x300] sm:$0xff]
                %249 = vst [vmem:[%s151 + $0x180] sm:$0xff] %v248
                %v250 = vld [vmem:[%s150 + $0x308] sm:$0xff]
                %251 = vst [vmem:[%s151 + $0x188] sm:$0xff] %v250
                %v252 = vld [vmem:[%s150 + $0x310] sm:$0xff]
                %253 = vst [vmem:[%s151 + $0x190] sm:$0xff] %v252
                %v254 = vld [vmem:[%s150 + $0x318] sm:$0xff]
                %255 = vst [vmem:[%s151 + $0x198] sm:$0xff] %v254
                %v256 = vld [vmem:[%s150 + $0x340] sm:$0xff]
                %257 = vst [vmem:[%s151 + $0x1a0] sm:$0xff] %v256
                %v258 = vld [vmem:[%s150 + $0x348] sm:$0xff]
                %259 = vst [vmem:[%s151 + $0x1a8] sm:$0xff] %v258
                %v260 = vld [vmem:[%s150 + $0x350] sm:$0xff]
                %261 = vst [vmem:[%s151 + $0x1b0] sm:$0xff] %v260
                %v262 = vld [vmem:[%s150 + $0x358] sm:$0xff]
                %263 = vst [vmem:[%s151 + $0x1b8] sm:$0xff] %v262
                %v264 = vld [vmem:[%s150 + $0x380] sm:$0xff]
                %265 = vst [vmem:[%s151 + $0x1c0] sm:$0xff] %v264
                %v266 = vld [vmem:[%s150 + $0x388] sm:$0xff]
                %267 = vst [vmem:[%s151 + $0x1c8] sm:$0xff] %v266
                %v268 = vld [vmem:[%s150 + $0x390] sm:$0xff]
                %269 = vst [vmem:[%s151 + $0x1d0] sm:$0xff] %v268
                %v270 = vld [vmem:[%s150 + $0x398] sm:$0xff]
                %271 = vst [vmem:[%s151 + $0x1d8] sm:$0xff] %v270
                %v272 = vld [vmem:[%s150 + $0x3c0] sm:$0xff]
                %273 = vst [vmem:[%s151 + $0x1e0] sm:$0xff] %v272
                %v274 = vld [vmem:[%s150 + $0x3c8] sm:$0xff]
                %275 = vst [vmem:[%s151 + $0x1e8] sm:$0xff] %v274
                %v276 = vld [vmem:[%s150 + $0x3d0] sm:$0xff]
                %277 = vst [vmem:[%s151 + $0x1f0] sm:$0xff] %v276
                %v278 = vld [vmem:[%s150 + $0x3d8] sm:$0xff]
                %279 = vst [vmem:[%s151 + $0x1f8] sm:$0xff] %v278
                %v280 = vld [vmem:[%s150 + $0x400] sm:$0xff]
                %281 = vst [vmem:[%s151 + $0x200] sm:$0xff] %v280
                %v282 = vld [vmem:[%s150 + $0x408] sm:$0xff]
                %283 = vst [vmem:[%s151 + $0x208] sm:$0xff] %v282
                %v284 = vld [vmem:[%s150 + $0x410] sm:$0xff]
                %285 = vst [vmem:[%s151 + $0x210] sm:$0xff] %v284
                %v286 = vld [vmem:[%s150 + $0x418] sm:$0xff]
                %287 = vst [vmem:[%s151 + $0x218] sm:$0xff] %v286
                %v288 = vld [vmem:[%s150 + $0x440] sm:$0xff]
                %289 = vst [vmem:[%s151 + $0x220] sm:$0xff] %v288
                %v290 = vld [vmem:[%s150 + $0x448] sm:$0xff]
                %291 = vst [vmem:[%s151 + $0x228] sm:$0xff] %v290
                %v292 = vld [vmem:[%s150 + $0x450] sm:$0xff]
                %293 = vst [vmem:[%s151 + $0x230] sm:$0xff] %v292
                %v294 = vld [vmem:[%s150 + $0x458] sm:$0xff]
                %295 = vst [vmem:[%s151 + $0x238] sm:$0xff] %v294
              $region41: #{forward.13} parent=35 // loop_footer
                %s149 = sadd.s32 1, %s145
              $region42: #{forward.13} parent=35 // loop_footer_branch
                %144 = sbr.rel target = $region38
              $region43: #{forward.13} parent=35 // loop_exit
                _
            $region36: #{forward.13} parent=31 // pred_fallthru
              _
            // Predicated region
            $region44: #{forward.13} parent=31 // pred_check
              _
            $region45: #{forward.13} parent=31 // pred_check_branch
              %297 = sbr.rel target = $region47
            $region46: #{forward.13} parent=31 // pred_region
              _
            $region47: #{forward.13} parent=31 // pred_fallthru
              _
          $region32: #{forward.13} parent=27 // pred_fallthru
            _
          %298 = vnop
        $region28: #{forward.13} parent=23 // pred_fallthru
          _
      $region24: #{forward.13} parent=5 // pred_fallthru
        _
      %p299 = scmp.le.s32.totalorder 1, %s11
      %p300 = scmp.lt.s32.totalorder %s11, 3
      %p301 = pnand %p299, %p300
      %p302 = pneg %p301
      // Predicated region
      $region48: #{forward.13} parent=5 // pred_check
        _
      $region49: #{forward.13} parent=5 // pred_check_branch
        %304 = sbr.rel (%p301) target = $region51
      $region50: #{forward.13} parent=5 // pred_region
        %s305 = ssub.s32 %s11, 1
        %s306 = sand.u32 %s66, 1
        %s307 = sand.u32 %s66, 1
        %s308 = smul.addr %s307, 576
        %s309 = scalar_lea.vmem [#allocation3], %s308
        // Predicated region
        $region52: #{forward.13} parent=50 // pred_check
          %p310 = pneg %p79
        $region53: #{forward.13} parent=50 // pred_check_branch
          %312 = sbr.rel (%p310) target = $region55
        $region54: #{forward.13} parent=50 // pred_region
          _
        $region55: #{forward.13} parent=50 // pred_fallthru
          _
        %p313 = pneg %p32
        %p314 = pneg %p29
        %p315 = pneg %p53
        %p316 = pneg %p50
        %s317 = sand.u32 %s66, 1
        %s318 = sand.u32 %s66, 1
        %s319 = smul.addr %s318, 576
        %s320 = scalar_lea.vmem [#allocation3], %s319
        %p321 = pneg %p79
        %p322 = pneg %p76
        %p323 = pneg %p105
        %p324 = pneg %p102
        %s325 = smul.u32 8, %s16
        %p326 = scmp.lt.s32.totalorder %s325, 15
        %s327 = scalar_select %p326, %s325, 15
        %s328 = scalar_lea.vmem %s3, %s327
        %s329 = smul.u32 8, %s16
        %s330 = smul.u32 8, %s16
        %p331 = scmp.lt.s32.totalorder %s330, 15
        %s332 = scalar_select %p331, %s330, 15
        %s333 = scalar_lea.vmem %s3, %s332
        %s334 = smul.u32 8, %s16
        %v336 = vld [vmem:[%s0] sm:$0x3]
        %v337 = vld [vmem:[%s309] sm:$0xff]
        %v338 = vld [vmem:[%s309 + $0x8] sm:$0xff]
        %v339 = vld [vmem:[%s309 + $0x10] sm:$0xff]
        %v340 = vld [vmem:[%s309 + $0x18] sm:$0xff]
        %v341 = vld [vmem:[%s309 + $0x20] sm:$0xff]
        %v342 = vld [vmem:[%s309 + $0x28] sm:$0xff]
        %v343 = vld [vmem:[%s309 + $0x30] sm:$0xff]
        %v344 = vld [vmem:[%s309 + $0x38] sm:$0xff]
        %v345 = vld [vmem:[%s309 + $0x40] sm:$0xff]
        %v346 = vld [vmem:[%s309 + $0x48] sm:$0xff]
        %v347 = vld [vmem:[%s309 + $0x50] sm:$0xff]
        %v348 = vld [vmem:[%s309 + $0x58] sm:$0xff]
        %v349 = vld [vmem:[%s309 + $0x60] sm:$0xff]
        %v350 = vld [vmem:[%s309 + $0x68] sm:$0xff]
        %v351 = vld [vmem:[%s309 + $0x70] sm:$0xff]
        %v352 = vld [vmem:[%s309 + $0x78] sm:$0xff]
        %v353 = vld [vmem:[%s309 + $0x80] sm:$0xff]
        %v354 = vld [vmem:[%s309 + $0x88] sm:$0xff]
        %v355 = vld [vmem:[%s309 + $0x90] sm:$0xff]
        %v356 = vld [vmem:[%s309 + $0x98] sm:$0xff]
        %v357 = vld [vmem:[%s309 + $0xa0] sm:$0xff]
        %v358 = vld [vmem:[%s309 + $0xa8] sm:$0xff]
        %v359 = vld [vmem:[%s309 + $0xb0] sm:$0xff]
        %v360 = vld [vmem:[%s309 + $0xb8] sm:$0xff]
        %v361 = vld [vmem:[%s309 + $0xc0] sm:$0xff]
        %v362 = vld [vmem:[%s309 + $0xc8] sm:$0xff]
        %v363 = vld [vmem:[%s309 + $0xd0] sm:$0xff]
        %v364 = vld [vmem:[%s309 + $0xd8] sm:$0xff]
        %v365 = vld [vmem:[%s309 + $0xe0] sm:$0xff]
        %v366 = vld [vmem:[%s309 + $0xe8] sm:$0xff]
        %v367 = vld [vmem:[%s309 + $0xf0] sm:$0xff]
        %v368 = vld [vmem:[%s309 + $0xf8] sm:$0xff]
        %v369 = vld [vmem:[%s309 + $0x100] sm:$0xff]
        %v370 = vld [vmem:[%s309 + $0x108] sm:$0xff]
        %v371 = vld [vmem:[%s309 + $0x110] sm:$0xff]
        %v372 = vld [vmem:[%s309 + $0x118] sm:$0xff]
        %v373 = vld [vmem:[%s309 + $0x120] sm:$0xff]
        %v374 = vld [vmem:[%s309 + $0x128] sm:$0xff]
        %v375 = vld [vmem:[%s309 + $0x130] sm:$0xff]
        %v376 = vld [vmem:[%s309 + $0x138] sm:$0xff]
        %v377 = vld [vmem:[%s309 + $0x140] sm:$0xff]
        %v378 = vld [vmem:[%s309 + $0x148] sm:$0xff]
        %v379 = vld [vmem:[%s309 + $0x150] sm:$0xff]
        %v380 = vld [vmem:[%s309 + $0x158] sm:$0xff]
        %v381 = vld [vmem:[%s309 + $0x160] sm:$0xff]
        %v382 = vld [vmem:[%s309 + $0x168] sm:$0xff]
        %v383 = vld [vmem:[%s309 + $0x170] sm:$0xff]
        %v384 = vld [vmem:[%s309 + $0x178] sm:$0xff]
        %v385 = vld [vmem:[%s309 + $0x180] sm:$0xff]
        %v386 = vld [vmem:[%s309 + $0x188] sm:$0xff]
        %v387 = vld [vmem:[%s309 + $0x190] sm:$0xff]
        %v388 = vld [vmem:[%s309 + $0x198] sm:$0xff]
        %v389 = vld [vmem:[%s309 + $0x1a0] sm:$0xff]
        %v390 = vld [vmem:[%s309 + $0x1a8] sm:$0xff]
        %v391 = vld [vmem:[%s309 + $0x1b0] sm:$0xff]
        %v392 = vld [vmem:[%s309 + $0x1b8] sm:$0xff]
        %v393 = vld [vmem:[%s309 + $0x1c0] sm:$0xff]
        %v394 = vld [vmem:[%s309 + $0x1c8] sm:$0xff]
        %v395 = vld [vmem:[%s309 + $0x1d0] sm:$0xff]
        %v396 = vld [vmem:[%s309 + $0x1d8] sm:$0xff]
        %v397 = vld [vmem:[%s309 + $0x1e0] sm:$0xff]
        %v398 = vld [vmem:[%s309 + $0x1e8] sm:$0xff]
        %v399 = vld [vmem:[%s309 + $0x1f0] sm:$0xff]
        %v400 = vld [vmem:[%s309 + $0x1f8] sm:$0xff]
        %v401 = vld [vmem:[%s309 + $0x200] sm:$0xff]
        %v402 = vld [vmem:[%s309 + $0x208] sm:$0xff]
        %v403 = vld [vmem:[%s309 + $0x210] sm:$0xff]
        %v404 = vld [vmem:[%s309 + $0x218] sm:$0xff]
        %v405 = vld [vmem:[%s309 + $0x220] sm:$0xff]
        %v406 = vld [vmem:[%s309 + $0x228] sm:$0xff]
        %v407 = vld [vmem:[%s309 + $0x230] sm:$0xff]
        %v408 = vld [vmem:[%s309 + $0x238] sm:$0xff]
        %v409 = vld [vmem:[#allocation2] sm:$0x1]
        %411 = vset.pattern.permute.xlu0 0
        %412 = vperm.xlu0 %411, %v409
        %v413 = vpop.permute.xlu0 %412
        %v415 = vlaneseq
        %v416 = vshrl.u32 %v415, 7
        %v417 = vsub.s32 0, %v416
        %v418 = vrot.slane %v413, %v417
        %v421 = vunpack.c.l.s4 1966171168
        %v422 = vunpack.c.0.s8 %v421
        %v423 = vlaneseq
        %v424 = vshrl.u32 %v423, 7
        %v425 = vsub.s32 %v422, %v424
        %v426 = vrot.slane %v336, %v425
        %v427 = vcombine.high %v426, %v426
        %v429 = vunpack.c.l.s4 1966171168
        %v430 = vunpack.c.0.s8 %v429
        %v431 = vlaneseq
        %v432 = vshrl.u32 %v431, 7
        %v433 = vsub.s32 %v430, %v432
        %v434 = vrot.slane %v426, %v433
        %v436 = vunpack.c.l.s4 1966171168
        %v437 = vunpack.c.0.s8 %v436
        %v438 = vlaneseq
        %v439 = vshrl.u32 %v438, 7
        %v440 = vsub.s32 %v437, %v439
        %v441 = vrot.slane %v427, %v440
        %v515 = vunpack.c.l.b16 %v337
        %v516 = vunpack.c.h.b16 %v337
        %v517 = vunpack.c.l.b16 %v338
        %v518 = vunpack.c.h.b16 %v338
        %v519 = vunpack.c.l.b16 %v339
        %v520 = vunpack.c.h.b16 %v339
        %v521 = vunpack.c.l.b16 %v340
        %v522 = vunpack.c.h.b16 %v340
        %v523 = vunpack.c.l.b16 %v341
        %v524 = vunpack.c.h.b16 %v341
        %v525 = vunpack.c.l.b16 %v342
        %v526 = vunpack.c.h.b16 %v342
        %v527 = vunpack.c.l.b16 %v343
        %v528 = vunpack.c.h.b16 %v343
        %v529 = vunpack.c.l.b16 %v344
        %v530 = vunpack.c.h.b16 %v344
        %v531 = vunpack.c.l.b16 %v345
        %v532 = vunpack.c.h.b16 %v345
        %v533 = vunpack.c.l.b16 %v346
        %v534 = vunpack.c.h.b16 %v346
        %v535 = vunpack.c.l.b16 %v347
        %v536 = vunpack.c.h.b16 %v347
        %v537 = vunpack.c.l.b16 %v348
        %v538 = vunpack.c.h.b16 %v348
        %v539 = vunpack.c.l.b16 %v349
        %v540 = vunpack.c.h.b16 %v349
        %v541 = vunpack.c.l.b16 %v350
        %v542 = vunpack.c.h.b16 %v350
        %v543 = vunpack.c.l.b16 %v351
        %v544 = vunpack.c.h.b16 %v351
        %v545 = vunpack.c.l.b16 %v352
        %v546 = vunpack.c.h.b16 %v352
        %v547 = vunpack.c.l.b16 %v353
        %v548 = vunpack.c.h.b16 %v353
        %v549 = vunpack.c.l.b16 %v354
        %v550 = vunpack.c.h.b16 %v354
        %v551 = vunpack.c.l.b16 %v355
        %v552 = vunpack.c.h.b16 %v355
        %v553 = vunpack.c.l.b16 %v356
        %v554 = vunpack.c.h.b16 %v356
        %v555 = vunpack.c.l.b16 %v357
        %v556 = vunpack.c.h.b16 %v357
        %v557 = vunpack.c.l.b16 %v358
        %v558 = vunpack.c.h.b16 %v358
        %v559 = vunpack.c.l.b16 %v359
        %v560 = vunpack.c.h.b16 %v359
        %v561 = vunpack.c.l.b16 %v360
        %v562 = vunpack.c.h.b16 %v360
        %v563 = vunpack.c.l.b16 %v361
        %v564 = vunpack.c.h.b16 %v361
        %v565 = vunpack.c.l.b16 %v362
        %v566 = vunpack.c.h.b16 %v362
        %v567 = vunpack.c.l.b16 %v363
        %v568 = vunpack.c.h.b16 %v363
        %v569 = vunpack.c.l.b16 %v364
        %v570 = vunpack.c.h.b16 %v364
        %v571 = vunpack.c.l.b16 %v365
        %v572 = vunpack.c.h.b16 %v365
        %v573 = vunpack.c.l.b16 %v366
        %v574 = vunpack.c.h.b16 %v366
        %v575 = vunpack.c.l.b16 %v367
        %v576 = vunpack.c.h.b16 %v367
        %v577 = vunpack.c.l.b16 %v368
        %v578 = vunpack.c.h.b16 %v368
        %v579 = vunpack.c.l.b16 %v369
        %v580 = vunpack.c.h.b16 %v369
        %v581 = vunpack.c.l.b16 %v370
        %v582 = vunpack.c.h.b16 %v370
        %v583 = vunpack.c.l.b16 %v371
        %v584 = vunpack.c.h.b16 %v371
        %v585 = vunpack.c.l.b16 %v372
        %v586 = vunpack.c.h.b16 %v372
        %v587 = vunpack.c.l.b16 %v373
        %v588 = vunpack.c.h.b16 %v373
        %v589 = vunpack.c.l.b16 %v374
        %v590 = vunpack.c.h.b16 %v374
        %v591 = vunpack.c.l.b16 %v375
        %v592 = vunpack.c.h.b16 %v375
        %v593 = vunpack.c.l.b16 %v376
        %v594 = vunpack.c.h.b16 %v376
        %v595 = vunpack.c.l.b16 %v377
        %v596 = vunpack.c.h.b16 %v377
        %v597 = vunpack.c.l.b16 %v378
        %v598 = vunpack.c.h.b16 %v378
        %v599 = vunpack.c.l.b16 %v379
        %v600 = vunpack.c.h.b16 %v379
        %v601 = vunpack.c.l.b16 %v380
        %v602 = vunpack.c.h.b16 %v380
        %v603 = vunpack.c.l.b16 %v381
        %v604 = vunpack.c.h.b16 %v381
        %v605 = vunpack.c.l.b16 %v382
        %v606 = vunpack.c.h.b16 %v382
        %v607 = vunpack.c.l.b16 %v383
        %v608 = vunpack.c.h.b16 %v383
        %v609 = vunpack.c.l.b16 %v384
        %v610 = vunpack.c.h.b16 %v384
        %v611 = vunpack.c.l.b16 %v385
        %v612 = vunpack.c.h.b16 %v385
        %v613 = vunpack.c.l.b16 %v386
        %v614 = vunpack.c.h.b16 %v386
        %v615 = vunpack.c.l.b16 %v387
        %v616 = vunpack.c.h.b16 %v387
        %v617 = vunpack.c.l.b16 %v388
        %v618 = vunpack.c.h.b16 %v388
        %v619 = vunpack.c.l.b16 %v389
        %v620 = vunpack.c.h.b16 %v389
        %v621 = vunpack.c.l.b16 %v390
        %v622 = vunpack.c.h.b16 %v390
        %v623 = vunpack.c.l.b16 %v391
        %v624 = vunpack.c.h.b16 %v391
        %v625 = vunpack.c.l.b16 %v392
        %v626 = vunpack.c.h.b16 %v392
        %v627 = vunpack.c.l.b16 %v393
        %v628 = vunpack.c.h.b16 %v393
        %v629 = vunpack.c.l.b16 %v394
        %v630 = vunpack.c.h.b16 %v394
        %v631 = vunpack.c.l.b16 %v395
        %v632 = vunpack.c.h.b16 %v395
        %v633 = vunpack.c.l.b16 %v396
        %v634 = vunpack.c.h.b16 %v396
        %v635 = vunpack.c.l.b16 %v397
        %v636 = vunpack.c.h.b16 %v397
        %v637 = vunpack.c.l.b16 %v398
        %v638 = vunpack.c.h.b16 %v398
        %v639 = vunpack.c.l.b16 %v399
        %v640 = vunpack.c.h.b16 %v399
        %v641 = vunpack.c.l.b16 %v400
        %v642 = vunpack.c.h.b16 %v400
        %v643 = vunpack.c.l.b16 %v401
        %v644 = vunpack.c.h.b16 %v401
        %v645 = vunpack.c.l.b16 %v402
        %v646 = vunpack.c.h.b16 %v402
        %v647 = vunpack.c.l.b16 %v403
        %v648 = vunpack.c.h.b16 %v403
        %v649 = vunpack.c.l.b16 %v404
        %v650 = vunpack.c.h.b16 %v404
        %v651 = vunpack.c.l.b16 %v405
        %v652 = vunpack.c.h.b16 %v405
        %v653 = vunpack.c.l.b16 %v406
        %v654 = vunpack.c.h.b16 %v406
        %v655 = vunpack.c.l.b16 %v407
        %v656 = vunpack.c.h.b16 %v407
        %v657 = vunpack.c.l.b16 %v408
        %v658 = vunpack.c.h.b16 %v408
        %v659 = vpack.c.b16 %v523, %v515
        %v660 = vpack.c.b16 %v524, %v516
        %v661 = vpack.c.b16 %v525, %v517
        %v662 = vpack.c.b16 %v526, %v518
        %v663 = vpack.c.b16 %v527, %v519
        %v664 = vpack.c.b16 %v528, %v520
        %v665 = vpack.c.b16 %v529, %v521
        %v666 = vpack.c.b16 %v530, %v522
        %v667 = vpack.c.b16 %v539, %v531
        %v668 = vpack.c.b16 %v540, %v532
        %v669 = vpack.c.b16 %v541, %v533
        %v670 = vpack.c.b16 %v542, %v534
        %v671 = vpack.c.b16 %v543, %v535
        %v672 = vpack.c.b16 %v544, %v536
        %v673 = vpack.c.b16 %v545, %v537
        %v674 = vpack.c.b16 %v546, %v538
        %v675 = vpack.c.b16 %v555, %v547
        %v676 = vpack.c.b16 %v556, %v548
        %v677 = vpack.c.b16 %v557, %v549
        %v678 = vpack.c.b16 %v558, %v550
        %v679 = vpack.c.b16 %v559, %v551
        %v680 = vpack.c.b16 %v560, %v552
        %v681 = vpack.c.b16 %v561, %v553
        %v682 = vpack.c.b16 %v562, %v554
        %v683 = vpack.c.b16 %v571, %v563
        %v684 = vpack.c.b16 %v572, %v564
        %v685 = vpack.c.b16 %v573, %v565
        %v686 = vpack.c.b16 %v574, %v566
        %v687 = vpack.c.b16 %v575, %v567
        %v688 = vpack.c.b16 %v576, %v568
        %v689 = vpack.c.b16 %v577, %v569
        %v690 = vpack.c.b16 %v578, %v570
        %v691 = vpack.c.b16 %v587, %v579
        %v692 = vpack.c.b16 %v588, %v580
        %v693 = vpack.c.b16 %v589, %v581
        %v694 = vpack.c.b16 %v590, %v582
        %v695 = vpack.c.b16 %v591, %v583
        %v696 = vpack.c.b16 %v592, %v584
        %v697 = vpack.c.b16 %v593, %v585
        %v698 = vpack.c.b16 %v594, %v586
        %v699 = vpack.c.b16 %v603, %v595
        %v700 = vpack.c.b16 %v604, %v596
        %v701 = vpack.c.b16 %v605, %v597
        %v702 = vpack.c.b16 %v606, %v598
        %v703 = vpack.c.b16 %v607, %v599
        %v704 = vpack.c.b16 %v608, %v600
        %v705 = vpack.c.b16 %v609, %v601
        %v706 = vpack.c.b16 %v610, %v602
        %v707 = vpack.c.b16 %v619, %v611
        %v708 = vpack.c.b16 %v620, %v612
        %v709 = vpack.c.b16 %v621, %v613
        %v710 = vpack.c.b16 %v622, %v614
        %v711 = vpack.c.b16 %v623, %v615
        %v712 = vpack.c.b16 %v624, %v616
        %v713 = vpack.c.b16 %v625, %v617
        %v714 = vpack.c.b16 %v626, %v618
        %v715 = vpack.c.b16 %v635, %v627
        %v716 = vpack.c.b16 %v636, %v628
        %v717 = vpack.c.b16 %v637, %v629
        %v718 = vpack.c.b16 %v638, %v630
        %v719 = vpack.c.b16 %v639, %v631
        %v720 = vpack.c.b16 %v640, %v632
        %v721 = vpack.c.b16 %v641, %v633
        %v722 = vpack.c.b16 %v642, %v634
        %v723 = vpack.c.b16 %v651, %v643
        %v724 = vpack.c.b16 %v652, %v644
        %v725 = vpack.c.b16 %v653, %v645
        %v726 = vpack.c.b16 %v654, %v646
        %v727 = vpack.c.b16 %v655, %v647
        %v728 = vpack.c.b16 %v656, %v648
        %v729 = vpack.c.b16 %v657, %v649
        %v730 = vpack.c.b16 %v658, %v650
        %vm803 = vcmask 130048
        %v805 = vsel %vm803, %v441, 0
        %807 = vmatprep.subr.bf16.mxu0 %v660
        %808 = vmatpush1.bf16.msra.mxu0 %v659
        %809 = vmatprep.subr.bf16.mxu0 %v668
        %810 = vmatpush1.bf16.msra.mxu0 %v667
        %811 = vmatprep.subr.bf16.mxu0 %v676
        %812 = vmatpush1.bf16.msra.mxu0 %v675
        %813 = vmatprep.subr.bf16.mxu0 %v684
        %814 = vmatpush1.bf16.msra.mxu0 %v683
        %815 = vmatprep.subr.bf16.mxu0 %v692
        %816 = vmatpush1.bf16.msra.mxu0 %v691
        %817 = vmatprep.subr.bf16.mxu0 %v700
        %818 = vmatpush1.bf16.msra.mxu0 %v699
        %819 = vmatprep.subr.bf16.mxu0 %v708
        %820 = vmatpush1.bf16.msra.mxu0 %v707
        %821 = vmatprep.subr.bf16.mxu0 %v716
        %822 = vmatpush1.bf16.msra.mxu0 %v715
        %823 = vmatprep.subr.bf16.mxu0 %v724
        %824 = vmatpush1.bf16.msra.mxu0 %v723
        %825 = vmatprep.subr.bf16.mxu0 0
        %826 = vmatpush1.bf16.msra.mxu0 0
        %827 = vmatprep.subr.bf16.mxu0 0
        %828 = vmatpush1.bf16.msra.mxu0 0
        %829 = vmatprep.subr.bf16.mxu0 0
        %830 = vmatpush1.bf16.msra.mxu0 0
        %831 = vmatprep.subr.bf16.mxu0 0
        %832 = vmatpush1.bf16.msra.mxu0 0
        %833 = vmatprep.subr.bf16.mxu0 0
        %834 = vmatpush1.bf16.msra.mxu0 0
        %835 = vmatprep.subr.bf16.mxu0 0
        %836 = vmatpush1.bf16.msra.mxu0 0
        %837 = vmatprep.subr.bf16.mxu0 0
        %838 = vmatpush1.bf16.msra.mxu0 0
        %839 = vmatprep.mubr.bf16.mxu0 %v805
        %840 = vmatmul.mubr.bf16.gmra.mrb[0].mxu0 %v434
        %v841 = vpop.f32.mrb[0].mxu0
        %v842 = vadd.f32 %v418, %v841
        %v843 = vpop.f32.mrb[0].mxu0
        %v844 = vadd.f32 %v418, %v843
        %v845 = vpop.f32.mrb[0].mxu0
        %v846 = vpop.f32.mrb[0].mxu0
        %847 = vdwg.mxu0
        %848 = vmatprep.subr.bf16.mxu0 %v662
        %849 = vmatpush1.bf16.msra.mxu0 %v661
        %850 = vmatprep.subr.bf16.mxu0 %v670
        %851 = vmatpush1.bf16.msra.mxu0 %v669
        %852 = vmatprep.subr.bf16.mxu0 %v678
        %853 = vmatpush1.bf16.msra.mxu0 %v677
        %854 = vmatprep.subr.bf16.mxu0 %v686
        %855 = vmatpush1.bf16.msra.mxu0 %v685
        %856 = vmatprep.subr.bf16.mxu0 %v694
        %857 = vmatpush1.bf16.msra.mxu0 %v693
        %858 = vmatprep.subr.bf16.mxu0 %v702
        %859 = vmatpush1.bf16.msra.mxu0 %v701
        %860 = vmatprep.subr.bf16.mxu0 %v710
        %861 = vmatpush1.bf16.msra.mxu0 %v709
        %862 = vmatprep.subr.bf16.mxu0 %v718
        %863 = vmatpush1.bf16.msra.mxu0 %v717
        %864 = vmatprep.subr.bf16.mxu0 %v726
        %865 = vmatpush1.bf16.msra.mxu0 %v725
        %866 = vmatprep.subr.bf16.mxu0 0
        %867 = vmatpush1.bf16.msra.mxu0 0
        %868 = vmatprep.subr.bf16.mxu0 0
        %869 = vmatpush1.bf16.msra.mxu0 0
        %870 = vmatprep.subr.bf16.mxu0 0
        %871 = vmatpush1.bf16.msra.mxu0 0
        %872 = vmatprep.subr.bf16.mxu0 0
        %873 = vmatpush1.bf16.msra.mxu0 0
        %874 = vmatprep.subr.bf16.mxu0 0
        %875 = vmatpush1.bf16.msra.mxu0 0
        %876 = vmatprep.subr.bf16.mxu0 0
        %877 = vmatpush1.bf16.msra.mxu0 0
        %878 = vmatprep.subr.bf16.mxu0 0
        %879 = vmatpush1.bf16.msra.mxu0 0
        %880 = vmatprep.mubr.bf16.mxu0 %v805
        %881 = vmatmul.mubr.bf16.gmra.mrb[0].mxu0 %v434
        %v882 = vpop.f32.mrb[0].mxu0
        %v883 = vadd.f32 %v418, %v882
        %v884 = vpop.f32.mrb[0].mxu0
        %v885 = vadd.f32 %v418, %v884
        %v886 = vpop.f32.mrb[0].mxu0
        %v887 = vpop.f32.mrb[0].mxu0
        %888 = vdwg.mxu0
        %889 = vmatprep.subr.bf16.mxu0 %v664
        %890 = vmatpush1.bf16.msra.mxu0 %v663
        %891 = vmatprep.subr.bf16.mxu0 %v672
        %892 = vmatpush1.bf16.msra.mxu0 %v671
        %893 = vmatprep.subr.bf16.mxu0 %v680
        %894 = vmatpush1.bf16.msra.mxu0 %v679
        %895 = vmatprep.subr.bf16.mxu0 %v688
        %896 = vmatpush1.bf16.msra.mxu0 %v687
        %897 = vmatprep.subr.bf16.mxu0 %v696
        %898 = vmatpush1.bf16.msra.mxu0 %v695
        %899 = vmatprep.subr.bf16.mxu0 %v704
        %900 = vmatpush1.bf16.msra.mxu0 %v703
        %901 = vmatprep.subr.bf16.mxu0 %v712
        %902 = vmatpush1.bf16.msra.mxu0 %v711
        %903 = vmatprep.subr.bf16.mxu0 %v720
        %904 = vmatpush1.bf16.msra.mxu0 %v719
        %905 = vmatprep.subr.bf16.mxu0 %v728
        %906 = vmatpush1.bf16.msra.mxu0 %v727
        %907 = vmatprep.subr.bf16.mxu0 0
        %908 = vmatpush1.bf16.msra.mxu0 0
        %909 = vmatprep.subr.bf16.mxu0 0
        %910 = vmatpush1.bf16.msra.mxu0 0
        %911 = vmatprep.subr.bf16.mxu0 0
        %912 = vmatpush1.bf16.msra.mxu0 0
        %913 = vmatprep.subr.bf16.mxu0 0
        %914 = vmatpush1.bf16.msra.mxu0 0
        %915 = vmatprep.subr.bf16.mxu0 0
        %916 = vmatpush1.bf16.msra.mxu0 0
        %917 = vmatprep.subr.bf16.mxu0 0
        %918 = vmatpush1.bf16.msra.mxu0 0
        %919 = vmatprep.subr.bf16.mxu0 0
        %920 = vmatpush1.bf16.msra.mxu0 0
        %921 = vmatprep.mubr.bf16.mxu0 %v805
        %922 = vmatmul.mubr.bf16.gmra.mrb[0].mxu0 %v434
        %v923 = vpop.f32.mrb[0].mxu0
        %v924 = vadd.f32 %v418, %v923
        %v925 = vpop.f32.mrb[0].mxu0
        %v926 = vadd.f32 %v418, %v925
        %v927 = vpop.f32.mrb[0].mxu0
        %v928 = vpop.f32.mrb[0].mxu0
        %929 = vdwg.mxu0
        %930 = vmatprep.subr.bf16.mxu0 %v666
        %931 = vmatpush1.bf16.msra.mxu0 %v665
        %932 = vmatprep.subr.bf16.mxu0 %v674
        %933 = vmatpush1.bf16.msra.mxu0 %v673
        %934 = vmatprep.subr.bf16.mxu0 %v682
        %935 = vmatpush1.bf16.msra.mxu0 %v681
        %936 = vmatprep.subr.bf16.mxu0 %v690
        %937 = vmatpush1.bf16.msra.mxu0 %v689
        %938 = vmatprep.subr.bf16.mxu0 %v698
        %939 = vmatpush1.bf16.msra.mxu0 %v697
        %940 = vmatprep.subr.bf16.mxu0 %v706
        %941 = vmatpush1.bf16.msra.mxu0 %v705
        %942 = vmatprep.subr.bf16.mxu0 %v714
        %943 = vmatpush1.bf16.msra.mxu0 %v713
        %944 = vmatprep.subr.bf16.mxu0 %v722
        %945 = vmatpush1.bf16.msra.mxu0 %v721
        %946 = vmatprep.subr.bf16.mxu0 %v730
        %947 = vmatpush1.bf16.msra.mxu0 %v729
        %948 = vmatprep.subr.bf16.mxu0 0
        %949 = vmatpush1.bf16.msra.mxu0 0
        %950 = vmatprep.subr.bf16.mxu0 0
        %951 = vmatpush1.bf16.msra.mxu0 0
        %952 = vmatprep.subr.bf16.mxu0 0
        %953 = vmatpush1.bf16.msra.mxu0 0
        %954 = vmatprep.subr.bf16.mxu0 0
        %955 = vmatpush1.bf16.msra.mxu0 0
        %956 = vmatprep.subr.bf16.mxu0 0
        %957 = vmatpush1.bf16.msra.mxu0 0
        %958 = vmatprep.subr.bf16.mxu0 0
        %959 = vmatpush1.bf16.msra.mxu0 0
        %960 = vmatprep.subr.bf16.mxu0 0
        %961 = vmatpush1.bf16.msra.mxu0 0
        %962 = vmatprep.mubr.bf16.mxu0 %v805
        %963 = vmatmul.mubr.bf16.gmra.mrb[0].mxu0 %v434
        %v964 = vpop.f32.mrb[0].mxu0
        %v965 = vadd.f32 %v418, %v964
        %v966 = vpop.f32.mrb[0].mxu0
        %v967 = vadd.f32 %v418, %v966
        %v968 = vpop.f32.mrb[0].mxu0
        %v969 = vpop.f32.mrb[0].mxu0
        %970 = vdwg.mxu0
        %v971 = vxor.u32 %v842, 2147483648
        %v972 = vxor.u32 %v844, 2147483648
        %v973 = vxor.u32 %v883, 2147483648
        %v974 = vxor.u32 %v885, 2147483648
        %v975 = vxor.u32 %v924, 2147483648
        %v976 = vxor.u32 %v926, 2147483648
        %v977 = vxor.u32 %v965, 2147483648
        %v978 = vxor.u32 %v967, 2147483648
        %v979 = vmul.f32 %v971, 1.442695
        %v980 = vpow.pop %v979
        %v981 = vmul.f32 %v972, 1.442695
        %v982 = vpow.pop %v981
        %v983 = vmul.f32 %v973, 1.442695
        %v984 = vpow.pop %v983
        %v985 = vmul.f32 %v974, 1.442695
        %v986 = vpow.pop %v985
        %v987 = vmul.f32 %v975, 1.442695
        %v988 = vpow.pop %v987
        %v989 = vmul.f32 %v976, 1.442695
        %v990 = vpow.pop %v989
        %v991 = vmul.f32 %v977, 1.442695
        %v992 = vpow.pop %v991
        %v993 = vmul.f32 %v978, 1.442695
        %v994 = vpow.pop %v993
        %v995 = vadd.f32 %v980, 1.0
        %v996 = vadd.f32 %v982, 1.0
        %v997 = vadd.f32 %v984, 1.0
        %v998 = vadd.f32 %v986, 1.0
        %v999 = vadd.f32 %v988, 1.0
        %v1000 = vadd.f32 %v990, 1.0
        %v1001 = vadd.f32 %v992, 1.0
        %v1002 = vadd.f32 %v994, 1.0
        %v1003 = vrcp.pop %v995
        %v1004 = vmul.f32 1.0, %v1003
        %v1005 = vrcp.pop %v996
        %v1006 = vmul.f32 1.0, %v1005
        %v1007 = vrcp.pop %v997
        %v1008 = vmul.f32 1.0, %v1007
        %v1009 = vrcp.pop %v998
        %v1010 = vmul.f32 1.0, %v1009
        %v1011 = vrcp.pop %v999
        %v1012 = vmul.f32 1.0, %v1011
        %v1013 = vrcp.pop %v1000
        %v1014 = vmul.f32 1.0, %v1013
        %v1015 = vrcp.pop %v1001
        %v1016 = vmul.f32 1.0, %v1015
        %v1017 = vrcp.pop %v1002
        %v1018 = vmul.f32 1.0, %v1017
        %v1027 = vcombine.low %v1004, %v1006
        %v1028 = vcombine.low %v1008, %v1010
        %v1029 = vcombine.low %v1012, %v1014
        %v1030 = vcombine.low %v1016, %v1018
        %v1032 = vunpack.c.l.s4 1966171168
        %v1033 = vunpack.c.0.s8 %v1032
        %v1034 = vlaneseq
        %v1035 = vshrl.u32 %v1034, 7
        %v1036 = vsub.s32 %v1033, %v1035
        %v1037 = vrot.slane %v1027, %v1036
        %v1039 = vunpack.c.l.s4 1966171168
        %v1040 = vunpack.c.0.s8 %v1039
        %v1041 = vlaneseq
        %v1042 = vshrl.u32 %v1041, 7
        %v1043 = vsub.s32 %v1040, %v1042
        %v1044 = vrot.slane %v1028, %v1043
        %v1046 = vunpack.c.l.s4 1966171168
        %v1047 = vunpack.c.0.s8 %v1046
        %v1048 = vlaneseq
        %v1049 = vshrl.u32 %v1048, 7
        %v1050 = vsub.s32 %v1047, %v1049
        %v1051 = vrot.slane %v1029, %v1050
        %v1053 = vunpack.c.l.s4 1966171168
        %v1054 = vunpack.c.0.s8 %v1053
        %v1055 = vlaneseq
        %v1056 = vshrl.u32 %v1055, 7
        %v1057 = vsub.s32 %v1054, %v1056
        %v1058 = vrot.slane %v1030, %v1057
        %v1059 = vcombine.low %v1037, %v1044
        %v1060 = vcombine.low %v1051, %v1058
        %v1062 = vunpack.c.l.s4 1966171168
        %v1063 = vunpack.c.0.s8 %v1062
        %v1064 = vlaneseq
        %v1065 = vshrl.u32 %v1064, 7
        %v1066 = vsub.s32 %v1063, %v1065
        %v1067 = vrot.slane %v1059, %v1066
        %v1069 = vunpack.c.l.s4 1966171168
        %v1070 = vunpack.c.0.s8 %v1069
        %v1071 = vlaneseq
        %v1072 = vshrl.u32 %v1071, 7
        %v1073 = vsub.s32 %v1070, %v1072
        %v1074 = vrot.slane %v1060, %v1073
        %v1075 = vcombine.low %v1067, %v1074
        %1077 = vst [vmem:[%s333] sm:$0xff] %v1075
        %s1078 = smul.u32 8, %s16
        %p1079 = scmp.lt.s32.totalorder %s1078, 15
        %s1080 = scalar_select %p1079, %s1078, 15
        %s1081 = scalar_lea.vmem %s3, %s1080
        // Predicated region
        $region56: #{forward.13} parent=50 // pred_check
          %p1082 = pneg %p102
        $region57: #{forward.13} parent=50 // pred_check_branch
          %1084 = sbr.rel (%p1082) target = $region59
        $region58: #{forward.13} parent=50 // pred_region
          %s1085 = smul.u32 8, %s16
        $region59: #{forward.13} parent=50 // pred_fallthru
          _
      $region51: #{forward.13} parent=5 // pred_fallthru
        _
      %p1086 = scmp.le.s32.totalorder 2, %s11
      // Predicated region
      $region60: #{forward.13} parent=5 // pred_check
        %p1087 = pneg %p1086
      $region61: #{forward.13} parent=5 // pred_check_branch
        %1089 = sbr.rel (%p1087) target = $region63
      $region62: #{forward.13} parent=5 // pred_region
        %s1090 = ssub.s32 %s11, 2
        // Predicated region
        $region64: #{forward.13} parent=62 // pred_check
          %p1091 = pneg %p108
        $region65: #{forward.13} parent=62 // pred_check_branch
          %1093 = sbr.rel (%p1091) target = $region67
        $region66: #{forward.13} parent=62 // pred_region
          %s1094 = smul.u32 8, %s17
          %p1095 = scmp.lt.s32.totalorder %s1094, 15
          %s1096 = scalar_select %p1095, %s1094, 15
          %s1097 = scalar_lea.vmem %s3, %s1096
        $region67: #{forward.13} parent=62 // pred_fallthru
          _
      $region63: #{forward.13} parent=5 // pred_fallthru
        _
    $region6: #{forward.13} parent=1 // loop_footer
      %s15 = sadd.s32 1, %s11
    $region7: #{forward.13} parent=1 // loop_footer_branch
      %10 = sbr.rel target = $region3
    $region8: #{forward.13} parent=1 // loop_exit
      _

</llo_original>
